<compile_context>
chip_gen: v5e
topology: v5e:2x2
jax: 0.10.0
libtpu: 0.0.40
codegen_flags: <defaults>
</compile_context>

<pallas_src>
import functools
import math

import jax
import jax.numpy as jnp
from jax import lax
from jax.experimental import pallas as pl
from jax.experimental.pallas import tpu as pltpu


# ---------------------------------------------------------------------------
# Fused Pallas kernel (row-select matmuls + dense bf16 weight matmuls + max)
# ---------------------------------------------------------------------------

def _conv_apply(a, rs_ref, m_ref, b_ref, k, P):
    # a      : (BT*Hin, Win*Cin) f32 activation
    # rs_ref : (k, BT*Ho, BT*Hin) f32 exact 0/1 row selectors (stride/shift/pad in H)
    # m_ref  : (P*k, Win*Cin, Wp*Cout) bf16 weights with column stride/shift/pad and
    #          the following pool's column offsets folded in
    # b_ref  : (1, Wp*Cout) f32 bias (broadcast over sublanes)
    rows = [jnp.dot(rs_ref[dy], a, preferred_element_type=jnp.float32)
            for dy in range(k)]                              # (BT*Ho, Win*Cin), exact
    rows16 = [r.astype(jnp.bfloat16) for r in rows]
    outs = []
    for q in range(P):                                       # one output per pool dx
        acc = None
        for dy in range(k):
            t = jnp.dot(rows16[dy], m_ref[q * k + dy],
                        preferred_element_type=jnp.float32)  # MXU bf16 x bf16 -> f32
            acc = t if acc is None else acc + t
        outs.append(acc + b_ref[...])
    return outs                                              # P x (BT*Ho, Wp*Cout) f32


def _pool_apply(outs, pr_ref, pk):
    # Column max is just an elementwise max over the pre-offset conv outputs.
    m = outs[0]
    for t in outs[1:]:
        m = jnp.maximum(m, t)
    # Row max: pk exact row-select matmuls (each output row copies one input row),
    # then elementwise max (select and max commute for 0/1 row selection).
    r = None
    for qy in range(pk):
        t = jnp.dot(pr_ref[qy], m, preferred_element_type=jnp.float32)
        r = t if r is None else jnp.maximum(r, t)
    return r


def _fused_encoder_kernel(x_ref,
                          rs1_ref, m1_ref, b1_ref, pr1_ref,
                          rs2_ref, m2_ref, b2_ref, pr2_ref,
                          rs3_ref, m3_ref, b3_ref, mm_ref,
                          o_ref):
    a = x_ref[0]                                             # (BT*H, W*Cin) f32
    o1 = _conv_apply(a, rs1_ref, m1_ref, b1_ref, k=3, P=3)   # Conv2d(1,16,3,s1,p1) ⊕ pool1 cols
    a = _pool_apply(o1, pr1_ref, pk=3)                       # MaxPool2d(3,2) rows
    o2 = _conv_apply(a, rs2_ref, m2_ref, b2_ref, k=3, P=2)   # Conv2d(16,32,3,s2,p1) ⊕ pool2 cols
    a = _pool_apply(o2, pr2_ref, pk=2)                       # MaxPool2d(2,2) rows
    o3 = _conv_apply(a, rs3_ref, m3_ref, b3_ref, k=3, P=1)   # Conv2d(32,64,3,s2,p1)
    # channel mean: (BT*Ho, Wo*Cout) @ (Wo*Cout, Wo) -> (BT*Ho, Wo) slab per step
    o_ref[0, :, :] = jnp.dot(o3[0], mm_ref[...], preferred_element_type=jnp.float32)


# ---------------------------------------------------------------------------
# Init-time "plan": fold weights + stride + zero-pad + pool column offsets
# ---------------------------------------------------------------------------

def _conv_fold(w, b, hin, win, stride, pad, pool_k, pool_s, bt):
    """Constants for one conv layer in the (H, W*C) layout.

    rs[dy][i, r]                        = 1 iff r == stride*i + dy - pad (in range)
    m[q*k+dy][wcol*Cin+ci, jp*Cout+co]  = w[co,ci,dy,dx] with dx = wcol - stride*j + pad,
                                          j = pool_s*jp + q (or j = jp if no pool),
                                          0 <= dx < k, else 0
    bias[0, jp*Cout+co]                 = b[co]
    """
    cout, cin, k, _ = w.shape
    ho = (hin + 2 * pad - k) // stride + 1
    wo = (win + 2 * pad - k) // stride + 1
    if pool_k is None:
        P, wp = 1, wo
        conv_cols = [jnp.arange(wo)]
    else:
        P = pool_k
        wp = (wo - pool_k) // pool_s + 1
        conv_cols = [pool_s * jnp.arange(wp) + q for q in range(P)]

    # row selectors (exact, f32, tiny); block-diag over the batch tile
    i = jnp.arange(ho)
    r = jnp.arange(hin)
    rs = []
    for dy in range(k):
        src = stride * i + dy - pad
        sel = (r[None, :] == src[:, None]) & ((src >= 0) & (src < hin))[:, None]
        rs.append(sel.astype(jnp.float32))
    rs = jnp.stack(rs)                                          # (k, ho, hin)
    if bt > 1:
        eye_b = jnp.eye(bt, dtype=jnp.float32)
        rs = jnp.stack([jnp.kron(eye_b, rs[dy]) for dy in range(k)])

    # dense weight matrices with column logic folded (bf16 -> halves DMA/VMEM)
    wf = w.astype(jnp.float32)
    wcol = jnp.arange(win)
    mats = []
    for q in range(P):
        j = conv_cols[q]                                        # (wp,)
        dx = wcol[:, None] - stride * j[None, :] + pad          # (win, wp)
        valid = ((dx >= 0) & (dx < k)).astype(jnp.float32)
        dxc = jnp.clip(dx, 0, k - 1)
        for dy in range(k):
            w_dy = wf[:, :, dy, :]                              # (cout, cin, k)
            g = w_dy[:, :, dxc] * valid[None, None, :, :]       # (cout, cin, win, wp)
            m = jnp.transpose(g, (2, 1, 3, 0)).reshape(win * cin, wp * cout)
            mats.append(m)
    m_all = jnp.stack(mats).astype(jnp.bfloat16)                # (P*k, win*cin, wp*cout)

    bias = jnp.tile(b.astype(jnp.float32)[None, :], (wp, 1)).reshape(1, wp * cout)
    return rs, m_all, bias, ho, wp, cout


def _pool_rows(hin, pk, ps, bt):
    hp = (hin - pk) // ps + 1
    i = jnp.arange(hp)
    r = jnp.arange(hin)
    prs = []
    for qy in range(pk):
        src = ps * i + qy
        prs.append((r[None, :] == src[:, None]).astype(jnp.float32))
    pr = jnp.stack(prs)                                         # (pk, hp, hin)
    if bt > 1:
        eye_b = jnp.eye(bt, dtype=jnp.float32)
        pr = jnp.stack([jnp.kron(eye_b, pr[qy]) for qy in range(pk)])
    return pr, hp


def pick_batch_tile(B, max_tile=8):
    """Batch tile keeping >= 2 grid steps so both v7x TensorCores stay busy."""
    if B <= 1:
        return 1
    t = max(1, min(max_tile, B // 2))
    while B % t:
        t -= 1
    return t


def build_plan(params, hin, win, batch_tile=1):
    """Precompute (once, at init) every constant operand of the fused kernel."""
    (w1, b1), (w2, b2), (w3, b3) = params
    cin1 = w1.shape[1]
    rs1, m1, bb1, h1, wp1, c1 = _conv_fold(w1, b1, hin, win, stride=1, pad=1,
                                           pool_k=3, pool_s=2, bt=batch_tile)
    pr1, hp1 = _pool_rows(h1, 3, 2, batch_tile)
    rs2, m2, bb2, h2, wp2, c2 = _conv_fold(w2, b2, hp1, wp1, stride=2, pad=1,
                                           pool_k=2, pool_s=2, bt=batch_tile)
    pr2, hp2 = _pool_rows(h2, 2, 2, batch_tile)
    rs3, m3, bb3, h3, wp3, c3 = _conv_fold(w3, b3, hp2, wp2, stride=2, pad=1,
                                           pool_k=None, pool_s=None, bt=batch_tile)
    # mean over channels at each spatial position: (Wo*Cout, Wo)
    mm = jnp.kron(jnp.eye(wp3, dtype=jnp.float32),
                  jnp.full((c3, 1), 1.0 / c3, jnp.float32))
    consts = (rs1, m1, bb1, pr1, rs2, m2, bb2, pr2, rs3, m3, bb3, mm)
    meta = dict(cin=cin1, hin=hin, win=win, ho=h3, wo=wp3, bt=batch_tile)
    return consts, meta


# ---------------------------------------------------------------------------
# Wrapper
# ---------------------------------------------------------------------------

def encoder_forward(consts, meta, x_nchw):
    """Fused Pallas forward of EncoderModel (vocab_size is unused in forward)."""
    B = x_nchw.shape[0]
    cin, hin, win = meta["cin"], meta["hin"], meta["win"]
    ho, wo, bt = meta["ho"], meta["wo"], meta["bt"]
    assert B % bt == 0, (B, bt)
    G = B // bt

    # NCHW -> NHWC -> (G, B_TILE*H, W*Cin): batch tile stacked on sublanes,
    # width x channels on lanes (lane-dense after layer 1).
    x_l = jnp.transpose(x_nchw, (0, 2, 3, 1)).astype(jnp.float32)
    x_l = x_l.reshape(G, bt * hin, win * cin)

    in_specs = [pl.BlockSpec((1, bt * hin, win * cin), lambda g: (g, 0, 0))]
    for c in consts:
        nd = c.ndim
        in_specs.append(pl.BlockSpec(c.shape, lambda g, _nd=nd: (0,) * _nd))

    out = pl.pallas_call(
        _fused_encoder_kernel,
        out_shape=jax.ShapeDtypeStruct((G, bt * ho, wo), jnp.float32),
        grid=(G,),
        in_specs=in_specs,
        out_specs=pl.BlockSpec((1, bt * ho, wo), lambda g: (g, 0, 0)),
        compiler_params=pltpu.CompilerParams(
            dimension_semantics=("parallel",)),
    )(x_l, *consts)
    return out.reshape(B, ho * wo)


# ---------------------------------------------------------------------------
# Deterministic parameter init (PyTorch-like uniform fan-in bounds)
# ---------------------------------------------------------------------------

def init_conv(key, cin, cout, k):
    k1, k2 = jax.random.split(key)
    bound = 1.0 / math.sqrt(cin * k * k)
    w = jax.random.uniform(k1, (cout, cin, k, k), jnp.float32, -bound, bound)
    b = jax.random.uniform(k2, (cout,), jnp.float32, -bound, bound)
    return w, b


# ---------------------------------------------------------------------------
# Pure-JAX reference (XLA ops) for a correctness check
# ---------------------------------------------------------------------------

def _ref_conv(x, w, b, *, stride, pad):
    B, H, W, Cin = x.shape
    Cout, _, k, _ = w.shape
    xp = jnp.pad(x, ((0, 0), (pad, pad), (pad, pad), (0, 0)))
    Ho = (H + 2 * pad - k) // stride + 1
    Wo = (W + 2 * pad - k) // stride + 1
    cols = [
        xp[:, dy:dy + stride * Ho:stride, dx:dx + stride * Wo:stride, :]
        for dy in range(k) for dx in range(k)
    ]
    patches = jnp.concatenate(cols, axis=-1).reshape(B * Ho * Wo, k * k * Cin)
    wmat = jnp.transpose(w, (2, 3, 1, 0)).reshape(k * k * Cin, Cout)
    out = jnp.dot(patches, wmat, precision=lax.Precision.HIGHEST) + b[None, :]
    return out.reshape(B, Ho, Wo, Cout)


def _ref_pool(x, *, k, stride):
    B, H, W, C = x.shape
    Ho = (H - k) // stride + 1
    Wo = (W - k) // stride + 1
    wins = [
        x[:, dy:dy + stride * Ho:stride, dx:dx + stride * Wo:stride, :]
        for dy in range(k) for dx in range(k)
    ]
    return jnp.max(jnp.stack(wins, axis=0), axis=0)


def reference_forward(params, x_nchw):
    x = jnp.transpose(x_nchw, (0, 2, 3, 1)).astype(jnp.float32)
    (w1, b1), (w2, b2), (w3, b3) = params
    h = _ref_conv(x, w1, b1, stride=1, pad=1)
    h = _ref_pool(h, k=3, stride=2)
    h = _ref_conv(h, w2, b2, stride=2, pad=1)
    h = _ref_pool(h, k=2, stride=2)
    h = _ref_conv(h, w3, b3, stride=2, pad=1)
    B, Ho, Wo, C = h.shape
    return jnp.mean(h.reshape(B, Ho * Wo, C), axis=-1)


if __name__ == "__main__":
    key = jax.random.PRNGKey(0)
    kx, k1, k2, k3 = jax.random.split(key, 4)
    params = (
        init_conv(k1, 1, 16, 3),
        init_conv(k2, 16, 32, 3),
        init_conv(k3, 32, 64, 3),
    )
    # Example input, NCHW like the PyTorch module: (B=2, C=1, H=32, W=32)
    B, H, W = 2, 32, 32
    x = jax.random.normal(kx, (B, 1, H, W), dtype=jnp.float32)

    bt = pick_batch_tile(B)                      # B=2 -> tile 1 -> 2 parallel steps
    consts, meta = build_plan(params, H, W, batch_tile=bt)   # one-time init
    fwd = jax.jit(functools.partial(encoder_forward, consts, meta))
    out = jax.block_until_ready(fwd(x))

    # 32 -> conv(s1) 32 -> pool(3,2) 15 -> conv(s2) 8 -> pool(2,2) 4 -> conv(s2) 2
    assert out.shape == (B, meta["ho"] * meta["wo"]) == (B, 4), out.shape
    assert bool(jnp.all(jnp.isfinite(out)))
    ref = reference_forward(params, x)
    err = float(jnp.max(jnp.abs(out - ref)))
    # bf16 folded weights / bf16 activation operands, f32 accumulation
    assert bool(jnp.allclose(out, ref, atol=2e-2, rtol=2e-2)), err
    print("KERNEL_OK")
</pallas_src>

<mosaic_0001>
module attributes {stable_mosaic.version = 11 : i64} {
  func.func @_fused_encoder_kernel(%arg0: i32, %arg1: memref<1x32x32xf32, #tpu.memory_space<vmem>>, %arg2: memref<3x32x32xf32, #tpu.memory_space<vmem>>, %arg3: memref<9x32x240xbf16, #tpu.memory_space<vmem>>, %arg4: memref<1x240xf32, #tpu.memory_space<vmem>>, %arg5: memref<3x15x32xf32, #tpu.memory_space<vmem>>, %arg6: memref<3x8x15xf32, #tpu.memory_space<vmem>>, %arg7: memref<6x240x128xbf16, #tpu.memory_space<vmem>>, %arg8: memref<1x128xf32, #tpu.memory_space<vmem>>, %arg9: memref<2x4x8xf32, #tpu.memory_space<vmem>>, %arg10: memref<3x2x4xf32, #tpu.memory_space<vmem>>, %arg11: memref<3x128x128xbf16, #tpu.memory_space<vmem>>, %arg12: memref<1x128xf32, #tpu.memory_space<vmem>>, %arg13: memref<128x2xf32, #tpu.memory_space<vmem>>, %arg14: memref<1x2x2xf32, #tpu.memory_space<vmem>>) attributes {dimension_semantics = [#tpu.dimension_semantics<parallel>], iteration_bounds = array<i64: 2>, scalar_prefetch = 0 : i64, scratch_operands = 0 : i64, tpu.core_type = #tpu.core_type<tc>, window_params = [{transform_indices = @transform_0, window_bounds = array<i64: 1, 32, 32>}, {pipeline_mode = #tpu.pipeline_mode<synchronous>, transform_indices = @transform_1, window_bounds = array<i64: 3, 32, 32>}, {pipeline_mode = #tpu.pipeline_mode<synchronous>, transform_indices = @transform_2, window_bounds = array<i64: 9, 32, 240>}, {pipeline_mode = #tpu.pipeline_mode<synchronous>, transform_indices = @transform_3, window_bounds = array<i64: 1, 240>}, {pipeline_mode = #tpu.pipeline_mode<synchronous>, transform_indices = @transform_4, window_bounds = array<i64: 3, 15, 32>}, {pipeline_mode = #tpu.pipeline_mode<synchronous>, transform_indices = @transform_5, window_bounds = array<i64: 3, 8, 15>}, {pipeline_mode = #tpu.pipeline_mode<synchronous>, transform_indices = @transform_6, window_bounds = array<i64: 6, 240, 128>}, {pipeline_mode = #tpu.pipeline_mode<synchronous>, transform_indices = @transform_7, window_bounds = array<i64: 1, 128>}, {pipeline_mode = #tpu.pipeline_mode<synchronous>, transform_indices = @transform_8, window_bounds = array<i64: 2, 4, 8>}, {pipeline_mode = #tpu.pipeline_mode<synchronous>, transform_indices = @transform_9, window_bounds = array<i64: 3, 2, 4>}, {pipeline_mode = #tpu.pipeline_mode<synchronous>, transform_indices = @transform_10, window_bounds = array<i64: 3, 128, 128>}, {pipeline_mode = #tpu.pipeline_mode<synchronous>, transform_indices = @transform_11, window_bounds = array<i64: 1, 128>}, {pipeline_mode = #tpu.pipeline_mode<synchronous>, transform_indices = @transform_12, window_bounds = array<i64: 128, 2>}, {transform_indices = @transform_13, window_bounds = array<i64: 1, 2, 2>}]} {
    %c0 = arith.constant 0 : index
    %c0_0 = arith.constant 0 : index
    %c0_1 = arith.constant 0 : index
    %0 = vector.load %arg1[%c0, %c0_0, %c0_1] : memref<1x32x32xf32, #tpu.memory_space<vmem>>, vector<1x32x32xf32>
    %1 = vector.shape_cast %0 : vector<1x32x32xf32> to vector<32x32xf32>
    %c0_2 = arith.constant 0 : index
    %c0_3 = arith.constant 0 : index
    %c0_4 = arith.constant 0 : index
    %2 = vector.load %arg2[%c0_2, %c0_3, %c0_4] : memref<3x32x32xf32, #tpu.memory_space<vmem>>, vector<1x32x32xf32>
    %3 = vector.shape_cast %2 : vector<1x32x32xf32> to vector<32x32xf32>
    %cst = arith.constant dense<0.000000e+00> : vector<32x32xf32>
    %4 = tpu.matmul %3, %1, %cst {dimension_numbers = #tpu.dot_dimension_numbers<[1], [0], [0], [1], [0, 0, 1, 1], [], []>} : vector<32x32xf32>, vector<32x32xf32>, vector<32x32xf32> -> vector<32x32xf32>
    %c1 = arith.constant 1 : index
    %c0_5 = arith.constant 0 : index
    %c0_6 = arith.constant 0 : index
    %5 = vector.load %arg2[%c1, %c0_5, %c0_6] : memref<3x32x32xf32, #tpu.memory_space<vmem>>, vector<1x32x32xf32>
    %6 = vector.shape_cast %5 : vector<1x32x32xf32> to vector<32x32xf32>
    %cst_7 = arith.constant dense<0.000000e+00> : vector<32x32xf32>
    %7 = tpu.matmul %6, %1, %cst_7 {dimension_numbers = #tpu.dot_dimension_numbers<[1], [0], [0], [1], [0, 0, 1, 1], [], []>} : vector<32x32xf32>, vector<32x32xf32>, vector<32x32xf32> -> vector<32x32xf32>
    %c2 = arith.constant 2 : index
    %c0_8 = arith.constant 0 : index
    %c0_9 = arith.constant 0 : index
    %8 = vector.load %arg2[%c2, %c0_8, %c0_9] : memref<3x32x32xf32, #tpu.memory_space<vmem>>, vector<1x32x32xf32>
    %9 = vector.shape_cast %8 : vector<1x32x32xf32> to vector<32x32xf32>
    %cst_10 = arith.constant dense<0.000000e+00> : vector<32x32xf32>
    %10 = tpu.matmul %9, %1, %cst_10 {dimension_numbers = #tpu.dot_dimension_numbers<[1], [0], [0], [1], [0, 0, 1, 1], [], []>} : vector<32x32xf32>, vector<32x32xf32>, vector<32x32xf32> -> vector<32x32xf32>
    %11 = arith.truncf %4 : vector<32x32xf32> to vector<32x32xbf16>
    %12 = arith.truncf %7 : vector<32x32xf32> to vector<32x32xbf16>
    %13 = arith.truncf %10 : vector<32x32xf32> to vector<32x32xbf16>
    %c0_11 = arith.constant 0 : index
    %c0_12 = arith.constant 0 : index
    %c0_13 = arith.constant 0 : index
    %14 = vector.load %arg3[%c0_11, %c0_12, %c0_13] : memref<9x32x240xbf16, #tpu.memory_space<vmem>>, vector<1x32x240xbf16>
    %15 = vector.shape_cast %14 : vector<1x32x240xbf16> to vector<32x240xbf16>
    %cst_14 = arith.constant dense<0.000000e+00> : vector<32x240xf32>
    %16 = tpu.matmul %11, %15, %cst_14 {dimension_numbers = #tpu.dot_dimension_numbers<[1], [0], [0], [1], [0, 0, 1, 1], [], []>} : vector<32x32xbf16>, vector<32x240xbf16>, vector<32x240xf32> -> vector<32x240xf32>
    %c1_15 = arith.constant 1 : index
    %c0_16 = arith.constant 0 : index
    %c0_17 = arith.constant 0 : index
    %17 = vector.load %arg3[%c1_15, %c0_16, %c0_17] : memref<9x32x240xbf16, #tpu.memory_space<vmem>>, vector<1x32x240xbf16>
    %18 = vector.shape_cast %17 : vector<1x32x240xbf16> to vector<32x240xbf16>
    %cst_18 = arith.constant dense<0.000000e+00> : vector<32x240xf32>
    %19 = tpu.matmul %12, %18, %cst_18 {dimension_numbers = #tpu.dot_dimension_numbers<[1], [0], [0], [1], [0, 0, 1, 1], [], []>} : vector<32x32xbf16>, vector<32x240xbf16>, vector<32x240xf32> -> vector<32x240xf32>
    %20 = arith.addf %16, %19 : vector<32x240xf32>
    %c2_19 = arith.constant 2 : index
    %c0_20 = arith.constant 0 : index
    %c0_21 = arith.constant 0 : index
    %21 = vector.load %arg3[%c2_19, %c0_20, %c0_21] : memref<9x32x240xbf16, #tpu.memory_space<vmem>>, vector<1x32x240xbf16>
    %22 = vector.shape_cast %21 : vector<1x32x240xbf16> to vector<32x240xbf16>
    %cst_22 = arith.constant dense<0.000000e+00> : vector<32x240xf32>
    %23 = tpu.matmul %13, %22, %cst_22 {dimension_numbers = #tpu.dot_dimension_numbers<[1], [0], [0], [1], [0, 0, 1, 1], [], []>} : vector<32x32xbf16>, vector<32x240xbf16>, vector<32x240xf32> -> vector<32x240xf32>
    %24 = arith.addf %20, %23 : vector<32x240xf32>
    %c0_23 = arith.constant 0 : index
    %c0_24 = arith.constant 0 : index
    %25 = vector.load %arg4[%c0_23, %c0_24] : memref<1x240xf32, #tpu.memory_space<vmem>>, vector<1x240xf32>
    %26 = vector.broadcast %25 : vector<1x240xf32> to vector<32x240xf32>
    %27 = arith.addf %24, %26 : vector<32x240xf32>
    %c3 = arith.constant 3 : index
    %c0_25 = arith.constant 0 : index
    %c0_26 = arith.constant 0 : index
    %28 = vector.load %arg3[%c3, %c0_25, %c0_26] : memref<9x32x240xbf16, #tpu.memory_space<vmem>>, vector<1x32x240xbf16>
    %29 = vector.shape_cast %28 : vector<1x32x240xbf16> to vector<32x240xbf16>
    %cst_27 = arith.constant dense<0.000000e+00> : vector<32x240xf32>
    %30 = tpu.matmul %11, %29, %cst_27 {dimension_numbers = #tpu.dot_dimension_numbers<[1], [0], [0], [1], [0, 0, 1, 1], [], []>} : vector<32x32xbf16>, vector<32x240xbf16>, vector<32x240xf32> -> vector<32x240xf32>
    %c4 = arith.constant 4 : index
    %c0_28 = arith.constant 0 : index
    %c0_29 = arith.constant 0 : index
    %31 = vector.load %arg3[%c4, %c0_28, %c0_29] : memref<9x32x240xbf16, #tpu.memory_space<vmem>>, vector<1x32x240xbf16>
    %32 = vector.shape_cast %31 : vector<1x32x240xbf16> to vector<32x240xbf16>
    %cst_30 = arith.constant dense<0.000000e+00> : vector<32x240xf32>
    %33 = tpu.matmul %12, %32, %cst_30 {dimension_numbers = #tpu.dot_dimension_numbers<[1], [0], [0], [1], [0, 0, 1, 1], [], []>} : vector<32x32xbf16>, vector<32x240xbf16>, vector<32x240xf32> -> vector<32x240xf32>
    %34 = arith.addf %30, %33 : vector<32x240xf32>
    %c5 = arith.constant 5 : index
    %c0_31 = arith.constant 0 : index
    %c0_32 = arith.constant 0 : index
    %35 = vector.load %arg3[%c5, %c0_31, %c0_32] : memref<9x32x240xbf16, #tpu.memory_space<vmem>>, vector<1x32x240xbf16>
    %36 = vector.shape_cast %35 : vector<1x32x240xbf16> to vector<32x240xbf16>
    %cst_33 = arith.constant dense<0.000000e+00> : vector<32x240xf32>
    %37 = tpu.matmul %13, %36, %cst_33 {dimension_numbers = #tpu.dot_dimension_numbers<[1], [0], [0], [1], [0, 0, 1, 1], [], []>} : vector<32x32xbf16>, vector<32x240xbf16>, vector<32x240xf32> -> vector<32x240xf32>
    %38 = arith.addf %34, %37 : vector<32x240xf32>
    %c0_34 = arith.constant 0 : index
    %c0_35 = arith.constant 0 : index
    %39 = vector.load %arg4[%c0_34, %c0_35] : memref<1x240xf32, #tpu.memory_space<vmem>>, vector<1x240xf32>
    %40 = vector.broadcast %39 : vector<1x240xf32> to vector<32x240xf32>
    %41 = arith.addf %38, %40 : vector<32x240xf32>
    %c6 = arith.constant 6 : index
    %c0_36 = arith.constant 0 : index
    %c0_37 = arith.constant 0 : index
    %42 = vector.load %arg3[%c6, %c0_36, %c0_37] : memref<9x32x240xbf16, #tpu.memory_space<vmem>>, vector<1x32x240xbf16>
    %43 = vector.shape_cast %42 : vector<1x32x240xbf16> to vector<32x240xbf16>
    %cst_38 = arith.constant dense<0.000000e+00> : vector<32x240xf32>
    %44 = tpu.matmul %11, %43, %cst_38 {dimension_numbers = #tpu.dot_dimension_numbers<[1], [0], [0], [1], [0, 0, 1, 1], [], []>} : vector<32x32xbf16>, vector<32x240xbf16>, vector<32x240xf32> -> vector<32x240xf32>
    %c7 = arith.constant 7 : index
    %c0_39 = arith.constant 0 : index
    %c0_40 = arith.constant 0 : index
    %45 = vector.load %arg3[%c7, %c0_39, %c0_40] : memref<9x32x240xbf16, #tpu.memory_space<vmem>>, vector<1x32x240xbf16>
    %46 = vector.shape_cast %45 : vector<1x32x240xbf16> to vector<32x240xbf16>
    %cst_41 = arith.constant dense<0.000000e+00> : vector<32x240xf32>
    %47 = tpu.matmul %12, %46, %cst_41 {dimension_numbers = #tpu.dot_dimension_numbers<[1], [0], [0], [1], [0, 0, 1, 1], [], []>} : vector<32x32xbf16>, vector<32x240xbf16>, vector<32x240xf32> -> vector<32x240xf32>
    %48 = arith.addf %44, %47 : vector<32x240xf32>
    %c8 = arith.constant 8 : index
    %c0_42 = arith.constant 0 : index
    %c0_43 = arith.constant 0 : index
    %49 = vector.load %arg3[%c8, %c0_42, %c0_43] : memref<9x32x240xbf16, #tpu.memory_space<vmem>>, vector<1x32x240xbf16>
    %50 = vector.shape_cast %49 : vector<1x32x240xbf16> to vector<32x240xbf16>
    %cst_44 = arith.constant dense<0.000000e+00> : vector<32x240xf32>
    %51 = tpu.matmul %13, %50, %cst_44 {dimension_numbers = #tpu.dot_dimension_numbers<[1], [0], [0], [1], [0, 0, 1, 1], [], []>} : vector<32x32xbf16>, vector<32x240xbf16>, vector<32x240xf32> -> vector<32x240xf32>
    %52 = arith.addf %48, %51 : vector<32x240xf32>
    %c0_45 = arith.constant 0 : index
    %c0_46 = arith.constant 0 : index
    %53 = vector.load %arg4[%c0_45, %c0_46] : memref<1x240xf32, #tpu.memory_space<vmem>>, vector<1x240xf32>
    %54 = vector.broadcast %53 : vector<1x240xf32> to vector<32x240xf32>
    %55 = arith.addf %52, %54 : vector<32x240xf32>
    %56 = arith.maximumf %27, %41 : vector<32x240xf32>
    %57 = arith.maximumf %56, %55 : vector<32x240xf32>
    %c0_47 = arith.constant 0 : index
    %c0_48 = arith.constant 0 : index
    %c0_49 = arith.constant 0 : index
    %58 = vector.load %arg5[%c0_47, %c0_48, %c0_49] : memref<3x15x32xf32, #tpu.memory_space<vmem>>, vector<1x15x32xf32>
    %59 = vector.shape_cast %58 : vector<1x15x32xf32> to vector<15x32xf32>
    %cst_50 = arith.constant dense<0.000000e+00> : vector<15x240xf32>
    %60 = tpu.matmul %59, %57, %cst_50 {dimension_numbers = #tpu.dot_dimension_numbers<[1], [0], [0], [1], [0, 0, 1, 1], [], []>} : vector<15x32xf32>, vector<32x240xf32>, vector<15x240xf32> -> vector<15x240xf32>
    %c1_51 = arith.constant 1 : index
    %c0_52 = arith.constant 0 : index
    %c0_53 = arith.constant 0 : index
    %61 = vector.load %arg5[%c1_51, %c0_52, %c0_53] : memref<3x15x32xf32, #tpu.memory_space<vmem>>, vector<1x15x32xf32>
    %62 = vector.shape_cast %61 : vector<1x15x32xf32> to vector<15x32xf32>
    %cst_54 = arith.constant dense<0.000000e+00> : vector<15x240xf32>
    %63 = tpu.matmul %62, %57, %cst_54 {dimension_numbers = #tpu.dot_dimension_numbers<[1], [0], [0], [1], [0, 0, 1, 1], [], []>} : vector<15x32xf32>, vector<32x240xf32>, vector<15x240xf32> -> vector<15x240xf32>
    %64 = arith.maximumf %60, %63 : vector<15x240xf32>
    %c2_55 = arith.constant 2 : index
    %c0_56 = arith.constant 0 : index
    %c0_57 = arith.constant 0 : index
    %65 = vector.load %arg5[%c2_55, %c0_56, %c0_57] : memref<3x15x32xf32, #tpu.memory_space<vmem>>, vector<1x15x32xf32>
    %66 = vector.shape_cast %65 : vector<1x15x32xf32> to vector<15x32xf32>
    %cst_58 = arith.constant dense<0.000000e+00> : vector<15x240xf32>
    %67 = tpu.matmul %66, %57, %cst_58 {dimension_numbers = #tpu.dot_dimension_numbers<[1], [0], [0], [1], [0, 0, 1, 1], [], []>} : vector<15x32xf32>, vector<32x240xf32>, vector<15x240xf32> -> vector<15x240xf32>
    %68 = arith.maximumf %64, %67 : vector<15x240xf32>
    %c0_59 = arith.constant 0 : index
    %c0_60 = arith.constant 0 : index
    %c0_61 = arith.constant 0 : index
    %69 = vector.load %arg6[%c0_59, %c0_60, %c0_61] : memref<3x8x15xf32, #tpu.memory_space<vmem>>, vector<1x8x15xf32>
    %70 = vector.shape_cast %69 : vector<1x8x15xf32> to vector<8x15xf32>
    %cst_62 = arith.constant dense<0.000000e+00> : vector<8x240xf32>
    %71 = tpu.matmul %70, %68, %cst_62 {dimension_numbers = #tpu.dot_dimension_numbers<[1], [0], [0], [1], [0, 0, 1, 1], [], []>} : vector<8x15xf32>, vector<15x240xf32>, vector<8x240xf32> -> vector<8x240xf32>
    %c1_63 = arith.constant 1 : index
    %c0_64 = arith.constant 0 : index
    %c0_65 = arith.constant 0 : index
    %72 = vector.load %arg6[%c1_63, %c0_64, %c0_65] : memref<3x8x15xf32, #tpu.memory_space<vmem>>, vector<1x8x15xf32>
    %73 = vector.shape_cast %72 : vector<1x8x15xf32> to vector<8x15xf32>
    %cst_66 = arith.constant dense<0.000000e+00> : vector<8x240xf32>
    %74 = tpu.matmul %73, %68, %cst_66 {dimension_numbers = #tpu.dot_dimension_numbers<[1], [0], [0], [1], [0, 0, 1, 1], [], []>} : vector<8x15xf32>, vector<15x240xf32>, vector<8x240xf32> -> vector<8x240xf32>
    %c2_67 = arith.constant 2 : index
    %c0_68 = arith.constant 0 : index
    %c0_69 = arith.constant 0 : index
    %75 = vector.load %arg6[%c2_67, %c0_68, %c0_69] : memref<3x8x15xf32, #tpu.memory_space<vmem>>, vector<1x8x15xf32>
    %76 = vector.shape_cast %75 : vector<1x8x15xf32> to vector<8x15xf32>
    %cst_70 = arith.constant dense<0.000000e+00> : vector<8x240xf32>
    %77 = tpu.matmul %76, %68, %cst_70 {dimension_numbers = #tpu.dot_dimension_numbers<[1], [0], [0], [1], [0, 0, 1, 1], [], []>} : vector<8x15xf32>, vector<15x240xf32>, vector<8x240xf32> -> vector<8x240xf32>
    %78 = arith.truncf %71 : vector<8x240xf32> to vector<8x240xbf16>
    %79 = arith.truncf %74 : vector<8x240xf32> to vector<8x240xbf16>
    %80 = arith.truncf %77 : vector<8x240xf32> to vector<8x240xbf16>
    %c0_71 = arith.constant 0 : index
    %c0_72 = arith.constant 0 : index
    %c0_73 = arith.constant 0 : index
    %81 = vector.load %arg7[%c0_71, %c0_72, %c0_73] : memref<6x240x128xbf16, #tpu.memory_space<vmem>>, vector<1x240x128xbf16>
    %82 = vector.shape_cast %81 : vector<1x240x128xbf16> to vector<240x128xbf16>
    %cst_74 = arith.constant dense<0.000000e+00> : vector<8x128xf32>
    %83 = tpu.matmul %78, %82, %cst_74 {dimension_numbers = #tpu.dot_dimension_numbers<[1], [0], [0], [1], [0, 0, 1, 1], [], []>} : vector<8x240xbf16>, vector<240x128xbf16>, vector<8x128xf32> -> vector<8x128xf32>
    %c1_75 = arith.constant 1 : index
    %c0_76 = arith.constant 0 : index
    %c0_77 = arith.constant 0 : index
    %84 = vector.load %arg7[%c1_75, %c0_76, %c0_77] : memref<6x240x128xbf16, #tpu.memory_space<vmem>>, vector<1x240x128xbf16>
    %85 = vector.shape_cast %84 : vector<1x240x128xbf16> to vector<240x128xbf16>
    %cst_78 = arith.constant dense<0.000000e+00> : vector<8x128xf32>
    %86 = tpu.matmul %79, %85, %cst_78 {dimension_numbers = #tpu.dot_dimension_numbers<[1], [0], [0], [1], [0, 0, 1, 1], [], []>} : vector<8x240xbf16>, vector<240x128xbf16>, vector<8x128xf32> -> vector<8x128xf32>
    %87 = arith.addf %83, %86 : vector<8x128xf32>
    %c2_79 = arith.constant 2 : index
    %c0_80 = arith.constant 0 : index
    %c0_81 = arith.constant 0 : index
    %88 = vector.load %arg7[%c2_79, %c0_80, %c0_81] : memref<6x240x128xbf16, #tpu.memory_space<vmem>>, vector<1x240x128xbf16>
    %89 = vector.shape_cast %88 : vector<1x240x128xbf16> to vector<240x128xbf16>
    %cst_82 = arith.constant dense<0.000000e+00> : vector<8x128xf32>
    %90 = tpu.matmul %80, %89, %cst_82 {dimension_numbers = #tpu.dot_dimension_numbers<[1], [0], [0], [1], [0, 0, 1, 1], [], []>} : vector<8x240xbf16>, vector<240x128xbf16>, vector<8x128xf32> -> vector<8x128xf32>
    %91 = arith.addf %87, %90 : vector<8x128xf32>
    %c0_83 = arith.constant 0 : index
    %c0_84 = arith.constant 0 : index
    %92 = vector.load %arg8[%c0_83, %c0_84] : memref<1x128xf32, #tpu.memory_space<vmem>>, vector<1x128xf32>
    %93 = vector.broadcast %92 : vector<1x128xf32> to vector<8x128xf32>
    %94 = arith.addf %91, %93 : vector<8x128xf32>
    %c3_85 = arith.constant 3 : index
    %c0_86 = arith.constant 0 : index
    %c0_87 = arith.constant 0 : index
    %95 = vector.load %arg7[%c3_85, %c0_86, %c0_87] : memref<6x240x128xbf16, #tpu.memory_space<vmem>>, vector<1x240x128xbf16>
    %96 = vector.shape_cast %95 : vector<1x240x128xbf16> to vector<240x128xbf16>
    %cst_88 = arith.constant dense<0.000000e+00> : vector<8x128xf32>
    %97 = tpu.matmul %78, %96, %cst_88 {dimension_numbers = #tpu.dot_dimension_numbers<[1], [0], [0], [1], [0, 0, 1, 1], [], []>} : vector<8x240xbf16>, vector<240x128xbf16>, vector<8x128xf32> -> vector<8x128xf32>
    %c4_89 = arith.constant 4 : index
    %c0_90 = arith.constant 0 : index
    %c0_91 = arith.constant 0 : index
    %98 = vector.load %arg7[%c4_89, %c0_90, %c0_91] : memref<6x240x128xbf16, #tpu.memory_space<vmem>>, vector<1x240x128xbf16>
    %99 = vector.shape_cast %98 : vector<1x240x128xbf16> to vector<240x128xbf16>
    %cst_92 = arith.constant dense<0.000000e+00> : vector<8x128xf32>
    %100 = tpu.matmul %79, %99, %cst_92 {dimension_numbers = #tpu.dot_dimension_numbers<[1], [0], [0], [1], [0, 0, 1, 1], [], []>} : vector<8x240xbf16>, vector<240x128xbf16>, vector<8x128xf32> -> vector<8x128xf32>
    %101 = arith.addf %97, %100 : vector<8x128xf32>
    %c5_93 = arith.constant 5 : index
    %c0_94 = arith.constant 0 : index
    %c0_95 = arith.constant 0 : index
    %102 = vector.load %arg7[%c5_93, %c0_94, %c0_95] : memref<6x240x128xbf16, #tpu.memory_space<vmem>>, vector<1x240x128xbf16>
    %103 = vector.shape_cast %102 : vector<1x240x128xbf16> to vector<240x128xbf16>
    %cst_96 = arith.constant dense<0.000000e+00> : vector<8x128xf32>
    %104 = tpu.matmul %80, %103, %cst_96 {dimension_numbers = #tpu.dot_dimension_numbers<[1], [0], [0], [1], [0, 0, 1, 1], [], []>} : vector<8x240xbf16>, vector<240x128xbf16>, vector<8x128xf32> -> vector<8x128xf32>
    %105 = arith.addf %101, %104 : vector<8x128xf32>
    %c0_97 = arith.constant 0 : index
    %c0_98 = arith.constant 0 : index
    %106 = vector.load %arg8[%c0_97, %c0_98] : memref<1x128xf32, #tpu.memory_space<vmem>>, vector<1x128xf32>
    %107 = vector.broadcast %106 : vector<1x128xf32> to vector<8x128xf32>
    %108 = arith.addf %105, %107 : vector<8x128xf32>
    %109 = arith.maximumf %94, %108 : vector<8x128xf32>
    %c0_99 = arith.constant 0 : index
    %c0_100 = arith.constant 0 : index
    %c0_101 = arith.constant 0 : index
    %110 = vector.load %arg9[%c0_99, %c0_100, %c0_101] : memref<2x4x8xf32, #tpu.memory_space<vmem>>, vector<1x4x8xf32>
    %111 = vector.shape_cast %110 : vector<1x4x8xf32> to vector<4x8xf32>
    %cst_102 = arith.constant dense<0.000000e+00> : vector<4x128xf32>
    %112 = tpu.matmul %111, %109, %cst_102 {dimension_numbers = #tpu.dot_dimension_numbers<[1], [0], [0], [1], [0, 0, 1, 1], [], []>} : vector<4x8xf32>, vector<8x128xf32>, vector<4x128xf32> -> vector<4x128xf32>
    %c1_103 = arith.constant 1 : index
    %c0_104 = arith.constant 0 : index
    %c0_105 = arith.constant 0 : index
    %113 = vector.load %arg9[%c1_103, %c0_104, %c0_105] : memref<2x4x8xf32, #tpu.memory_space<vmem>>, vector<1x4x8xf32>
    %114 = vector.shape_cast %113 : vector<1x4x8xf32> to vector<4x8xf32>
    %cst_106 = arith.constant dense<0.000000e+00> : vector<4x128xf32>
    %115 = tpu.matmul %114, %109, %cst_106 {dimension_numbers = #tpu.dot_dimension_numbers<[1], [0], [0], [1], [0, 0, 1, 1], [], []>} : vector<4x8xf32>, vector<8x128xf32>, vector<4x128xf32> -> vector<4x128xf32>
    %116 = arith.maximumf %112, %115 : vector<4x128xf32>
    %c0_107 = arith.constant 0 : index
    %c0_108 = arith.constant 0 : index
    %c0_109 = arith.constant 0 : index
    %117 = vector.load %arg10[%c0_107, %c0_108, %c0_109] : memref<3x2x4xf32, #tpu.memory_space<vmem>>, vector<1x2x4xf32>
    %118 = vector.shape_cast %117 : vector<1x2x4xf32> to vector<2x4xf32>
    %cst_110 = arith.constant dense<0.000000e+00> : vector<2x128xf32>
    %119 = tpu.matmul %118, %116, %cst_110 {dimension_numbers = #tpu.dot_dimension_numbers<[1], [0], [0], [1], [0, 0, 1, 1], [], []>} : vector<2x4xf32>, vector<4x128xf32>, vector<2x128xf32> -> vector<2x128xf32>
    %c1_111 = arith.constant 1 : index
    %c0_112 = arith.constant 0 : index
    %c0_113 = arith.constant 0 : index
    %120 = vector.load %arg10[%c1_111, %c0_112, %c0_113] : memref<3x2x4xf32, #tpu.memory_space<vmem>>, vector<1x2x4xf32>
    %121 = vector.shape_cast %120 : vector<1x2x4xf32> to vector<2x4xf32>
    %cst_114 = arith.constant dense<0.000000e+00> : vector<2x128xf32>
    %122 = tpu.matmul %121, %116, %cst_114 {dimension_numbers = #tpu.dot_dimension_numbers<[1], [0], [0], [1], [0, 0, 1, 1], [], []>} : vector<2x4xf32>, vector<4x128xf32>, vector<2x128xf32> -> vector<2x128xf32>
    %c2_115 = arith.constant 2 : index
    %c0_116 = arith.constant 0 : index
    %c0_117 = arith.constant 0 : index
    %123 = vector.load %arg10[%c2_115, %c0_116, %c0_117] : memref<3x2x4xf32, #tpu.memory_space<vmem>>, vector<1x2x4xf32>
    %124 = vector.shape_cast %123 : vector<1x2x4xf32> to vector<2x4xf32>
    %cst_118 = arith.constant dense<0.000000e+00> : vector<2x128xf32>
    %125 = tpu.matmul %124, %116, %cst_118 {dimension_numbers = #tpu.dot_dimension_numbers<[1], [0], [0], [1], [0, 0, 1, 1], [], []>} : vector<2x4xf32>, vector<4x128xf32>, vector<2x128xf32> -> vector<2x128xf32>
    %126 = arith.truncf %119 : vector<2x128xf32> to vector<2x128xbf16>
    %127 = arith.truncf %122 : vector<2x128xf32> to vector<2x128xbf16>
    %128 = arith.truncf %125 : vector<2x128xf32> to vector<2x128xbf16>
    %c0_119 = arith.constant 0 : index
    %c0_120 = arith.constant 0 : index
    %c0_121 = arith.constant 0 : index
    %129 = vector.load %arg11[%c0_119, %c0_120, %c0_121] : memref<3x128x128xbf16, #tpu.memory_space<vmem>>, vector<1x128x128xbf16>
    %130 = vector.shape_cast %129 : vector<1x128x128xbf16> to vector<128x128xbf16>
    %cst_122 = arith.constant dense<0.000000e+00> : vector<2x128xf32>
    %131 = tpu.matmul %126, %130, %cst_122 {dimension_numbers = #tpu.dot_dimension_numbers<[1], [0], [0], [1], [0, 0, 1, 1], [], []>} : vector<2x128xbf16>, vector<128x128xbf16>, vector<2x128xf32> -> vector<2x128xf32>
    %c1_123 = arith.constant 1 : index
    %c0_124 = arith.constant 0 : index
    %c0_125 = arith.constant 0 : index
    %132 = vector.load %arg11[%c1_123, %c0_124, %c0_125] : memref<3x128x128xbf16, #tpu.memory_space<vmem>>, vector<1x128x128xbf16>
    %133 = vector.shape_cast %132 : vector<1x128x128xbf16> to vector<128x128xbf16>
    %cst_126 = arith.constant dense<0.000000e+00> : vector<2x128xf32>
    %134 = tpu.matmul %127, %133, %cst_126 {dimension_numbers = #tpu.dot_dimension_numbers<[1], [0], [0], [1], [0, 0, 1, 1], [], []>} : vector<2x128xbf16>, vector<128x128xbf16>, vector<2x128xf32> -> vector<2x128xf32>
    %135 = arith.addf %131, %134 : vector<2x128xf32>
    %c2_127 = arith.constant 2 : index
    %c0_128 = arith.constant 0 : index
    %c0_129 = arith.constant 0 : index
    %136 = vector.load %arg11[%c2_127, %c0_128, %c0_129] : memref<3x128x128xbf16, #tpu.memory_space<vmem>>, vector<1x128x128xbf16>
    %137 = vector.shape_cast %136 : vector<1x128x128xbf16> to vector<128x128xbf16>
    %cst_130 = arith.constant dense<0.000000e+00> : vector<2x128xf32>
    %138 = tpu.matmul %128, %137, %cst_130 {dimension_numbers = #tpu.dot_dimension_numbers<[1], [0], [0], [1], [0, 0, 1, 1], [], []>} : vector<2x128xbf16>, vector<128x128xbf16>, vector<2x128xf32> -> vector<2x128xf32>
    %139 = arith.addf %135, %138 : vector<2x128xf32>
    %c0_131 = arith.constant 0 : index
    %c0_132 = arith.constant 0 : index
    %140 = vector.load %arg12[%c0_131, %c0_132] : memref<1x128xf32, #tpu.memory_space<vmem>>, vector<1x128xf32>
    %141 = vector.broadcast %140 : vector<1x128xf32> to vector<2x128xf32>
    %142 = arith.addf %139, %141 : vector<2x128xf32>
    %c0_133 = arith.constant 0 : index
    %c0_134 = arith.constant 0 : index
    %143 = vector.load %arg13[%c0_133, %c0_134] : memref<128x2xf32, #tpu.memory_space<vmem>>, vector<128x2xf32>
    %cst_135 = arith.constant dense<0.000000e+00> : vector<2x2xf32>
    %144 = tpu.matmul %142, %143, %cst_135 {dimension_numbers = #tpu.dot_dimension_numbers<[1], [0], [0], [1], [0, 0, 1, 1], [], []>} : vector<2x128xf32>, vector<128x2xf32>, vector<2x2xf32> -> vector<2x2xf32>
    %c0_136 = arith.constant 0 : index
    %c0_137 = arith.constant 0 : index
    %c0_138 = arith.constant 0 : index
    %145 = vector.load %arg14[%c0_136, %c0_137, %c0_138] : memref<1x2x2xf32, #tpu.memory_space<vmem>>, vector<1x2x2xf32>
    %146 = vector.shape_cast %145 : vector<1x2x2xf32> to vector<2x2xf32>
    %147 = vector.shape_cast %144 : vector<2x2xf32> to vector<1x2x2xf32>
    tpu.vector_store %arg14[%c0_136, %c0_137, %c0_138], %147 {strides = array<i32>} : memref<1x2x2xf32, #tpu.memory_space<vmem>>, vector<1x2x2xf32>,
    return
  }
  func.func @transform_0(%arg0: i32) -> (i32, i32, i32) {
    %c0_i32 = arith.constant 0 : i32
    %c0_i32_0 = arith.constant 0 : i32
    %c0_i32_1 = arith.constant 0 : i32
    return %arg0, %c0_i32, %c0_i32_0 : i32, i32, i32
  }
  func.func @transform_1(%arg0: i32) -> (i32, i32, i32) {
    %c0_i32 = arith.constant 0 : i32
    %c0_i32_0 = arith.constant 0 : i32
    %c0_i32_1 = arith.constant 0 : i32
    %c0_i32_2 = arith.constant 0 : i32
    return %c0_i32, %c0_i32_0, %c0_i32_1 : i32, i32, i32
  }
  func.func @transform_2(%arg0: i32) -> (i32, i32, i32) {
    %c0_i32 = arith.constant 0 : i32
    %c0_i32_0 = arith.constant 0 : i32
    %c0_i32_1 = arith.constant 0 : i32
    %c0_i32_2 = arith.constant 0 : i32
    return %c0_i32, %c0_i32_0, %c0_i32_1 : i32, i32, i32
  }
  func.func @transform_3(%arg0: i32) -> (i32, i32) {
    %c0_i32 = arith.constant 0 : i32
    %c0_i32_0 = arith.constant 0 : i32
    %c0_i32_1 = arith.constant 0 : i32
    return %c0_i32, %c0_i32_0 : i32, i32
  }
  func.func @transform_4(%arg0: i32) -> (i32, i32, i32) {
    %c0_i32 = arith.constant 0 : i32
    %c0_i32_0 = arith.constant 0 : i32
    %c0_i32_1 = arith.constant 0 : i32
    %c0_i32_2 = arith.constant 0 : i32
    return %c0_i32, %c0_i32_0, %c0_i32_1 : i32, i32, i32
  }
  func.func @transform_5(%arg0: i32) -> (i32, i32, i32) {
    %c0_i32 = arith.constant 0 : i32
    %c0_i32_0 = arith.constant 0 : i32
    %c0_i32_1 = arith.constant 0 : i32
    %c0_i32_2 = arith.constant 0 : i32
    return %c0_i32, %c0_i32_0, %c0_i32_1 : i32, i32, i32
  }
  func.func @transform_6(%arg0: i32) -> (i32, i32, i32) {
    %c0_i32 = arith.constant 0 : i32
    %c0_i32_0 = arith.constant 0 : i32
    %c0_i32_1 = arith.constant 0 : i32
    %c0_i32_2 = arith.constant 0 : i32
    return %c0_i32, %c0_i32_0, %c0_i32_1 : i32, i32, i32
  }
  func.func @transform_7(%arg0: i32) -> (i32, i32) {
    %c0_i32 = arith.constant 0 : i32
    %c0_i32_0 = arith.constant 0 : i32
    %c0_i32_1 = arith.constant 0 : i32
    return %c0_i32, %c0_i32_0 : i32, i32
  }
  func.func @transform_8(%arg0: i32) -> (i32, i32, i32) {
    %c0_i32 = arith.constant 0 : i32
    %c0_i32_0 = arith.constant 0 : i32
    %c0_i32_1 = arith.constant 0 : i32
    %c0_i32_2 = arith.constant 0 : i32
    return %c0_i32, %c0_i32_0, %c0_i32_1 : i32, i32, i32
  }
  func.func @transform_9(%arg0: i32) -> (i32, i32, i32) {
    %c0_i32 = arith.constant 0 : i32
    %c0_i32_0 = arith.constant 0 : i32
    %c0_i32_1 = arith.constant 0 : i32
    %c0_i32_2 = arith.constant 0 : i32
    return %c0_i32, %c0_i32_0, %c0_i32_1 : i32, i32, i32
  }
  func.func @transform_10(%arg0: i32) -> (i32, i32, i32) {
    %c0_i32 = arith.constant 0 : i32
    %c0_i32_0 = arith.constant 0 : i32
    %c0_i32_1 = arith.constant 0 : i32
    %c0_i32_2 = arith.constant 0 : i32
    return %c0_i32, %c0_i32_0, %c0_i32_1 : i32, i32, i32
  }
  func.func @transform_11(%arg0: i32) -> (i32, i32) {
    %c0_i32 = arith.constant 0 : i32
    %c0_i32_0 = arith.constant 0 : i32
    %c0_i32_1 = arith.constant 0 : i32
    return %c0_i32, %c0_i32_0 : i32, i32
  }
  func.func @transform_12(%arg0: i32) -> (i32, i32) {
    %c0_i32 = arith.constant 0 : i32
    %c0_i32_0 = arith.constant 0 : i32
    %c0_i32_1 = arith.constant 0 : i32
    return %c0_i32, %c0_i32_0 : i32, i32
  }
  func.func @transform_13(%arg0: i32) -> (i32, i32, i32) {
    %c0_i32 = arith.constant 0 : i32
    %c0_i32_0 = arith.constant 0 : i32
    %c0_i32_1 = arith.constant 0 : i32
    return %arg0, %c0_i32, %c0_i32_0 : i32, i32, i32
  }
}

</mosaic_0001>

<llo_original>
// kernel: encoder_forward.1
$region0: #{encoder_forward.1}
  #allocation0 [shape = 'u32[]', space=smem, size = 0x4, offset = 0x4, fixed_abs, tag = 'smem constant byte address 0x4 - core index']
  #allocation1 [shape = 'u32[72,128]{1,0:T(1,128)}', space=vmem, size = 0x9000, scoped, tag = 'internal scratch']
  %s0 = inlined_call_operand.hbm [shape: f32[2,32,32], index: 0, kind: input, shape index: {}]
  %s1 = inlined_call_operand.hbm [shape: f32[3,32,32], index: 1, kind: input, shape index: {}]
  %s2 = inlined_call_operand.hbm [shape: bf16[9,32,240], index: 2, kind: input, shape index: {}]
  %s3 = inlined_call_operand.hbm [shape: f32[1,240], index: 3, kind: input, shape index: {}]
  %s4 = inlined_call_operand.hbm [shape: f32[3,15,32], index: 4, kind: input, shape index: {}]
  %s5 = inlined_call_operand.hbm [shape: f32[3,8,15], index: 5, kind: input, shape index: {}]
  %s6 = inlined_call_operand.hbm [shape: bf16[6,240,128], index: 6, kind: input, shape index: {}]
  %s7 = inlined_call_operand.hbm [shape: f32[1,128], index: 7, kind: input, shape index: {}]
  %s8 = inlined_call_operand.vmem [shape: f32[2,4,8], index: 8, kind: input, shape index: {}]
  %s9 = inlined_call_operand.hbm [shape: f32[3,2,4], index: 9, kind: input, shape index: {}]
  %s10 = inlined_call_operand.hbm [shape: bf16[3,128,128], index: 10, kind: input, shape index: {}]
  %s11 = inlined_call_operand.vmem [shape: f32[1,128], index: 11, kind: input, shape index: {}]
  %s12 = inlined_call_operand.hbm [shape: f32[128,2], index: 12, kind: input, shape index: {}]
  %s13 = inlined_call_operand.vmem [shape: f32[2,2,2], index: 13, kind: output, shape index: {}]
  %s14 = sld [smem:[#allocation0]]
  $region129: #{encoder_forward.1} parent=0
    _
  %s16 = ssub.s32 1, %s14
  %s17 = scalar_select 0, %s16, %s14
  $region1: #{encoder_forward.1} parent=0
    #allocation2 [shape = 'u8[32768]{0}', space=vmem, size = 0x8000, scoped, tag = 'input window, operand 0']
    #allocation3 [shape = 's32[2]{0}', space=sflag, size = 0x8, scoped, tag = 'scoped memory for encoder_forward.1']
    #allocation4 [shape = 'u8[49152]{0}', space=vmem, size = 0xc000, scoped, tag = 'input window, operand 1, single buffered']
    #allocation5 [shape = 's32[1]{0}', space=sflag, size = 0x4, scoped, tag = 'scoped memory for encoder_forward.1']
    #allocation6 [shape = 'u8[147456]{0}', space=vmem, size = 0x24000, scoped, tag = 'input window, operand 2, single buffered']
    #allocation7 [shape = 'u8[1024]{0}', space=vmem, size = 0x400, scoped, tag = 'input window, operand 3, single buffered']
    #allocation8 [shape = 's32[1]{0}', space=sflag, size = 0x4, scoped, tag = 'scoped memory for encoder_forward.1']
    #allocation9 [shape = 'u8[24576]{0}', space=vmem, size = 0x6000, scoped, tag = 'input window, operand 4, single buffered']
    #allocation10 [shape = 'u8[12288]{0}', space=vmem, size = 0x3000, scoped, tag = 'input window, operand 5, single buffered']
    #allocation11 [shape = 's32[1]{0}', space=sflag, size = 0x4, scoped, tag = 'scoped memory for encoder_forward.1']
    #allocation12 [shape = 'u8[368640]{0}', space=vmem, size = 0x5a000, scoped, tag = 'input window, operand 6, single buffered']
    #allocation13 [shape = 'u8[512]{0}', space=vmem, size = 0x400, scoped, tag = 'input window, operand 7, single buffered']
    #allocation14 [shape = 's32[1]{0}', space=sflag, size = 0x4, scoped, tag = 'scoped memory for encoder_forward.1']
    #allocation15 [shape = 'u8[3072]{0}', space=vmem, size = 0xc00, scoped, tag = 'input window, operand 9, single buffered']
    #allocation16 [shape = 'u8[98304]{0}', space=vmem, size = 0x18000, scoped, tag = 'input window, operand 10, single buffered']
    #allocation17 [shape = 's32[1]{0}', space=sflag, size = 0x4, scoped, tag = 'scoped memory for encoder_forward.1']
    #allocation18 [shape = 'u8[65536]{0}', space=vmem, size = 0x10000, scoped, tag = 'input window, operand 12, single buffered']
    %18 = vsyncpa [#allocation3], 0
    %s19 = scalar_lea.sflag [#allocation3], 1
    %20 = vsyncpa %s19, 0
    %21 = vsyncpa [#allocation5], 0
    %22 = vsyncpa [#allocation8], 0
    %23 = vsyncpa [#allocation11], 0
    %24 = vsyncpa [#allocation14], 0
    %25 = vsyncpa [#allocation17], 0
    loop: start=0, step=1, limit=4
    $region2: #{encoder_forward.1} parent=1 // loop_pre_header
      _
    $region3: #{encoder_forward.1} parent=1 // loop_header
      %s27 = sphi 0, %s31
      %p28 = scmp.ge.s32.totalorder %s27, 4
      %s37 = sphi 0, %s39
      %s40 = sphi 0, %s37
      %s41 = sphi 0, %s40
      %s57 = sphi 0, %s41
      %s61 = sphi 0, %s61
      %s63 = sphi 0, %s61
      %s64 = sphi 0, %s63
      %s78 = sphi 0, %s64
      %s82 = sphi 0, %s82
      %s84 = sphi 0, %s82
      %s85 = sphi 0, %s84
      %s99 = sphi 0, %s85
      %s103 = sphi 0, %s103
      %s105 = sphi 0, %s103
      %s106 = sphi 0, %s105
      %s120 = sphi 0, %s106
      %s124 = sphi 0, %s124
      %s126 = sphi 0, %s124
      %s127 = sphi 0, %s126
      %s141 = sphi 0, %s127
      %s145 = sphi 0, %s145
      %s147 = sphi 0, %s145
      %s148 = sphi 0, %s147
      %s162 = sphi 0, %s148
      %s166 = sphi 0, %s166
      %s168 = sphi 0, %s166
      %s169 = sphi 0, %s168
      %s183 = sphi 0, %s169
      %s187 = sphi 0, %s187
      %s189 = sphi 0, %s187
      %s190 = sphi 0, %s189
      %s204 = sphi 0, %s190
      %s208 = sphi 0, %s208
      %s210 = sphi 0, %s208
      %s211 = sphi 0, %s210
      %s225 = sphi 0, %s211
      %s229 = sphi 0, %s229
      %s231 = sphi 0, %s229
      %s232 = sphi 0, %s231
      %s246 = sphi 0, %s232
      %s250 = sphi 0, %s250
      %s252 = sphi 0, %s250
      %s253 = sphi 0, %s252
      %s267 = sphi 0, %s253
      %s271 = sphi 0, %s271
      %s273 = sphi 0, %s271
      %s274 = sphi 0, %s273
      %s288 = sphi 0, %s274
      %s292 = sphi 0, %s292
      %s294 = sphi 0, %s292
      %s295 = sphi 0, %s294
      %s309 = sphi 0, %s295
      %s315 = sphi 0, %s317
      %s318 = sphi 0, %s315
      %s319 = sphi 0, %s318
      %s335 = sphi 0, %s319
    $region4: #{encoder_forward.1} parent=1 // loop_header_branch
      %30 = sbr.rel (%p28) target = $region8
    $region5: #{encoder_forward.1} parent=1 // loop_body
      %s32 = ssub.s32 %s27, 1
      %s33 = ssub.s32 %s27, 2
      %s34 = sadd.s32 %s27, 1
      %s35 = ssub.s32 %s27, %s34
      %p36 = scmp.eq.s32.totalorder %s35, 0
      %s38 = sadd.s32 %s37, 1
      %s39 = scalar_select %p36, %s37, %s38
      %p42 = pneg %p36
      %p43 = scmp.eq.s32.totalorder %s27, 1
      %p44 = por %p42, %p43
      %p45 = scmp.ne.s32.totalorder %s37, %s40
      %p46 = scmp.eq.s32.totalorder %s27, 0
      %p47 = por %p45, %p46
      %p48 = scmp.ne.s32.totalorder %s37, %s40
      %p49 = scmp.eq.s32.totalorder %s32, 1
      %p50 = por %p48, %p49
      %p51 = scmp.ne.s32.totalorder %s40, %s41
      %p52 = scmp.eq.s32.totalorder %s32, 0
      %p53 = por %p51, %p52
      %p54 = scmp.ne.s32.totalorder %s40, %s41
      %p55 = scmp.eq.s32.totalorder %s33, 1
      %p56 = por %p54, %p55
      %p58 = scmp.ne.s32.totalorder %s41, %s57
      %p59 = scmp.eq.s32.totalorder %s33, 0
      %p60 = por %p58, %p59
      %s62 = sadd.s32 %s61, 1
      %p65 = scmp.eq.s32.totalorder %s27, 1
      %p66 = scmp.ne.s32.totalorder %s61, %s63
      %p67 = scmp.eq.s32.totalorder %s27, 0
      %p68 = por %p66, %p67
      %p69 = scmp.ne.s32.totalorder %s61, %s63
      %p70 = scmp.eq.s32.totalorder %s32, 1
      %p71 = por %p69, %p70
      %p72 = scmp.ne.s32.totalorder %s63, %s64
      %p73 = scmp.eq.s32.totalorder %s32, 0
      %p74 = por %p72, %p73
      %p75 = scmp.ne.s32.totalorder %s63, %s64
      %p76 = scmp.eq.s32.totalorder %s33, 1
      %p77 = por %p75, %p76
      %p79 = scmp.ne.s32.totalorder %s64, %s78
      %p80 = scmp.eq.s32.totalorder %s33, 0
      %p81 = por %p79, %p80
      %s83 = sadd.s32 %s82, 1
      %p86 = scmp.eq.s32.totalorder %s27, 1
      %p87 = scmp.ne.s32.totalorder %s82, %s84
      %p88 = scmp.eq.s32.totalorder %s27, 0
      %p89 = por %p87, %p88
      %p90 = scmp.ne.s32.totalorder %s82, %s84
      %p91 = scmp.eq.s32.totalorder %s32, 1
      %p92 = por %p90, %p91
      %p93 = scmp.ne.s32.totalorder %s84, %s85
      %p94 = scmp.eq.s32.totalorder %s32, 0
      %p95 = por %p93, %p94
      %p96 = scmp.ne.s32.totalorder %s84, %s85
      %p97 = scmp.eq.s32.totalorder %s33, 1
      %p98 = por %p96, %p97
      %p100 = scmp.ne.s32.totalorder %s85, %s99
      %p101 = scmp.eq.s32.totalorder %s33, 0
      %p102 = por %p100, %p101
      %s104 = sadd.s32 %s103, 1
      %p107 = scmp.eq.s32.totalorder %s27, 1
      %p108 = scmp.ne.s32.totalorder %s103, %s105
      %p109 = scmp.eq.s32.totalorder %s27, 0
      %p110 = por %p108, %p109
      %p111 = scmp.ne.s32.totalorder %s103, %s105
      %p112 = scmp.eq.s32.totalorder %s32, 1
      %p113 = por %p111, %p112
      %p114 = scmp.ne.s32.totalorder %s105, %s106
      %p115 = scmp.eq.s32.totalorder %s32, 0
      %p116 = por %p114, %p115
      %p117 = scmp.ne.s32.totalorder %s105, %s106
      %p118 = scmp.eq.s32.totalorder %s33, 1
      %p119 = por %p117, %p118
      %p121 = scmp.ne.s32.totalorder %s106, %s120
      %p122 = scmp.eq.s32.totalorder %s33, 0
      %p123 = por %p121, %p122
      %s125 = sadd.s32 %s124, 1
      %p128 = scmp.eq.s32.totalorder %s27, 1
      %p129 = scmp.ne.s32.totalorder %s124, %s126
      %p130 = scmp.eq.s32.totalorder %s27, 0
      %p131 = por %p129, %p130
      %p132 = scmp.ne.s32.totalorder %s124, %s126
      %p133 = scmp.eq.s32.totalorder %s32, 1
      %p134 = por %p132, %p133
      %p135 = scmp.ne.s32.totalorder %s126, %s127
      %p136 = scmp.eq.s32.totalorder %s32, 0
      %p137 = por %p135, %p136
      %p138 = scmp.ne.s32.totalorder %s126, %s127
      %p139 = scmp.eq.s32.totalorder %s33, 1
      %p140 = por %p138, %p139
      %p142 = scmp.ne.s32.totalorder %s127, %s141
      %p143 = scmp.eq.s32.totalorder %s33, 0
      %p144 = por %p142, %p143
      %s146 = sadd.s32 %s145, 1
      %p149 = scmp.eq.s32.totalorder %s27, 1
      %p150 = scmp.ne.s32.totalorder %s145, %s147
      %p151 = scmp.eq.s32.totalorder %s27, 0
      %p152 = por %p150, %p151
      %p153 = scmp.ne.s32.totalorder %s145, %s147
      %p154 = scmp.eq.s32.totalorder %s32, 1
      %p155 = por %p153, %p154
      %p156 = scmp.ne.s32.totalorder %s147, %s148
      %p157 = scmp.eq.s32.totalorder %s32, 0
      %p158 = por %p156, %p157
      %p159 = scmp.ne.s32.totalorder %s147, %s148
      %p160 = scmp.eq.s32.totalorder %s33, 1
      %p161 = por %p159, %p160
      %p163 = scmp.ne.s32.totalorder %s148, %s162
      %p164 = scmp.eq.s32.totalorder %s33, 0
      %p165 = por %p163, %p164
      %s167 = sadd.s32 %s166, 1
      %p170 = scmp.eq.s32.totalorder %s27, 1
      %p171 = scmp.ne.s32.totalorder %s166, %s168
      %p172 = scmp.eq.s32.totalorder %s27, 0
      %p173 = por %p171, %p172
      %p174 = scmp.ne.s32.totalorder %s166, %s168
      %p175 = scmp.eq.s32.totalorder %s32, 1
      %p176 = por %p174, %p175
      %p177 = scmp.ne.s32.totalorder %s168, %s169
      %p178 = scmp.eq.s32.totalorder %s32, 0
      %p179 = por %p177, %p178
      %p180 = scmp.ne.s32.totalorder %s168, %s169
      %p181 = scmp.eq.s32.totalorder %s33, 1
      %p182 = por %p180, %p181
      %p184 = scmp.ne.s32.totalorder %s169, %s183
      %p185 = scmp.eq.s32.totalorder %s33, 0
      %p186 = por %p184, %p185
      %s188 = sadd.s32 %s187, 1
      %p191 = scmp.eq.s32.totalorder %s27, 1
      %p192 = scmp.ne.s32.totalorder %s187, %s189
      %p193 = scmp.eq.s32.totalorder %s27, 0
      %p194 = por %p192, %p193
      %p195 = scmp.ne.s32.totalorder %s187, %s189
      %p196 = scmp.eq.s32.totalorder %s32, 1
      %p197 = por %p195, %p196
      %p198 = scmp.ne.s32.totalorder %s189, %s190
      %p199 = scmp.eq.s32.totalorder %s32, 0
      %p200 = por %p198, %p199
      %p201 = scmp.ne.s32.totalorder %s189, %s190
      %p202 = scmp.eq.s32.totalorder %s33, 1
      %p203 = por %p201, %p202
      %p205 = scmp.ne.s32.totalorder %s190, %s204
      %p206 = scmp.eq.s32.totalorder %s33, 0
      %p207 = por %p205, %p206
      %s209 = sadd.s32 %s208, 1
      %p212 = scmp.eq.s32.totalorder %s27, 1
      %p213 = scmp.ne.s32.totalorder %s208, %s210
      %p214 = scmp.eq.s32.totalorder %s27, 0
      %p215 = por %p213, %p214
      %p216 = scmp.ne.s32.totalorder %s208, %s210
      %p217 = scmp.eq.s32.totalorder %s32, 1
      %p218 = por %p216, %p217
      %p219 = scmp.ne.s32.totalorder %s210, %s211
      %p220 = scmp.eq.s32.totalorder %s32, 0
      %p221 = por %p219, %p220
      %p222 = scmp.ne.s32.totalorder %s210, %s211
      %p223 = scmp.eq.s32.totalorder %s33, 1
      %p224 = por %p222, %p223
      %p226 = scmp.ne.s32.totalorder %s211, %s225
      %p227 = scmp.eq.s32.totalorder %s33, 0
      %p228 = por %p226, %p227
      %s230 = sadd.s32 %s229, 1
      %p233 = scmp.eq.s32.totalorder %s27, 1
      %p234 = scmp.ne.s32.totalorder %s229, %s231
      %p235 = scmp.eq.s32.totalorder %s27, 0
      %p236 = por %p234, %p235
      %p237 = scmp.ne.s32.totalorder %s229, %s231
      %p238 = scmp.eq.s32.totalorder %s32, 1
      %p239 = por %p237, %p238
      %p240 = scmp.ne.s32.totalorder %s231, %s232
      %p241 = scmp.eq.s32.totalorder %s32, 0
      %p242 = por %p240, %p241
      %p243 = scmp.ne.s32.totalorder %s231, %s232
      %p244 = scmp.eq.s32.totalorder %s33, 1
      %p245 = por %p243, %p244
      %p247 = scmp.ne.s32.totalorder %s232, %s246
      %p248 = scmp.eq.s32.totalorder %s33, 0
      %p249 = por %p247, %p248
      %s251 = sadd.s32 %s250, 1
      %p254 = scmp.eq.s32.totalorder %s27, 1
      %p255 = scmp.ne.s32.totalorder %s250, %s252
      %p256 = scmp.eq.s32.totalorder %s27, 0
      %p257 = por %p255, %p256
      %p258 = scmp.ne.s32.totalorder %s250, %s252
      %p259 = scmp.eq.s32.totalorder %s32, 1
      %p260 = por %p258, %p259
      %p261 = scmp.ne.s32.totalorder %s252, %s253
      %p262 = scmp.eq.s32.totalorder %s32, 0
      %p263 = por %p261, %p262
      %p264 = scmp.ne.s32.totalorder %s252, %s253
      %p265 = scmp.eq.s32.totalorder %s33, 1
      %p266 = por %p264, %p265
      %p268 = scmp.ne.s32.totalorder %s253, %s267
      %p269 = scmp.eq.s32.totalorder %s33, 0
      %p270 = por %p268, %p269
      %s272 = sadd.s32 %s271, 1
      %p275 = scmp.eq.s32.totalorder %s27, 1
      %p276 = scmp.ne.s32.totalorder %s271, %s273
      %p277 = scmp.eq.s32.totalorder %s27, 0
      %p278 = por %p276, %p277
      %p279 = scmp.ne.s32.totalorder %s271, %s273
      %p280 = scmp.eq.s32.totalorder %s32, 1
      %p281 = por %p279, %p280
      %p282 = scmp.ne.s32.totalorder %s273, %s274
      %p283 = scmp.eq.s32.totalorder %s32, 0
      %p284 = por %p282, %p283
      %p285 = scmp.ne.s32.totalorder %s273, %s274
      %p286 = scmp.eq.s32.totalorder %s33, 1
      %p287 = por %p285, %p286
      %p289 = scmp.ne.s32.totalorder %s274, %s288
      %p290 = scmp.eq.s32.totalorder %s33, 0
      %p291 = por %p289, %p290
      %s293 = sadd.s32 %s292, 1
      %p296 = scmp.eq.s32.totalorder %s27, 1
      %p297 = scmp.ne.s32.totalorder %s292, %s294
      %p298 = scmp.eq.s32.totalorder %s27, 0
      %p299 = por %p297, %p298
      %p300 = scmp.ne.s32.totalorder %s292, %s294
      %p301 = scmp.eq.s32.totalorder %s32, 1
      %p302 = por %p300, %p301
      %p303 = scmp.ne.s32.totalorder %s294, %s295
      %p304 = scmp.eq.s32.totalorder %s32, 0
      %p305 = por %p303, %p304
      %p306 = scmp.ne.s32.totalorder %s294, %s295
      %p307 = scmp.eq.s32.totalorder %s33, 1
      %p308 = por %p306, %p307
      %p310 = scmp.ne.s32.totalorder %s295, %s309
      %p311 = scmp.eq.s32.totalorder %s33, 0
      %p312 = por %p310, %p311
      %s313 = ssub.s32 %s27, %s34
      %p314 = scmp.eq.s32.totalorder %s313, 0
      %s316 = sadd.s32 %s315, 1
      %s317 = scalar_select %p314, %s315, %s316
      %p320 = pneg %p314
      %p321 = scmp.eq.s32.totalorder %s27, 1
      %p322 = por %p320, %p321
      %p323 = scmp.ne.s32.totalorder %s315, %s318
      %p324 = scmp.eq.s32.totalorder %s27, 0
      %p325 = por %p323, %p324
      %p326 = scmp.ne.s32.totalorder %s315, %s318
      %p327 = scmp.eq.s32.totalorder %s32, 1
      %p328 = por %p326, %p327
      %p329 = scmp.ne.s32.totalorder %s318, %s319
      %p330 = scmp.eq.s32.totalorder %s32, 0
      %p331 = por %p329, %p330
      %p332 = scmp.ne.s32.totalorder %s318, %s319
      %p333 = scmp.eq.s32.totalorder %s33, 1
      %p334 = por %p332, %p333
      %p336 = scmp.ne.s32.totalorder %s319, %s335
      %p337 = scmp.eq.s32.totalorder %s33, 0
      %p338 = por %p336, %p337
      %p339 = scmp.le.s32.totalorder 1, %s27
      %p340 = scmp.lt.s32.totalorder %s27, 3
      %p341 = pnand %p339, %p340
      %p342 = pneg %p341
      // Predicated region
      $region9: #{encoder_forward.1} parent=5 // pred_check
        _
      $region10: #{encoder_forward.1} parent=5 // pred_check_branch
        %344 = sbr.rel (%p341) target = $region12
      $region11: #{encoder_forward.1} parent=5 // pred_region
        %s345 = ssub.s32 %s27, 1
        // Predicated region
        $region13: #{encoder_forward.1} parent=11 // pred_check
          %p346 = pneg %p74
        $region14: #{encoder_forward.1} parent=11 // pred_check_branch
          %348 = sbr.rel (%p346) target = $region16
        $region15: #{encoder_forward.1} parent=11 // pred_region
          %350 = vsyncadd [#allocation5], 0
          %s351 = sshll.u32 %s1, 4
          %s352 = int_to_ptr.hbm [resolvable:$true] %s351
          %s353 = sshll.u32 [#allocation4], 4
          %s354 = int_to_ptr.vmem [resolvable:$true] %s353
          %359 = dma.hbm_to_vmem [thread:$0]  %s352, 1536, %s354, [#allocation5], 128, 128, 8
        $region16: #{encoder_forward.1} parent=11 // pred_fallthru
          _
        // Predicated region
        $region17: #{encoder_forward.1} parent=11 // pred_check
          %p360 = pneg %p95
        $region18: #{encoder_forward.1} parent=11 // pred_check_branch
          %362 = sbr.rel (%p360) target = $region20
        $region19: #{encoder_forward.1} parent=11 // pred_region
          %364 = vsyncadd [#allocation5], 0
          %s365 = sshll.u32 %s2, 4
          %s366 = int_to_ptr.hbm [resolvable:$true] %s365
          %s367 = sshll.u32 [#allocation6], 4
          %s368 = int_to_ptr.vmem [resolvable:$true] %s367
          %373 = dma.hbm_to_vmem [thread:$0]  %s366, 4608, %s368, [#allocation5], 128, 128, 8
        $region20: #{encoder_forward.1} parent=11 // pred_fallthru
          _
        // Predicated region
        $region21: #{encoder_forward.1} parent=11 // pred_check
          %p374 = pneg %p116
        $region22: #{encoder_forward.1} parent=11 // pred_check_branch
          %376 = sbr.rel (%p374) target = $region24
        $region23: #{encoder_forward.1} parent=11 // pred_region
          %378 = vsyncadd [#allocation8], 0
          %s380 = sshll.u32 %s3, 4
          %s381 = int_to_ptr.hbm [resolvable:$true] %s380
          %s382 = sshll.u32 [#allocation7], 4
          %s383 = int_to_ptr.vmem [resolvable:$true] %s382
          %385 = dma.hbm_to_vmem [thread:$0]  %s381, 32, %s383, [#allocation8]
        $region24: #{encoder_forward.1} parent=11 // pred_fallthru
          _
        // Predicated region
        $region25: #{encoder_forward.1} parent=11 // pred_check
          %p386 = pneg %p137
        $region26: #{encoder_forward.1} parent=11 // pred_check_branch
          %388 = sbr.rel (%p386) target = $region28
        $region27: #{encoder_forward.1} parent=11 // pred_region
          %390 = vsyncadd [#allocation8], 0
          %s391 = sshll.u32 %s4, 4
          %s392 = int_to_ptr.hbm [resolvable:$true] %s391
          %s393 = sshll.u32 [#allocation9], 4
          %s394 = int_to_ptr.vmem [resolvable:$true] %s393
          %399 = dma.hbm_to_vmem [thread:$0]  %s392, 768, %s394, [#allocation8], 128, 128, 8
        $region28: #{encoder_forward.1} parent=11 // pred_fallthru
          _
        // Predicated region
        $region29: #{encoder_forward.1} parent=11 // pred_check
          %p400 = pneg %p158
        $region30: #{encoder_forward.1} parent=11 // pred_check_branch
          %402 = sbr.rel (%p400) target = $region32
        $region31: #{encoder_forward.1} parent=11 // pred_region
          %404 = vsyncadd [#allocation11], 0
          %s405 = sshll.u32 %s5, 4
          %s406 = int_to_ptr.hbm [resolvable:$true] %s405
          %s407 = sshll.u32 [#allocation10], 4
          %s408 = int_to_ptr.vmem [resolvable:$true] %s407
          %413 = dma.hbm_to_vmem [thread:$0]  %s406, 384, %s408, [#allocation11], 128, 128, 8
        $region32: #{encoder_forward.1} parent=11 // pred_fallthru
          _
        // Predicated region
        $region33: #{encoder_forward.1} parent=11 // pred_check
          %p414 = pneg %p179
        $region34: #{encoder_forward.1} parent=11 // pred_check_branch
          %416 = sbr.rel (%p414) target = $region36
        $region35: #{encoder_forward.1} parent=11 // pred_region
          %418 = vsyncadd [#allocation11], 0
          %s419 = sshll.u32 %s6, 4
          %s420 = int_to_ptr.hbm [resolvable:$true] %s419
          %s421 = sshll.u32 [#allocation12], 4
          %s422 = int_to_ptr.vmem [resolvable:$true] %s421
          %427 = dma.hbm_to_vmem [thread:$0]  %s420, 11520, %s422, [#allocation11], 64, 64, 4
        $region36: #{encoder_forward.1} parent=11 // pred_fallthru
          _
        // Predicated region
        $region37: #{encoder_forward.1} parent=11 // pred_check
          %p428 = pneg %p200
        $region38: #{encoder_forward.1} parent=11 // pred_check_branch
          %430 = sbr.rel (%p428) target = $region40
        $region39: #{encoder_forward.1} parent=11 // pred_region
          %432 = vsyncadd [#allocation14], 0
          %s434 = sshll.u32 %s7, 4
          %s435 = int_to_ptr.hbm [resolvable:$true] %s434
          %s436 = sshll.u32 [#allocation13], 4
          %s437 = int_to_ptr.vmem [resolvable:$true] %s436
          %439 = dma.hbm_to_vmem [thread:$0]  %s435, 16, %s437, [#allocation14]
        $region40: #{encoder_forward.1} parent=11 // pred_fallthru
          _
        // Predicated region
        $region41: #{encoder_forward.1} parent=11 // pred_check
          %p440 = pneg %p221
        $region42: #{encoder_forward.1} parent=11 // pred_check_branch
          %442 = sbr.rel (%p440) target = $region44
        $region43: #{encoder_forward.1} parent=11 // pred_region
          _
        $region44: #{encoder_forward.1} parent=11 // pred_fallthru
          _
        // Predicated region
        $region45: #{encoder_forward.1} parent=11 // pred_check
          %p443 = pneg %p242
        $region46: #{encoder_forward.1} parent=11 // pred_check_branch
          %445 = sbr.rel (%p443) target = $region48
        $region47: #{encoder_forward.1} parent=11 // pred_region
          %447 = vsyncadd [#allocation14], 0
          %s448 = sshll.u32 %s9, 4
          %s449 = int_to_ptr.hbm [resolvable:$true] %s448
          %s450 = sshll.u32 [#allocation15], 4
          %s451 = int_to_ptr.vmem [resolvable:$true] %s450
          %456 = dma.hbm_to_vmem [thread:$0]  %s449, 96, %s451, [#allocation14], 32, 32, 2
        $region48: #{encoder_forward.1} parent=11 // pred_fallthru
          _
        // Predicated region
        $region49: #{encoder_forward.1} parent=11 // pred_check
          %p457 = pneg %p263
        $region50: #{encoder_forward.1} parent=11 // pred_check_branch
          %459 = sbr.rel (%p457) target = $region52
        $region51: #{encoder_forward.1} parent=11 // pred_region
          %461 = vsyncadd [#allocation17], 0
          %s462 = sshll.u32 %s10, 4
          %s463 = int_to_ptr.hbm [resolvable:$true] %s462
          %s464 = sshll.u32 [#allocation16], 4
          %s465 = int_to_ptr.vmem [resolvable:$true] %s464
          %470 = dma.hbm_to_vmem [thread:$0]  %s463, 3072, %s465, [#allocation17], 64, 64, 4
        $region52: #{encoder_forward.1} parent=11 // pred_fallthru
          _
        // Predicated region
        $region53: #{encoder_forward.1} parent=11 // pred_check
          %p471 = pneg %p284
        $region54: #{encoder_forward.1} parent=11 // pred_check_branch
          %473 = sbr.rel (%p471) target = $region56
        $region55: #{encoder_forward.1} parent=11 // pred_region
          _
        $region56: #{encoder_forward.1} parent=11 // pred_fallthru
          _
        // Predicated region
        $region57: #{encoder_forward.1} parent=11 // pred_check
          %p474 = pneg %p305
        $region58: #{encoder_forward.1} parent=11 // pred_check_branch
          %476 = sbr.rel (%p474) target = $region60
        $region59: #{encoder_forward.1} parent=11 // pred_region
          %478 = vsyncadd [#allocation17], 0
          %s479 = sshll.u32 %s12, 4
          %s480 = int_to_ptr.hbm [resolvable:$true] %s479
          %s481 = sshll.u32 [#allocation18], 4
          %s482 = int_to_ptr.vmem [resolvable:$true] %s481
          %487 = dma.hbm_to_vmem [thread:$0]  %s480, 2048, %s482, [#allocation17], 128, 128, 8
        $region60: #{encoder_forward.1} parent=11 // pred_fallthru
          _
      $region12: #{encoder_forward.1} parent=5 // pred_fallthru
        _
      %p488 = scmp.lt.s32.totalorder %s27, 2
      // Predicated region
      $region61: #{encoder_forward.1} parent=5 // pred_check
        %p489 = pneg %p488
      $region62: #{encoder_forward.1} parent=5 // pred_check_branch
        %491 = sbr.rel (%p489) target = $region64
      $region63: #{encoder_forward.1} parent=5 // pred_region
        // Predicated region
        $region65: #{encoder_forward.1} parent=63 // pred_check
          %p492 = pneg %p47
        $region66: #{encoder_forward.1} parent=63 // pred_check_branch
          %494 = sbr.rel (%p492) target = $region68
        $region67: #{encoder_forward.1} parent=63 // pred_region
          %s495 = sand.u32 %s37, 1
          %s496 = scalar_lea.sflag [#allocation3], %s495
          %s497 = sand.u32 %s37, 1
          %s498 = smul.addr %s497, 32
          %s499 = scalar_lea.vmem [#allocation2], %s498
          %501 = vsyncadd %s496, 0
          %s502 = smul.addr %s27, 4
          %s503 = smul.addr %s502, 8
          %s504 = scalar_lea.hbm %s0, %s503
          %s505 = sshll.u32 %s504, 4
          %s506 = int_to_ptr.hbm [resolvable:$true] %s505
          %s507 = sshll.u32 %s499, 4
          %s508 = int_to_ptr.vmem [resolvable:$true] %s507
          %513 = dma.hbm_to_vmem [thread:$0]  %s506, 512, %s508, %s496, 128, 128, 8
        $region68: #{encoder_forward.1} parent=63 // pred_fallthru
          _
      $region64: #{encoder_forward.1} parent=5 // pred_fallthru
        _
      %p514 = scmp.le.s32.totalorder 1, %s27
      %p515 = scmp.lt.s32.totalorder %s27, 3
      %p516 = pnand %p514, %p515
      %p517 = pneg %p516
      // Predicated region
      $region69: #{encoder_forward.1} parent=5 // pred_check
        _
      $region70: #{encoder_forward.1} parent=5 // pred_check_branch
        %519 = sbr.rel (%p516) target = $region72
      $region71: #{encoder_forward.1} parent=5 // pred_region
        %s520 = ssub.s32 %s27, 1
        %s521 = sand.u32 %s40, 1
        %s522 = scalar_lea.sflag [#allocation3], %s521
        %s523 = sand.u32 %s40, 1
        %s524 = smul.addr %s523, 32
        %s525 = scalar_lea.vmem [#allocation2], %s524
        // Predicated region
        $region73: #{encoder_forward.1} parent=71 // pred_check
          %p526 = pneg %p53
        $region74: #{encoder_forward.1} parent=71 // pred_check_branch
          %528 = sbr.rel (%p526) target = $region76
        $region75: #{encoder_forward.1} parent=71 // pred_region
          %530 = dma.done %s522, 512
        $region76: #{encoder_forward.1} parent=71 // pred_fallthru
          _
        // Predicated region
        $region77: #{encoder_forward.1} parent=71 // pred_check
          %p531 = pneg %p74
        $region78: #{encoder_forward.1} parent=71 // pred_check_branch
          %533 = sbr.rel (%p531) target = $region80
        $region79: #{encoder_forward.1} parent=71 // pred_region
          %535 = dma.done [#allocation5], 1536
        $region80: #{encoder_forward.1} parent=71 // pred_fallthru
          _
        // Predicated region
        $region81: #{encoder_forward.1} parent=71 // pred_check
          %p536 = pneg %p95
        $region82: #{encoder_forward.1} parent=71 // pred_check_branch
          %538 = sbr.rel (%p536) target = $region84
        $region83: #{encoder_forward.1} parent=71 // pred_region
          %540 = dma.done [#allocation5], 4608
        $region84: #{encoder_forward.1} parent=71 // pred_fallthru
          _
        // Predicated region
        $region85: #{encoder_forward.1} parent=71 // pred_check
          %p541 = pneg %p116
        $region86: #{encoder_forward.1} parent=71 // pred_check_branch
          %543 = sbr.rel (%p541) target = $region88
        $region87: #{encoder_forward.1} parent=71 // pred_region
          %545 = dma.done [#allocation8], 32
        $region88: #{encoder_forward.1} parent=71 // pred_fallthru
          _
        // Predicated region
        $region89: #{encoder_forward.1} parent=71 // pred_check
          %p546 = pneg %p137
        $region90: #{encoder_forward.1} parent=71 // pred_check_branch
          %548 = sbr.rel (%p546) target = $region92
        $region91: #{encoder_forward.1} parent=71 // pred_region
          %550 = dma.done [#allocation8], 768
        $region92: #{encoder_forward.1} parent=71 // pred_fallthru
          _
        // Predicated region
        $region93: #{encoder_forward.1} parent=71 // pred_check
          %p551 = pneg %p158
        $region94: #{encoder_forward.1} parent=71 // pred_check_branch
          %553 = sbr.rel (%p551) target = $region96
        $region95: #{encoder_forward.1} parent=71 // pred_region
          %555 = dma.done [#allocation11], 384
        $region96: #{encoder_forward.1} parent=71 // pred_fallthru
          _
        // Predicated region
        $region97: #{encoder_forward.1} parent=71 // pred_check
          %p556 = pneg %p179
        $region98: #{encoder_forward.1} parent=71 // pred_check_branch
          %558 = sbr.rel (%p556) target = $region100
        $region99: #{encoder_forward.1} parent=71 // pred_region
          %560 = dma.done [#allocation11], 11520
        $region100: #{encoder_forward.1} parent=71 // pred_fallthru
          _
        // Predicated region
        $region101: #{encoder_forward.1} parent=71 // pred_check
          %p561 = pneg %p200
        $region102: #{encoder_forward.1} parent=71 // pred_check_branch
          %563 = sbr.rel (%p561) target = $region104
        $region103: #{encoder_forward.1} parent=71 // pred_region
          %565 = dma.done [#allocation14], 16
        $region104: #{encoder_forward.1} parent=71 // pred_fallthru
          _
        // Predicated region
        $region105: #{encoder_forward.1} parent=71 // pred_check
          %p566 = pneg %p242
        $region106: #{encoder_forward.1} parent=71 // pred_check_branch
          %568 = sbr.rel (%p566) target = $region108
        $region107: #{encoder_forward.1} parent=71 // pred_region
          %570 = dma.done [#allocation14], 96
        $region108: #{encoder_forward.1} parent=71 // pred_fallthru
          _
        // Predicated region
        $region109: #{encoder_forward.1} parent=71 // pred_check
          %p571 = pneg %p263
        $region110: #{encoder_forward.1} parent=71 // pred_check_branch
          %573 = sbr.rel (%p571) target = $region112
        $region111: #{encoder_forward.1} parent=71 // pred_region
          %575 = dma.done [#allocation17], 3072
        $region112: #{encoder_forward.1} parent=71 // pred_fallthru
          _
        // Predicated region
        $region113: #{encoder_forward.1} parent=71 // pred_check
          %p576 = pneg %p305
        $region114: #{encoder_forward.1} parent=71 // pred_check_branch
          %578 = sbr.rel (%p576) target = $region116
        $region115: #{encoder_forward.1} parent=71 // pred_region
          %580 = dma.done [#allocation17], 2048
        $region116: #{encoder_forward.1} parent=71 // pred_fallthru
          _
        %s581 = sand.u32 %s40, 1
        %s582 = scalar_lea.sflag [#allocation3], %s581
        %s583 = sand.u32 %s40, 1
        %s584 = smul.addr %s583, 32
        %s585 = scalar_lea.vmem [#allocation2], %s584
        %p586 = pneg %p53
        %p587 = pneg %p50
        %p588 = pneg %p74
        %p589 = pneg %p71
        %p590 = pneg %p95
        %p591 = pneg %p92
        %p592 = pneg %p116
        %p593 = pneg %p113
        %p594 = pneg %p137
        %p595 = pneg %p134
        %p596 = pneg %p158
        %p597 = pneg %p155
        %p598 = pneg %p179
        %p599 = pneg %p176
        %p600 = pneg %p200
        %p601 = pneg %p197
        %p602 = pneg %p221
        %p603 = pneg %p218
        %p604 = pneg %p242
        %p605 = pneg %p239
        %p606 = pneg %p263
        %p607 = pneg %p260
        %p608 = pneg %p284
        %p609 = pneg %p281
        %p610 = pneg %p305
        %p611 = pneg %p302
        %p612 = pneg %p331
        %p613 = pneg %p328
        %p614 = scmp.lt.s32.totalorder %s32, 1
        %s615 = scalar_select %p614, %s32, 1
        %s616 = smul.addr %s615, 2
        %s617 = scalar_lea.vmem %s13, %s616
        %p618 = scmp.lt.s32.totalorder %s32, 1
        %s619 = scalar_select %p618, %s32, 1
        %s620 = smul.addr %s619, 2
        %s621 = scalar_lea.vmem %s13, %s620
        %v623 = vld [vmem:[%s525] sm:$0xff]
        %v624 = vld [vmem:[%s525 + $0x8] sm:$0xff]
        %v625 = vld [vmem:[%s525 + $0x10] sm:$0xff]
        %v626 = vld [vmem:[%s525 + $0x18] sm:$0xff]
        %v627 = vld [vmem:[#allocation4] sm:$0xff]
        %v628 = vld [vmem:[#allocation4 + $0x8] sm:$0xff]
        %v629 = vld [vmem:[#allocation4 + $0x10] sm:$0xff]
        %v630 = vld [vmem:[#allocation4 + $0x18] sm:$0xff]
        %vm631 = vcmask 261120
        %v633 = vsel %vm631, %v627, 0
        %v636 = vsel %vm631, %v628, 0
        %v639 = vsel %vm631, %v629, 0
        %v642 = vsel %vm631, %v630, 0
        %644 = vmatpush.msra.mxu0 0.0
        %645 = vmatpush.msra.mxu0 0.0
        %646 = vmatpush.msra.mxu0 0.0
        %647 = vmatpush.msra.mxu0 0.0
        %648 = vmatpush.msra.mxu0 0.0
        %649 = vmatpush.msra.mxu0 0.0
        %650 = vmatpush.msra.mxu0 0.0
        %651 = vmatpush.msra.mxu0 0.0
        %652 = vmatpush.msra.mxu0 0.0
        %653 = vmatpush.msra.mxu0 0.0
        %654 = vmatpush.msra.mxu0 0.0
        %655 = vmatpush.msra.mxu0 0.0
        %656 = vmatpush.msra.mxu0 %v626
        %657 = vmatpush.msra.mxu0 %v625
        %658 = vmatpush.msra.mxu0 %v624
        %659 = vmatpush.msra.mxu0 %v623
        %660 = vmatmul.f32.gmra.mxu0 %v633
        %v661 = vpop.f32.mrf.mxu0
        %v662 = vadd.f32 0.0, %v661
        %663 = vmatmul.f32.gmra.mxu0 %v636
        %v664 = vpop.f32.mrf.mxu0
        %v665 = vadd.f32 0.0, %v664
        %666 = vmatmul.f32.gmra.mxu0 %v639
        %v667 = vpop.f32.mrf.mxu0
        %v668 = vadd.f32 0.0, %v667
        %669 = vmatmul.f32.gmra.mxu0 %v642
        %v670 = vpop.f32.mrf.mxu0
        %v671 = vadd.f32 0.0, %v670
        %672 = vdwg.mxu0
        %s673 = scalar_lea.vmem [#allocation4], 32
        %v674 = vld [vmem:[%s673] sm:$0xff]
        %v675 = vld [vmem:[%s673 + $0x8] sm:$0xff]
        %v676 = vld [vmem:[%s673 + $0x10] sm:$0xff]
        %v677 = vld [vmem:[%s673 + $0x18] sm:$0xff]
        %v679 = vsel %vm631, %v674, 0
        %v682 = vsel %vm631, %v675, 0
        %v685 = vsel %vm631, %v676, 0
        %v688 = vsel %vm631, %v677, 0
        %690 = vmatpush.msra.mxu0 0.0
        %691 = vmatpush.msra.mxu0 0.0
        %692 = vmatpush.msra.mxu0 0.0
        %693 = vmatpush.msra.mxu0 0.0
        %694 = vmatpush.msra.mxu0 0.0
        %695 = vmatpush.msra.mxu0 0.0
        %696 = vmatpush.msra.mxu0 0.0
        %697 = vmatpush.msra.mxu0 0.0
        %698 = vmatpush.msra.mxu0 0.0
        %699 = vmatpush.msra.mxu0 0.0
        %700 = vmatpush.msra.mxu0 0.0
        %701 = vmatpush.msra.mxu0 0.0
        %702 = vmatpush.msra.mxu0 %v626
        %703 = vmatpush.msra.mxu0 %v625
        %704 = vmatpush.msra.mxu0 %v624
        %705 = vmatpush.msra.mxu0 %v623
        %706 = vmatmul.f32.gmra.mxu0 %v679
        %v707 = vpop.f32.mrf.mxu0
        %v708 = vadd.f32 0.0, %v707
        %709 = vmatmul.f32.gmra.mxu0 %v682
        %v710 = vpop.f32.mrf.mxu0
        %v711 = vadd.f32 0.0, %v710
        %712 = vmatmul.f32.gmra.mxu0 %v685
        %v713 = vpop.f32.mrf.mxu0
        %v714 = vadd.f32 0.0, %v713
        %715 = vmatmul.f32.gmra.mxu0 %v688
        %v716 = vpop.f32.mrf.mxu0
        %v717 = vadd.f32 0.0, %v716
        %718 = vdwg.mxu0
        %s719 = scalar_lea.vmem [#allocation4], 64
        %v720 = vld [vmem:[%s719] sm:$0xff]
        %v721 = vld [vmem:[%s719 + $0x8] sm:$0xff]
        %v722 = vld [vmem:[%s719 + $0x10] sm:$0xff]
        %v723 = vld [vmem:[%s719 + $0x18] sm:$0xff]
        %v725 = vsel %vm631, %v720, 0
        %v728 = vsel %vm631, %v721, 0
        %v731 = vsel %vm631, %v722, 0
        %v734 = vsel %vm631, %v723, 0
        %736 = vmatpush.msra.mxu0 0.0
        %737 = vmatpush.msra.mxu0 0.0
        %738 = vmatpush.msra.mxu0 0.0
        %739 = vmatpush.msra.mxu0 0.0
        %740 = vmatpush.msra.mxu0 0.0
        %741 = vmatpush.msra.mxu0 0.0
        %742 = vmatpush.msra.mxu0 0.0
        %743 = vmatpush.msra.mxu0 0.0
        %744 = vmatpush.msra.mxu0 0.0
        %745 = vmatpush.msra.mxu0 0.0
        %746 = vmatpush.msra.mxu0 0.0
        %747 = vmatpush.msra.mxu0 0.0
        %748 = vmatpush.msra.mxu0 %v626
        %749 = vmatpush.msra.mxu0 %v625
        %750 = vmatpush.msra.mxu0 %v624
        %751 = vmatpush.msra.mxu0 %v623
        %752 = vmatmul.f32.gmra.mxu0 %v725
        %v753 = vpop.f32.mrf.mxu0
        %v754 = vadd.f32 0.0, %v753
        %755 = vmatmul.f32.gmra.mxu0 %v728
        %v756 = vpop.f32.mrf.mxu0
        %v757 = vadd.f32 0.0, %v756
        %758 = vmatmul.f32.gmra.mxu0 %v731
        %v759 = vpop.f32.mrf.mxu0
        %v760 = vadd.f32 0.0, %v759
        %761 = vmatmul.f32.gmra.mxu0 %v734
        %v762 = vpop.f32.mrf.mxu0
        %v763 = vadd.f32 0.0, %v762
        %764 = vdwg.mxu0
        %v765 = vpack.c.bf16 %v665, %v662
        %v766 = vpack.c.bf16 %v671, %v668
        %v767 = vpack.c.bf16 %v711, %v708
        %v768 = vpack.c.bf16 %v717, %v714
        %v769 = vpack.c.bf16 %v757, %v754
        %v770 = vpack.c.bf16 %v763, %v760
        %v771 = vld [vmem:[#allocation6] sm:$0xff]
        %v772 = vld [vmem:[#allocation6 + $0x8] sm:$0xff]
        %v773 = vld [vmem:[#allocation6 + $0x10] sm:$0xff]
        %v774 = vld [vmem:[#allocation6 + $0x18] sm:$0xff]
        %s775 = scalar_lea.vmem [#allocation6], 32
        %v776 = vld [vmem:[%s775] sm:$0xff]
        %v777 = vld [vmem:[%s775 + $0x8] sm:$0xff]
        %v778 = vld [vmem:[%s775 + $0x10] sm:$0xff]
        %v779 = vld [vmem:[%s775 + $0x18] sm:$0xff]
        %v784 = vunpack.c.l.b16 %v776
        %v785 = vunpack.c.h.b16 %v776
        %v786 = vunpack.c.l.b16 %v777
        %v787 = vunpack.c.h.b16 %v777
        %v788 = vunpack.c.l.b16 %v778
        %v789 = vunpack.c.h.b16 %v778
        %v790 = vunpack.c.l.b16 %v779
        %v791 = vunpack.c.h.b16 %v779
        %v792 = vpack.c.b16 %v786, %v784
        %v793 = vpack.c.b16 %v787, %v785
        %v794 = vpack.c.b16 %v790, %v788
        %v795 = vpack.c.b16 %v791, %v789
        %v801 = vsel %vm631, %v767, 0
        %v804 = vsel %vm631, %v768, 0
        %806 = vmatpush.bf16.msra.mxu0 0
        %807 = vmatpush.bf16.msra.mxu0 0
        %808 = vmatpush.bf16.msra.mxu0 0
        %809 = vmatpush.bf16.msra.mxu0 0
        %810 = vmatpush.bf16.msra.mxu0 0
        %811 = vmatpush.bf16.msra.mxu0 0
        %812 = vmatpush.bf16.msra.mxu0 %v794
        %813 = vmatpush.bf16.msra.mxu0 %v792
        %814 = vmatmul.bf16.gmra.mxu0 %v801
        %v815 = vpop.f32.mrf.mxu0
        %v816 = vadd.f32 0.0, %v815
        %v817 = vpop.f32.mrf.mxu0
        %v818 = vadd.f32 0.0, %v817
        %819 = vmatmul.bf16.gmra.mxu0 %v804
        %v820 = vpop.f32.mrf.mxu0
        %v821 = vadd.f32 0.0, %v820
        %v822 = vpop.f32.mrf.mxu0
        %v823 = vadd.f32 0.0, %v822
        %824 = vdwg.mxu0
        %825 = vmatpush.bf16.msra.mxu0 0
        %826 = vmatpush.bf16.msra.mxu0 0
        %827 = vmatpush.bf16.msra.mxu0 0
        %828 = vmatpush.bf16.msra.mxu0 0
        %829 = vmatpush.bf16.msra.mxu0 0
        %830 = vmatpush.bf16.msra.mxu0 0
        %831 = vmatpush.bf16.msra.mxu0 %v795
        %832 = vmatpush.bf16.msra.mxu0 %v793
        %833 = vmatmul.bf16.gmra.mxu0 %v801
        %v834 = vpop.f32.mrf.mxu0
        %v835 = vadd.f32 0.0, %v834
        %v836 = vpop.f32.mrf.mxu0
        %v837 = vadd.f32 0.0, %v836
        %838 = vmatmul.bf16.gmra.mxu0 %v804
        %v839 = vpop.f32.mrf.mxu0
        %v840 = vadd.f32 0.0, %v839
        %v841 = vpop.f32.mrf.mxu0
        %v842 = vadd.f32 0.0, %v841
        %843 = vdwg.mxu0
        %v848 = vunpack.c.l.b16 %v771
        %v849 = vunpack.c.h.b16 %v771
        %v850 = vunpack.c.l.b16 %v772
        %v851 = vunpack.c.h.b16 %v772
        %v852 = vunpack.c.l.b16 %v773
        %v853 = vunpack.c.h.b16 %v773
        %v854 = vunpack.c.l.b16 %v774
        %v855 = vunpack.c.h.b16 %v774
        %v856 = vpack.c.b16 %v850, %v848
        %v857 = vpack.c.b16 %v851, %v849
        %v858 = vpack.c.b16 %v854, %v852
        %v859 = vpack.c.b16 %v855, %v853
        %v865 = vsel %vm631, %v765, 0
        %v868 = vsel %vm631, %v766, 0
        %870 = vmatpush.bf16.msra.mxu0 0
        %871 = vmatpush.bf16.msra.mxu0 0
        %872 = vmatpush.bf16.msra.mxu0 0
        %873 = vmatpush.bf16.msra.mxu0 0
        %874 = vmatpush.bf16.msra.mxu0 0
        %875 = vmatpush.bf16.msra.mxu0 0
        %876 = vmatpush.bf16.msra.mxu0 %v858
        %877 = vmatpush.bf16.msra.mxu0 %v856
        %878 = vmatmul.bf16.gmra.mxu0 %v865
        %v879 = vpop.f32.mrf.mxu0
        %v880 = vadd.f32 %v816, %v879
        %v881 = vpop.f32.mrf.mxu0
        %v882 = vadd.f32 %v818, %v881
        %883 = vmatmul.bf16.gmra.mxu0 %v868
        %v884 = vpop.f32.mrf.mxu0
        %v885 = vadd.f32 %v821, %v884
        %v886 = vpop.f32.mrf.mxu0
        %v887 = vadd.f32 %v823, %v886
        %888 = vdwg.mxu0
        %889 = vmatpush.bf16.msra.mxu0 0
        %890 = vmatpush.bf16.msra.mxu0 0
        %891 = vmatpush.bf16.msra.mxu0 0
        %892 = vmatpush.bf16.msra.mxu0 0
        %893 = vmatpush.bf16.msra.mxu0 0
        %894 = vmatpush.bf16.msra.mxu0 0
        %895 = vmatpush.bf16.msra.mxu0 %v859
        %896 = vmatpush.bf16.msra.mxu0 %v857
        %897 = vmatmul.bf16.gmra.mxu0 %v865
        %v898 = vpop.f32.mrf.mxu0
        %v899 = vadd.f32 %v835, %v898
        %v900 = vpop.f32.mrf.mxu0
        %v901 = vadd.f32 %v837, %v900
        %902 = vmatmul.bf16.gmra.mxu0 %v868
        %v903 = vpop.f32.mrf.mxu0
        %v904 = vadd.f32 %v840, %v903
        %v905 = vpop.f32.mrf.mxu0
        %v906 = vadd.f32 %v842, %v905
        %907 = vdwg.mxu0
        %s908 = scalar_lea.vmem [#allocation6], 64
        %v909 = vld [vmem:[%s908] sm:$0xff]
        %v910 = vld [vmem:[%s908 + $0x8] sm:$0xff]
        %v911 = vld [vmem:[%s908 + $0x10] sm:$0xff]
        %v912 = vld [vmem:[%s908 + $0x18] sm:$0xff]
        %v917 = vunpack.c.l.b16 %v909
        %v918 = vunpack.c.h.b16 %v909
        %v919 = vunpack.c.l.b16 %v910
        %v920 = vunpack.c.h.b16 %v910
        %v921 = vunpack.c.l.b16 %v911
        %v922 = vunpack.c.h.b16 %v911
        %v923 = vunpack.c.l.b16 %v912
        %v924 = vunpack.c.h.b16 %v912
        %v925 = vpack.c.b16 %v919, %v917
        %v926 = vpack.c.b16 %v920, %v918
        %v927 = vpack.c.b16 %v923, %v921
        %v928 = vpack.c.b16 %v924, %v922
        %v934 = vsel %vm631, %v769, 0
        %v937 = vsel %vm631, %v770, 0
        %939 = vmatpush.bf16.msra.mxu0 0
        %940 = vmatpush.bf16.msra.mxu0 0
        %941 = vmatpush.bf16.msra.mxu0 0
        %942 = vmatpush.bf16.msra.mxu0 0
        %943 = vmatpush.bf16.msra.mxu0 0
        %944 = vmatpush.bf16.msra.mxu0 0
        %945 = vmatpush.bf16.msra.mxu0 %v927
        %946 = vmatpush.bf16.msra.mxu0 %v925
        %947 = vmatmul.bf16.gmra.mxu0 %v934
        %v948 = vpop.f32.mrf.mxu0
        %v949 = vadd.f32 0.0, %v948
        %v950 = vpop.f32.mrf.mxu0
        %v951 = vadd.f32 0.0, %v950
        %952 = vmatmul.bf16.gmra.mxu0 %v937
        %v953 = vpop.f32.mrf.mxu0
        %v954 = vadd.f32 0.0, %v953
        %v955 = vpop.f32.mrf.mxu0
        %v956 = vadd.f32 0.0, %v955
        %957 = vdwg.mxu0
        %958 = vmatpush.bf16.msra.mxu0 0
        %959 = vmatpush.bf16.msra.mxu0 0
        %960 = vmatpush.bf16.msra.mxu0 0
        %961 = vmatpush.bf16.msra.mxu0 0
        %962 = vmatpush.bf16.msra.mxu0 0
        %963 = vmatpush.bf16.msra.mxu0 0
        %964 = vmatpush.bf16.msra.mxu0 %v928
        %965 = vmatpush.bf16.msra.mxu0 %v926
        %966 = vmatmul.bf16.gmra.mxu0 %v934
        %v967 = vpop.f32.mrf.mxu0
        %v968 = vadd.f32 0.0, %v967
        %v969 = vpop.f32.mrf.mxu0
        %v970 = vadd.f32 0.0, %v969
        %971 = vmatmul.bf16.gmra.mxu0 %v937
        %v972 = vpop.f32.mrf.mxu0
        %v973 = vadd.f32 0.0, %v972
        %v974 = vpop.f32.mrf.mxu0
        %v975 = vadd.f32 0.0, %v974
        %976 = vdwg.mxu0
        %v977 = vadd.f32 %v880, %v949
        %v978 = vadd.f32 %v899, %v968
        %v979 = vadd.f32 %v882, %v951
        %v980 = vadd.f32 %v901, %v970
        %v981 = vadd.f32 %v885, %v954
        %v982 = vadd.f32 %v904, %v973
        %v983 = vadd.f32 %v887, %v956
        %v984 = vadd.f32 %v906, %v975
        %v985 = vld [vmem:[#allocation7] sm:$0x3]
        %v987 = vperm.slane %v985, 0
        %v988 = vperm.slane %v985, 1
        %v991 = vadd.f32 %v977, %v987
        %v992 = vadd.f32 %v978, %v988
        %v993 = vadd.f32 %v979, %v987
        %v994 = vadd.f32 %v980, %v988
        %v995 = vadd.f32 %v981, %v987
        %v996 = vadd.f32 %v982, %v988
        %v997 = vadd.f32 %v983, %v987
        %v998 = vadd.f32 %v984, %v988
        %s999 = scalar_lea.vmem [#allocation6], 96
        %v1000 = vld [vmem:[%s999] sm:$0xff]
        %v1001 = vld [vmem:[%s999 + $0x8] sm:$0xff]
        %v1002 = vld [vmem:[%s999 + $0x10] sm:$0xff]
        %v1003 = vld [vmem:[%s999 + $0x18] sm:$0xff]
        %s1004 = scalar_lea.vmem [#allocation6], 128
        %v1005 = vld [vmem:[%s1004] sm:$0xff]
        %v1006 = vld [vmem:[%s1004 + $0x8] sm:$0xff]
        %v1007 = vld [vmem:[%s1004 + $0x10] sm:$0xff]
        %v1008 = vld [vmem:[%s1004 + $0x18] sm:$0xff]
        %v1013 = vunpack.c.l.b16 %v1005
        %v1014 = vunpack.c.h.b16 %v1005
        %v1015 = vunpack.c.l.b16 %v1006
        %v1016 = vunpack.c.h.b16 %v1006
        %v1017 = vunpack.c.l.b16 %v1007
        %v1018 = vunpack.c.h.b16 %v1007
        %v1019 = vunpack.c.l.b16 %v1008
        %v1020 = vunpack.c.h.b16 %v1008
        %v1021 = vpack.c.b16 %v1015, %v1013
        %v1022 = vpack.c.b16 %v1016, %v1014
        %v1023 = vpack.c.b16 %v1019, %v1017
        %v1024 = vpack.c.b16 %v1020, %v1018
        %1029 = vmatpush.bf16.msra.mxu0 0
        %1030 = vmatpush.bf16.msra.mxu0 0
        %1031 = vmatpush.bf16.msra.mxu0 0
        %1032 = vmatpush.bf16.msra.mxu0 0
        %1033 = vmatpush.bf16.msra.mxu0 0
        %1034 = vmatpush.bf16.msra.mxu0 0
        %1035 = vmatpush.bf16.msra.mxu0 %v1023
        %1036 = vmatpush.bf16.msra.mxu0 %v1021
        %1037 = vmatmul.bf16.gmra.mxu0 %v801
        %v1038 = vpop.f32.mrf.mxu0
        %v1039 = vadd.f32 0.0, %v1038
        %v1040 = vpop.f32.mrf.mxu0
        %v1041 = vadd.f32 0.0, %v1040
        %1042 = vmatmul.bf16.gmra.mxu0 %v804
        %v1043 = vpop.f32.mrf.mxu0
        %v1044 = vadd.f32 0.0, %v1043
        %v1045 = vpop.f32.mrf.mxu0
        %v1046 = vadd.f32 0.0, %v1045
        %1047 = vdwg.mxu0
        %1048 = vmatpush.bf16.msra.mxu0 0
        %1049 = vmatpush.bf16.msra.mxu0 0
        %1050 = vmatpush.bf16.msra.mxu0 0
        %1051 = vmatpush.bf16.msra.mxu0 0
        %1052 = vmatpush.bf16.msra.mxu0 0
        %1053 = vmatpush.bf16.msra.mxu0 0
        %1054 = vmatpush.bf16.msra.mxu0 %v1024
        %1055 = vmatpush.bf16.msra.mxu0 %v1022
        %1056 = vmatmul.bf16.gmra.mxu0 %v801
        %v1057 = vpop.f32.mrf.mxu0
        %v1058 = vadd.f32 0.0, %v1057
        %v1059 = vpop.f32.mrf.mxu0
        %v1060 = vadd.f32 0.0, %v1059
        %1061 = vmatmul.bf16.gmra.mxu0 %v804
        %v1062 = vpop.f32.mrf.mxu0
        %v1063 = vadd.f32 0.0, %v1062
        %v1064 = vpop.f32.mrf.mxu0
        %v1065 = vadd.f32 0.0, %v1064
        %1066 = vdwg.mxu0
        %v1071 = vunpack.c.l.b16 %v1000
        %v1072 = vunpack.c.h.b16 %v1000
        %v1073 = vunpack.c.l.b16 %v1001
        %v1074 = vunpack.c.h.b16 %v1001
        %v1075 = vunpack.c.l.b16 %v1002
        %v1076 = vunpack.c.h.b16 %v1002
        %v1077 = vunpack.c.l.b16 %v1003
        %v1078 = vunpack.c.h.b16 %v1003
        %v1079 = vpack.c.b16 %v1073, %v1071
        %v1080 = vpack.c.b16 %v1074, %v1072
        %v1081 = vpack.c.b16 %v1077, %v1075
        %v1082 = vpack.c.b16 %v1078, %v1076
        %1087 = vmatpush.bf16.msra.mxu0 0
        %1088 = vmatpush.bf16.msra.mxu0 0
        %1089 = vmatpush.bf16.msra.mxu0 0
        %1090 = vmatpush.bf16.msra.mxu0 0
        %1091 = vmatpush.bf16.msra.mxu0 0
        %1092 = vmatpush.bf16.msra.mxu0 0
        %1093 = vmatpush.bf16.msra.mxu0 %v1081
        %1094 = vmatpush.bf16.msra.mxu0 %v1079
        %1095 = vmatmul.bf16.gmra.mxu0 %v865
        %v1096 = vpop.f32.mrf.mxu0
        %v1097 = vadd.f32 %v1039, %v1096
        %v1098 = vpop.f32.mrf.mxu0
        %v1099 = vadd.f32 %v1041, %v1098
        %1100 = vmatmul.bf16.gmra.mxu0 %v868
        %v1101 = vpop.f32.mrf.mxu0
        %v1102 = vadd.f32 %v1044, %v1101
        %v1103 = vpop.f32.mrf.mxu0
        %v1104 = vadd.f32 %v1046, %v1103
        %1105 = vdwg.mxu0
        %1106 = vmatpush.bf16.msra.mxu0 0
        %1107 = vmatpush.bf16.msra.mxu0 0
        %1108 = vmatpush.bf16.msra.mxu0 0
        %1109 = vmatpush.bf16.msra.mxu0 0
        %1110 = vmatpush.bf16.msra.mxu0 0
        %1111 = vmatpush.bf16.msra.mxu0 0
        %1112 = vmatpush.bf16.msra.mxu0 %v1082
        %1113 = vmatpush.bf16.msra.mxu0 %v1080
        %1114 = vmatmul.bf16.gmra.mxu0 %v865
        %v1115 = vpop.f32.mrf.mxu0
        %v1116 = vadd.f32 %v1058, %v1115
        %v1117 = vpop.f32.mrf.mxu0
        %v1118 = vadd.f32 %v1060, %v1117
        %1119 = vmatmul.bf16.gmra.mxu0 %v868
        %v1120 = vpop.f32.mrf.mxu0
        %v1121 = vadd.f32 %v1063, %v1120
        %v1122 = vpop.f32.mrf.mxu0
        %v1123 = vadd.f32 %v1065, %v1122
        %1124 = vdwg.mxu0
        %s1125 = scalar_lea.vmem [#allocation6], 160
        %v1126 = vld [vmem:[%s1125] sm:$0xff]
        %v1127 = vld [vmem:[%s1125 + $0x8] sm:$0xff]
        %v1128 = vld [vmem:[%s1125 + $0x10] sm:$0xff]
        %v1129 = vld [vmem:[%s1125 + $0x18] sm:$0xff]
        %v1134 = vunpack.c.l.b16 %v1126
        %v1135 = vunpack.c.h.b16 %v1126
        %v1136 = vunpack.c.l.b16 %v1127
        %v1137 = vunpack.c.h.b16 %v1127
        %v1138 = vunpack.c.l.b16 %v1128
        %v1139 = vunpack.c.h.b16 %v1128
        %v1140 = vunpack.c.l.b16 %v1129
        %v1141 = vunpack.c.h.b16 %v1129
        %v1142 = vpack.c.b16 %v1136, %v1134
        %v1143 = vpack.c.b16 %v1137, %v1135
        %v1144 = vpack.c.b16 %v1140, %v1138
        %v1145 = vpack.c.b16 %v1141, %v1139
        %1150 = vmatpush.bf16.msra.mxu0 0
        %1151 = vmatpush.bf16.msra.mxu0 0
        %1152 = vmatpush.bf16.msra.mxu0 0
        %1153 = vmatpush.bf16.msra.mxu0 0
        %1154 = vmatpush.bf16.msra.mxu0 0
        %1155 = vmatpush.bf16.msra.mxu0 0
        %1156 = vmatpush.bf16.msra.mxu0 %v1144
        %1157 = vmatpush.bf16.msra.mxu0 %v1142
        %1158 = vmatmul.bf16.gmra.mxu0 %v934
        %v1159 = vpop.f32.mrf.mxu0
        %v1160 = vadd.f32 0.0, %v1159
        %v1161 = vpop.f32.mrf.mxu0
        %v1162 = vadd.f32 0.0, %v1161
        %1163 = vmatmul.bf16.gmra.mxu0 %v937
        %v1164 = vpop.f32.mrf.mxu0
        %v1165 = vadd.f32 0.0, %v1164
        %v1166 = vpop.f32.mrf.mxu0
        %v1167 = vadd.f32 0.0, %v1166
        %1168 = vdwg.mxu0
        %1169 = vmatpush.bf16.msra.mxu0 0
        %1170 = vmatpush.bf16.msra.mxu0 0
        %1171 = vmatpush.bf16.msra.mxu0 0
        %1172 = vmatpush.bf16.msra.mxu0 0
        %1173 = vmatpush.bf16.msra.mxu0 0
        %1174 = vmatpush.bf16.msra.mxu0 0
        %1175 = vmatpush.bf16.msra.mxu0 %v1145
        %1176 = vmatpush.bf16.msra.mxu0 %v1143
        %1177 = vmatmul.bf16.gmra.mxu0 %v934
        %v1178 = vpop.f32.mrf.mxu0
        %v1179 = vadd.f32 0.0, %v1178
        %v1180 = vpop.f32.mrf.mxu0
        %v1181 = vadd.f32 0.0, %v1180
        %1182 = vmatmul.bf16.gmra.mxu0 %v937
        %v1183 = vpop.f32.mrf.mxu0
        %v1184 = vadd.f32 0.0, %v1183
        %v1185 = vpop.f32.mrf.mxu0
        %v1186 = vadd.f32 0.0, %v1185
        %1187 = vdwg.mxu0
        %v1188 = vadd.f32 %v1097, %v1160
        %v1189 = vadd.f32 %v1116, %v1179
        %v1190 = vadd.f32 %v1099, %v1162
        %v1191 = vadd.f32 %v1118, %v1181
        %v1192 = vadd.f32 %v1102, %v1165
        %v1193 = vadd.f32 %v1121, %v1184
        %v1194 = vadd.f32 %v1104, %v1167
        %v1195 = vadd.f32 %v1123, %v1186
        %v1196 = vadd.f32 %v1188, %v987
        %v1197 = vadd.f32 %v1189, %v988
        %v1198 = vadd.f32 %v1190, %v987
        %v1199 = vadd.f32 %v1191, %v988
        %v1200 = vadd.f32 %v1192, %v987
        %v1201 = vadd.f32 %v1193, %v988
        %v1202 = vadd.f32 %v1194, %v987
        %v1203 = vadd.f32 %v1195, %v988
        %s1204 = scalar_lea.vmem [#allocation6], 192
        %v1205 = vld [vmem:[%s1204] sm:$0xff]
        %v1206 = vld [vmem:[%s1204 + $0x8] sm:$0xff]
        %v1207 = vld [vmem:[%s1204 + $0x10] sm:$0xff]
        %v1208 = vld [vmem:[%s1204 + $0x18] sm:$0xff]
        %s1209 = scalar_lea.vmem [#allocation6], 224
        %v1210 = vld [vmem:[%s1209] sm:$0xff]
        %v1211 = vld [vmem:[%s1209 + $0x8] sm:$0xff]
        %v1212 = vld [vmem:[%s1209 + $0x10] sm:$0xff]
        %v1213 = vld [vmem:[%s1209 + $0x18] sm:$0xff]
        %v1218 = vunpack.c.l.b16 %v1210
        %v1219 = vunpack.c.h.b16 %v1210
        %v1220 = vunpack.c.l.b16 %v1211
        %v1221 = vunpack.c.h.b16 %v1211
        %v1222 = vunpack.c.l.b16 %v1212
        %v1223 = vunpack.c.h.b16 %v1212
        %v1224 = vunpack.c.l.b16 %v1213
        %v1225 = vunpack.c.h.b16 %v1213
        %v1226 = vpack.c.b16 %v1220, %v1218
        %v1227 = vpack.c.b16 %v1221, %v1219
        %v1228 = vpack.c.b16 %v1224, %v1222
        %v1229 = vpack.c.b16 %v1225, %v1223
        %1234 = vmatpush.bf16.msra.mxu0 0
        %1235 = vmatpush.bf16.msra.mxu0 0
        %1236 = vmatpush.bf16.msra.mxu0 0
        %1237 = vmatpush.bf16.msra.mxu0 0
        %1238 = vmatpush.bf16.msra.mxu0 0
        %1239 = vmatpush.bf16.msra.mxu0 0
        %1240 = vmatpush.bf16.msra.mxu0 %v1228
        %1241 = vmatpush.bf16.msra.mxu0 %v1226
        %1242 = vmatmul.bf16.gmra.mxu0 %v801
        %v1243 = vpop.f32.mrf.mxu0
        %v1244 = vadd.f32 0.0, %v1243
        %v1245 = vpop.f32.mrf.mxu0
        %v1246 = vadd.f32 0.0, %v1245
        %1247 = vmatmul.bf16.gmra.mxu0 %v804
        %v1248 = vpop.f32.mrf.mxu0
        %v1249 = vadd.f32 0.0, %v1248
        %v1250 = vpop.f32.mrf.mxu0
        %v1251 = vadd.f32 0.0, %v1250
        %1252 = vdwg.mxu0
        %1253 = vmatpush.bf16.msra.mxu0 0
        %1254 = vmatpush.bf16.msra.mxu0 0
        %1255 = vmatpush.bf16.msra.mxu0 0
        %1256 = vmatpush.bf16.msra.mxu0 0
        %1257 = vmatpush.bf16.msra.mxu0 0
        %1258 = vmatpush.bf16.msra.mxu0 0
        %1259 = vmatpush.bf16.msra.mxu0 %v1229
        %1260 = vmatpush.bf16.msra.mxu0 %v1227
        %1261 = vmatmul.bf16.gmra.mxu0 %v801
        %v1262 = vpop.f32.mrf.mxu0
        %v1263 = vadd.f32 0.0, %v1262
        %v1264 = vpop.f32.mrf.mxu0
        %v1265 = vadd.f32 0.0, %v1264
        %1266 = vmatmul.bf16.gmra.mxu0 %v804
        %v1267 = vpop.f32.mrf.mxu0
        %v1268 = vadd.f32 0.0, %v1267
        %v1269 = vpop.f32.mrf.mxu0
        %v1270 = vadd.f32 0.0, %v1269
        %1271 = vdwg.mxu0
        %v1276 = vunpack.c.l.b16 %v1205
        %v1277 = vunpack.c.h.b16 %v1205
        %v1278 = vunpack.c.l.b16 %v1206
        %v1279 = vunpack.c.h.b16 %v1206
        %v1280 = vunpack.c.l.b16 %v1207
        %v1281 = vunpack.c.h.b16 %v1207
        %v1282 = vunpack.c.l.b16 %v1208
        %v1283 = vunpack.c.h.b16 %v1208
        %v1284 = vpack.c.b16 %v1278, %v1276
        %v1285 = vpack.c.b16 %v1279, %v1277
        %v1286 = vpack.c.b16 %v1282, %v1280
        %v1287 = vpack.c.b16 %v1283, %v1281
        %1292 = vmatpush.bf16.msra.mxu0 0
        %1293 = vmatpush.bf16.msra.mxu0 0
        %1294 = vmatpush.bf16.msra.mxu0 0
        %1295 = vmatpush.bf16.msra.mxu0 0
        %1296 = vmatpush.bf16.msra.mxu0 0
        %1297 = vmatpush.bf16.msra.mxu0 0
        %1298 = vmatpush.bf16.msra.mxu0 %v1286
        %1299 = vmatpush.bf16.msra.mxu0 %v1284
        %1300 = vmatmul.bf16.gmra.mxu0 %v865
        %v1301 = vpop.f32.mrf.mxu0
        %v1302 = vadd.f32 %v1244, %v1301
        %v1303 = vpop.f32.mrf.mxu0
        %v1304 = vadd.f32 %v1246, %v1303
        %1305 = vmatmul.bf16.gmra.mxu0 %v868
        %v1306 = vpop.f32.mrf.mxu0
        %v1307 = vadd.f32 %v1249, %v1306
        %v1308 = vpop.f32.mrf.mxu0
        %v1309 = vadd.f32 %v1251, %v1308
        %1310 = vdwg.mxu0
        %1311 = vmatpush.bf16.msra.mxu0 0
        %1312 = vmatpush.bf16.msra.mxu0 0
        %1313 = vmatpush.bf16.msra.mxu0 0
        %1314 = vmatpush.bf16.msra.mxu0 0
        %1315 = vmatpush.bf16.msra.mxu0 0
        %1316 = vmatpush.bf16.msra.mxu0 0
        %1317 = vmatpush.bf16.msra.mxu0 %v1287
        %1318 = vmatpush.bf16.msra.mxu0 %v1285
        %1319 = vmatmul.bf16.gmra.mxu0 %v865
        %v1320 = vpop.f32.mrf.mxu0
        %v1321 = vadd.f32 %v1263, %v1320
        %v1322 = vpop.f32.mrf.mxu0
        %v1323 = vadd.f32 %v1265, %v1322
        %1324 = vmatmul.bf16.gmra.mxu0 %v868
        %v1325 = vpop.f32.mrf.mxu0
        %v1326 = vadd.f32 %v1268, %v1325
        %v1327 = vpop.f32.mrf.mxu0
        %v1328 = vadd.f32 %v1270, %v1327
        %1329 = vdwg.mxu0
        %s1330 = scalar_lea.vmem [#allocation6], 256
        %v1331 = vld [vmem:[%s1330] sm:$0xff]
        %v1332 = vld [vmem:[%s1330 + $0x8] sm:$0xff]
        %v1333 = vld [vmem:[%s1330 + $0x10] sm:$0xff]
        %v1334 = vld [vmem:[%s1330 + $0x18] sm:$0xff]
        %v1339 = vunpack.c.l.b16 %v1331
        %v1340 = vunpack.c.h.b16 %v1331
        %v1341 = vunpack.c.l.b16 %v1332
        %v1342 = vunpack.c.h.b16 %v1332
        %v1343 = vunpack.c.l.b16 %v1333
        %v1344 = vunpack.c.h.b16 %v1333
        %v1345 = vunpack.c.l.b16 %v1334
        %v1346 = vunpack.c.h.b16 %v1334
        %v1347 = vpack.c.b16 %v1341, %v1339
        %v1348 = vpack.c.b16 %v1342, %v1340
        %v1349 = vpack.c.b16 %v1345, %v1343
        %v1350 = vpack.c.b16 %v1346, %v1344
        %1355 = vmatpush.bf16.msra.mxu0 0
        %1356 = vmatpush.bf16.msra.mxu0 0
        %1357 = vmatpush.bf16.msra.mxu0 0
        %1358 = vmatpush.bf16.msra.mxu0 0
        %1359 = vmatpush.bf16.msra.mxu0 0
        %1360 = vmatpush.bf16.msra.mxu0 0
        %1361 = vmatpush.bf16.msra.mxu0 %v1349
        %1362 = vmatpush.bf16.msra.mxu0 %v1347
        %1363 = vmatmul.bf16.gmra.mxu0 %v934
        %v1364 = vpop.f32.mrf.mxu0
        %v1365 = vadd.f32 0.0, %v1364
        %v1366 = vpop.f32.mrf.mxu0
        %v1367 = vadd.f32 0.0, %v1366
        %1368 = vmatmul.bf16.gmra.mxu0 %v937
        %v1369 = vpop.f32.mrf.mxu0
        %v1370 = vadd.f32 0.0, %v1369
        %v1371 = vpop.f32.mrf.mxu0
        %v1372 = vadd.f32 0.0, %v1371
        %1373 = vdwg.mxu0
        %1374 = vmatpush.bf16.msra.mxu0 0
        %1375 = vmatpush.bf16.msra.mxu0 0
        %1376 = vmatpush.bf16.msra.mxu0 0
        %1377 = vmatpush.bf16.msra.mxu0 0
        %1378 = vmatpush.bf16.msra.mxu0 0
        %1379 = vmatpush.bf16.msra.mxu0 0
        %1380 = vmatpush.bf16.msra.mxu0 %v1350
        %1381 = vmatpush.bf16.msra.mxu0 %v1348
        %1382 = vmatmul.bf16.gmra.mxu0 %v934
        %v1383 = vpop.f32.mrf.mxu0
        %v1384 = vadd.f32 0.0, %v1383
        %v1385 = vpop.f32.mrf.mxu0
        %v1386 = vadd.f32 0.0, %v1385
        %1387 = vmatmul.bf16.gmra.mxu0 %v937
        %v1388 = vpop.f32.mrf.mxu0
        %v1389 = vadd.f32 0.0, %v1388
        %v1390 = vpop.f32.mrf.mxu0
        %v1391 = vadd.f32 0.0, %v1390
        %1392 = vdwg.mxu0
        %v1393 = vadd.f32 %v1302, %v1365
        %v1394 = vadd.f32 %v1321, %v1384
        %v1395 = vadd.f32 %v1304, %v1367
        %v1396 = vadd.f32 %v1323, %v1386
        %v1397 = vadd.f32 %v1307, %v1370
        %v1398 = vadd.f32 %v1326, %v1389
        %v1399 = vadd.f32 %v1309, %v1372
        %v1400 = vadd.f32 %v1328, %v1391
        %v1401 = vadd.f32 %v1393, %v987
        %v1402 = vadd.f32 %v1394, %v988
        %v1403 = vadd.f32 %v1395, %v987
        %v1404 = vadd.f32 %v1396, %v988
        %v1405 = vadd.f32 %v1397, %v987
        %v1406 = vadd.f32 %v1398, %v988
        %v1407 = vadd.f32 %v1399, %v987
        %v1408 = vadd.f32 %v1400, %v988
        %v1409 = vmax.f32 %v991, %v1196
        %v1410 = vmax.f32 %v992, %v1197
        %v1411 = vmax.f32 %v993, %v1198
        %v1412 = vmax.f32 %v994, %v1199
        %v1413 = vmax.f32 %v995, %v1200
        %v1414 = vmax.f32 %v996, %v1201
        %v1415 = vmax.f32 %v997, %v1202
        %v1416 = vmax.f32 %v998, %v1203
        %v1417 = vmax.f32 %v1409, %v1401
        %v1418 = vmax.f32 %v1410, %v1402
        %v1419 = vmax.f32 %v1411, %v1403
        %v1420 = vmax.f32 %v1412, %v1404
        %v1421 = vmax.f32 %v1413, %v1405
        %v1422 = vmax.f32 %v1414, %v1406
        %v1423 = vmax.f32 %v1415, %v1407
        %v1424 = vmax.f32 %v1416, %v1408
        %v1425 = vld [vmem:[#allocation9] sm:$0xff]
        %v1426 = vld [vmem:[#allocation9 + $0x8] sm:$0x7f]
        %v1428 = vsel %vm631, %v1425, 0
        %v1431 = vsel %vm631, %v1426, 0
        %1433 = vmatpush.msra.mxu0 0.0
        %1434 = vmatpush.msra.mxu0 0.0
        %1435 = vmatpush.msra.mxu0 0.0
        %1436 = vmatpush.msra.mxu0 0.0
        %1437 = vmatpush.msra.mxu0 0.0
        %1438 = vmatpush.msra.mxu0 0.0
        %1439 = vmatpush.msra.mxu0 0.0
        %1440 = vmatpush.msra.mxu0 0.0
        %1441 = vmatpush.msra.mxu0 0.0
        %1442 = vmatpush.msra.mxu0 0.0
        %1443 = vmatpush.msra.mxu0 0.0
        %1444 = vmatpush.msra.mxu0 0.0
        %1445 = vmatpush.msra.mxu0 %v1423
        %1446 = vmatpush.msra.mxu0 %v1421
        %1447 = vmatpush.msra.mxu0 %v1419
        %1448 = vmatpush.msra.mxu0 %v1417
        %1449 = vmatmul.f32.gmra.mxu0 %v1428
        %v1450 = vpop.f32.mrf.mxu0
        %v1451 = vadd.f32 0.0, %v1450
        %1452 = vmatmul.f32.gmra.mxu0 %v1431
        %v1453 = vpop.f32.mrf.mxu0
        %v1454 = vadd.f32 0.0, %v1453
        %1455 = vdwg.mxu0
        %1456 = vmatpush.msra.mxu0 0.0
        %1457 = vmatpush.msra.mxu0 0.0
        %1458 = vmatpush.msra.mxu0 0.0
        %1459 = vmatpush.msra.mxu0 0.0
        %1460 = vmatpush.msra.mxu0 0.0
        %1461 = vmatpush.msra.mxu0 0.0
        %1462 = vmatpush.msra.mxu0 0.0
        %1463 = vmatpush.msra.mxu0 0.0
        %1464 = vmatpush.msra.mxu0 0.0
        %1465 = vmatpush.msra.mxu0 0.0
        %1466 = vmatpush.msra.mxu0 0.0
        %1467 = vmatpush.msra.mxu0 0.0
        %1468 = vmatpush.msra.mxu0 %v1424
        %1469 = vmatpush.msra.mxu0 %v1422
        %1470 = vmatpush.msra.mxu0 %v1420
        %1471 = vmatpush.msra.mxu0 %v1418
        %1472 = vmatmul.f32.gmra.mxu0 %v1428
        %v1473 = vpop.f32.mrf.mxu0
        %v1474 = vadd.f32 0.0, %v1473
        %1475 = vmatmul.f32.gmra.mxu0 %v1431
        %v1476 = vpop.f32.mrf.mxu0
        %v1477 = vadd.f32 0.0, %v1476
        %1478 = vdwg.mxu0
        %s1479 = scalar_lea.vmem [#allocation9], 16
        %v1480 = vld [vmem:[%s1479] sm:$0xff]
        %v1481 = vld [vmem:[%s1479 + $0x8] sm:$0x7f]
        %v1483 = vsel %vm631, %v1480, 0
        %v1486 = vsel %vm631, %v1481, 0
        %1488 = vmatpush.msra.mxu0 0.0
        %1489 = vmatpush.msra.mxu0 0.0
        %1490 = vmatpush.msra.mxu0 0.0
        %1491 = vmatpush.msra.mxu0 0.0
        %1492 = vmatpush.msra.mxu0 0.0
        %1493 = vmatpush.msra.mxu0 0.0
        %1494 = vmatpush.msra.mxu0 0.0
        %1495 = vmatpush.msra.mxu0 0.0
        %1496 = vmatpush.msra.mxu0 0.0
        %1497 = vmatpush.msra.mxu0 0.0
        %1498 = vmatpush.msra.mxu0 0.0
        %1499 = vmatpush.msra.mxu0 0.0
        %1500 = vmatpush.msra.mxu0 %v1423
        %1501 = vmatpush.msra.mxu0 %v1421
        %1502 = vmatpush.msra.mxu0 %v1419
        %1503 = vmatpush.msra.mxu0 %v1417
        %1504 = vmatmul.f32.gmra.mxu0 %v1483
        %v1505 = vpop.f32.mrf.mxu0
        %v1506 = vadd.f32 0.0, %v1505
        %1507 = vmatmul.f32.gmra.mxu0 %v1486
        %v1508 = vpop.f32.mrf.mxu0
        %v1509 = vadd.f32 0.0, %v1508
        %1510 = vdwg.mxu0
        %1511 = vmatpush.msra.mxu0 0.0
        %1512 = vmatpush.msra.mxu0 0.0
        %1513 = vmatpush.msra.mxu0 0.0
        %1514 = vmatpush.msra.mxu0 0.0
        %1515 = vmatpush.msra.mxu0 0.0
        %1516 = vmatpush.msra.mxu0 0.0
        %1517 = vmatpush.msra.mxu0 0.0
        %1518 = vmatpush.msra.mxu0 0.0
        %1519 = vmatpush.msra.mxu0 0.0
        %1520 = vmatpush.msra.mxu0 0.0
        %1521 = vmatpush.msra.mxu0 0.0
        %1522 = vmatpush.msra.mxu0 0.0
        %1523 = vmatpush.msra.mxu0 %v1424
        %1524 = vmatpush.msra.mxu0 %v1422
        %1525 = vmatpush.msra.mxu0 %v1420
        %1526 = vmatpush.msra.mxu0 %v1418
        %1527 = vmatmul.f32.gmra.mxu0 %v1483
        %v1528 = vpop.f32.mrf.mxu0
        %v1529 = vadd.f32 0.0, %v1528
        %1530 = vmatmul.f32.gmra.mxu0 %v1486
        %v1531 = vpop.f32.mrf.mxu0
        %v1532 = vadd.f32 0.0, %v1531
        %1533 = vdwg.mxu0
        %v1534 = vmax.f32 %v1451, %v1506
        %v1535 = vmax.f32 %v1474, %v1529
        %v1536 = vmax.f32 %v1454, %v1509
        %v1537 = vmax.f32 %v1477, %v1532
        %s1538 = scalar_lea.vmem [#allocation9], 32
        %v1539 = vld [vmem:[%s1538] sm:$0xff]
        %v1540 = vld [vmem:[%s1538 + $0x8] sm:$0x7f]
        %v1542 = vsel %vm631, %v1539, 0
        %v1545 = vsel %vm631, %v1540, 0
        %1547 = vmatpush.msra.mxu0 0.0
        %1548 = vmatpush.msra.mxu0 0.0
        %1549 = vmatpush.msra.mxu0 0.0
        %1550 = vmatpush.msra.mxu0 0.0
        %1551 = vmatpush.msra.mxu0 0.0
        %1552 = vmatpush.msra.mxu0 0.0
        %1553 = vmatpush.msra.mxu0 0.0
        %1554 = vmatpush.msra.mxu0 0.0
        %1555 = vmatpush.msra.mxu0 0.0
        %1556 = vmatpush.msra.mxu0 0.0
        %1557 = vmatpush.msra.mxu0 0.0
        %1558 = vmatpush.msra.mxu0 0.0
        %1559 = vmatpush.msra.mxu0 %v1423
        %1560 = vmatpush.msra.mxu0 %v1421
        %1561 = vmatpush.msra.mxu0 %v1419
        %1562 = vmatpush.msra.mxu0 %v1417
        %1563 = vmatmul.f32.gmra.mxu0 %v1542
        %v1564 = vpop.f32.mrf.mxu0
        %v1565 = vadd.f32 0.0, %v1564
        %1566 = vmatmul.f32.gmra.mxu0 %v1545
        %v1567 = vpop.f32.mrf.mxu0
        %v1568 = vadd.f32 0.0, %v1567
        %1569 = vdwg.mxu0
        %1570 = vmatpush.msra.mxu0 0.0
        %1571 = vmatpush.msra.mxu0 0.0
        %1572 = vmatpush.msra.mxu0 0.0
        %1573 = vmatpush.msra.mxu0 0.0
        %1574 = vmatpush.msra.mxu0 0.0
        %1575 = vmatpush.msra.mxu0 0.0
        %1576 = vmatpush.msra.mxu0 0.0
        %1577 = vmatpush.msra.mxu0 0.0
        %1578 = vmatpush.msra.mxu0 0.0
        %1579 = vmatpush.msra.mxu0 0.0
        %1580 = vmatpush.msra.mxu0 0.0
        %1581 = vmatpush.msra.mxu0 0.0
        %1582 = vmatpush.msra.mxu0 %v1424
        %1583 = vmatpush.msra.mxu0 %v1422
        %1584 = vmatpush.msra.mxu0 %v1420
        %1585 = vmatpush.msra.mxu0 %v1418
        %1586 = vmatmul.f32.gmra.mxu0 %v1542
        %v1587 = vpop.f32.mrf.mxu0
        %v1588 = vadd.f32 0.0, %v1587
        %1589 = vmatmul.f32.gmra.mxu0 %v1545
        %v1590 = vpop.f32.mrf.mxu0
        %v1591 = vadd.f32 0.0, %v1590
        %1592 = vdwg.mxu0
        %v1593 = vmax.f32 %v1534, %v1565
        %v1594 = vmax.f32 %v1535, %v1588
        %v1595 = vmax.f32 %v1536, %v1568
        %v1596 = vmax.f32 %v1537, %v1591
        %v1597 = vld [vmem:[#allocation10] sm:$0xff]
        %vm1598 = vcmask 121856
        %v1600 = vsel %vm1598, %v1597, 0
        %vm1602 = vcmask 1046528
        %v1604 = vsel %vm1602, %v1595, 0
        %v1607 = vsel %vm1602, %v1596, 0
        %1609 = vmatpush.msra.mxu0 0.0
        %1610 = vmatpush.msra.mxu0 0.0
        %1611 = vmatpush.msra.mxu0 0.0
        %1612 = vmatpush.msra.mxu0 0.0
        %1613 = vmatpush.msra.mxu0 0.0
        %1614 = vmatpush.msra.mxu0 0.0
        %1615 = vmatpush.msra.mxu0 0.0
        %1616 = vmatpush.msra.mxu0 0.0
        %1617 = vmatpush.msra.mxu0 0.0
        %1618 = vmatpush.msra.mxu0 0.0
        %1619 = vmatpush.msra.mxu0 0.0
        %1620 = vmatpush.msra.mxu0 0.0
        %1621 = vmatpush.msra.mxu0 0.0
        %1622 = vmatpush.msra.mxu0 0.0
        %1623 = vmatpush.msra.mxu0 %v1604
        %1624 = vmatpush.msra.mxu0 %v1593
        %1625 = vmatmul.f32.gmra.mxu0 %v1600
        %v1626 = vpop.f32.mrf.mxu0
        %v1627 = vadd.f32 0.0, %v1626
        %1628 = vdwg.mxu0
        %1629 = vmatpush.msra.mxu0 0.0
        %1630 = vmatpush.msra.mxu0 0.0
        %1631 = vmatpush.msra.mxu0 0.0
        %1632 = vmatpush.msra.mxu0 0.0
        %1633 = vmatpush.msra.mxu0 0.0
        %1634 = vmatpush.msra.mxu0 0.0
        %1635 = vmatpush.msra.mxu0 0.0
        %1636 = vmatpush.msra.mxu0 0.0
        %1637 = vmatpush.msra.mxu0 0.0
        %1638 = vmatpush.msra.mxu0 0.0
        %1639 = vmatpush.msra.mxu0 0.0
        %1640 = vmatpush.msra.mxu0 0.0
        %1641 = vmatpush.msra.mxu0 0.0
        %1642 = vmatpush.msra.mxu0 0.0
        %1643 = vmatpush.msra.mxu0 %v1607
        %1644 = vmatpush.msra.mxu0 %v1594
        %1645 = vmatmul.f32.gmra.mxu0 %v1600
        %v1646 = vpop.f32.mrf.mxu0
        %v1647 = vadd.f32 0.0, %v1646
        %1648 = vdwg.mxu0
        %s1649 = scalar_lea.vmem [#allocation10], 8
        %v1650 = vld [vmem:[%s1649] sm:$0xff]
        %v1652 = vsel %vm1598, %v1650, 0
        %1654 = vmatpush.msra.mxu0 0.0
        %1655 = vmatpush.msra.mxu0 0.0
        %1656 = vmatpush.msra.mxu0 0.0
        %1657 = vmatpush.msra.mxu0 0.0
        %1658 = vmatpush.msra.mxu0 0.0
        %1659 = vmatpush.msra.mxu0 0.0
        %1660 = vmatpush.msra.mxu0 0.0
        %1661 = vmatpush.msra.mxu0 0.0
        %1662 = vmatpush.msra.mxu0 0.0
        %1663 = vmatpush.msra.mxu0 0.0
        %1664 = vmatpush.msra.mxu0 0.0
        %1665 = vmatpush.msra.mxu0 0.0
        %1666 = vmatpush.msra.mxu0 0.0
        %1667 = vmatpush.msra.mxu0 0.0
        %1668 = vmatpush.msra.mxu0 %v1604
        %1669 = vmatpush.msra.mxu0 %v1593
        %1670 = vmatmul.f32.gmra.mxu0 %v1652
        %v1671 = vpop.f32.mrf.mxu0
        %v1672 = vadd.f32 0.0, %v1671
        %1673 = vdwg.mxu0
        %1674 = vmatpush.msra.mxu0 0.0
        %1675 = vmatpush.msra.mxu0 0.0
        %1676 = vmatpush.msra.mxu0 0.0
        %1677 = vmatpush.msra.mxu0 0.0
        %1678 = vmatpush.msra.mxu0 0.0
        %1679 = vmatpush.msra.mxu0 0.0
        %1680 = vmatpush.msra.mxu0 0.0
        %1681 = vmatpush.msra.mxu0 0.0
        %1682 = vmatpush.msra.mxu0 0.0
        %1683 = vmatpush.msra.mxu0 0.0
        %1684 = vmatpush.msra.mxu0 0.0
        %1685 = vmatpush.msra.mxu0 0.0
        %1686 = vmatpush.msra.mxu0 0.0
        %1687 = vmatpush.msra.mxu0 0.0
        %1688 = vmatpush.msra.mxu0 %v1607
        %1689 = vmatpush.msra.mxu0 %v1594
        %1690 = vmatmul.f32.gmra.mxu0 %v1652
        %v1691 = vpop.f32.mrf.mxu0
        %v1692 = vadd.f32 0.0, %v1691
        %1693 = vdwg.mxu0
        %s1694 = scalar_lea.vmem [#allocation10], 16
        %v1695 = vld [vmem:[%s1694] sm:$0xff]
        %v1697 = vsel %vm1598, %v1695, 0
        %1699 = vmatpush.msra.mxu0 0.0
        %1700 = vmatpush.msra.mxu0 0.0
        %1701 = vmatpush.msra.mxu0 0.0
        %1702 = vmatpush.msra.mxu0 0.0
        %1703 = vmatpush.msra.mxu0 0.0
        %1704 = vmatpush.msra.mxu0 0.0
        %1705 = vmatpush.msra.mxu0 0.0
        %1706 = vmatpush.msra.mxu0 0.0
        %1707 = vmatpush.msra.mxu0 0.0
        %1708 = vmatpush.msra.mxu0 0.0
        %1709 = vmatpush.msra.mxu0 0.0
        %1710 = vmatpush.msra.mxu0 0.0
        %1711 = vmatpush.msra.mxu0 0.0
        %1712 = vmatpush.msra.mxu0 0.0
        %1713 = vmatpush.msra.mxu0 %v1604
        %1714 = vmatpush.msra.mxu0 %v1593
        %1715 = vmatmul.f32.gmra.mxu0 %v1697
        %v1716 = vpop.f32.mrf.mxu0
        %v1717 = vadd.f32 0.0, %v1716
        %1718 = vdwg.mxu0
        %1719 = vmatpush.msra.mxu0 0.0
        %1720 = vmatpush.msra.mxu0 0.0
        %1721 = vmatpush.msra.mxu0 0.0
        %1722 = vmatpush.msra.mxu0 0.0
        %1723 = vmatpush.msra.mxu0 0.0
        %1724 = vmatpush.msra.mxu0 0.0
        %1725 = vmatpush.msra.mxu0 0.0
        %1726 = vmatpush.msra.mxu0 0.0
        %1727 = vmatpush.msra.mxu0 0.0
        %1728 = vmatpush.msra.mxu0 0.0
        %1729 = vmatpush.msra.mxu0 0.0
        %1730 = vmatpush.msra.mxu0 0.0
        %1731 = vmatpush.msra.mxu0 0.0
        %1732 = vmatpush.msra.mxu0 0.0
        %1733 = vmatpush.msra.mxu0 %v1607
        %1734 = vmatpush.msra.mxu0 %v1594
        %1735 = vmatmul.f32.gmra.mxu0 %v1697
        %v1736 = vpop.f32.mrf.mxu0
        %v1737 = vadd.f32 0.0, %v1736
        %1738 = vdwg.mxu0
        %v1739 = vpack.c.bf16 %v1627, %v1627
        %v1740 = vpack.c.bf16 %v1647, %v1647
        %v1741 = vpack.c.bf16 %v1672, %v1672
        %v1742 = vpack.c.bf16 %v1692, %v1692
        %v1743 = vpack.c.bf16 %v1717, %v1717
        %v1744 = vpack.c.bf16 %v1737, %v1737
        %v1745 = vld [vmem:[#allocation12] sm:$0xf]
        %v1746 = vld [vmem:[#allocation12 + $0x4] sm:$0xf]
        %v1747 = vld [vmem:[#allocation12 + $0x8] sm:$0xf]
        %v1748 = vld [vmem:[#allocation12 + $0xc] sm:$0xf]
        %v1749 = vld [vmem:[#allocation12 + $0x10] sm:$0xf]
        %v1750 = vld [vmem:[#allocation12 + $0x14] sm:$0xf]
        %v1751 = vld [vmem:[#allocation12 + $0x18] sm:$0xf]
        %v1752 = vld [vmem:[#allocation12 + $0x1c] sm:$0xf]
        %v1753 = vld [vmem:[#allocation12 + $0x20] sm:$0xf]
        %v1754 = vld [vmem:[#allocation12 + $0x24] sm:$0xf]
        %v1755 = vld [vmem:[#allocation12 + $0x28] sm:$0xf]
        %v1756 = vld [vmem:[#allocation12 + $0x2c] sm:$0xf]
        %v1757 = vld [vmem:[#allocation12 + $0x30] sm:$0xf]
        %v1758 = vld [vmem:[#allocation12 + $0x34] sm:$0xf]
        %v1759 = vld [vmem:[#allocation12 + $0x38] sm:$0xf]
        %v1760 = vld [vmem:[#allocation12 + $0x3c] sm:$0xf]
        %v1761 = vld [vmem:[#allocation12 + $0x40] sm:$0xf]
        %v1762 = vld [vmem:[#allocation12 + $0x44] sm:$0xf]
        %v1763 = vld [vmem:[#allocation12 + $0x48] sm:$0xf]
        %v1764 = vld [vmem:[#allocation12 + $0x4c] sm:$0xf]
        %v1765 = vld [vmem:[#allocation12 + $0x50] sm:$0xf]
        %v1766 = vld [vmem:[#allocation12 + $0x54] sm:$0xf]
        %v1767 = vld [vmem:[#allocation12 + $0x58] sm:$0xf]
        %v1768 = vld [vmem:[#allocation12 + $0x5c] sm:$0xf]
        %v1769 = vld [vmem:[#allocation12 + $0x60] sm:$0xf]
        %v1770 = vld [vmem:[#allocation12 + $0x64] sm:$0xf]
        %v1771 = vld [vmem:[#allocation12 + $0x68] sm:$0xf]
        %v1772 = vld [vmem:[#allocation12 + $0x6c] sm:$0xf]
        %v1773 = vld [vmem:[#allocation12 + $0x70] sm:$0xf]
        %v1774 = vld [vmem:[#allocation12 + $0x74] sm:$0xf]
        %s1775 = scalar_lea.vmem [#allocation12], 120
        %v1776 = vld [vmem:[%s1775] sm:$0xf]
        %v1777 = vld [vmem:[%s1775 + $0x4] sm:$0xf]
        %v1778 = vld [vmem:[%s1775 + $0x8] sm:$0xf]
        %v1779 = vld [vmem:[%s1775 + $0xc] sm:$0xf]
        %v1780 = vld [vmem:[%s1775 + $0x10] sm:$0xf]
        %v1781 = vld [vmem:[%s1775 + $0x14] sm:$0xf]
        %v1782 = vld [vmem:[%s1775 + $0x18] sm:$0xf]
        %v1783 = vld [vmem:[%s1775 + $0x1c] sm:$0xf]
        %v1784 = vld [vmem:[%s1775 + $0x20] sm:$0xf]
        %v1785 = vld [vmem:[%s1775 + $0x24] sm:$0xf]
        %v1786 = vld [vmem:[%s1775 + $0x28] sm:$0xf]
        %v1787 = vld [vmem:[%s1775 + $0x2c] sm:$0xf]
        %v1788 = vld [vmem:[%s1775 + $0x30] sm:$0xf]
        %v1789 = vld [vmem:[%s1775 + $0x34] sm:$0xf]
        %v1790 = vld [vmem:[%s1775 + $0x38] sm:$0xf]
        %v1791 = vld [vmem:[%s1775 + $0x3c] sm:$0xf]
        %v1792 = vld [vmem:[%s1775 + $0x40] sm:$0xf]
        %v1793 = vld [vmem:[%s1775 + $0x44] sm:$0xf]
        %v1794 = vld [vmem:[%s1775 + $0x48] sm:$0xf]
        %v1795 = vld [vmem:[%s1775 + $0x4c] sm:$0xf]
        %v1796 = vld [vmem:[%s1775 + $0x50] sm:$0xf]
        %v1797 = vld [vmem:[%s1775 + $0x54] sm:$0xf]
        %v1798 = vld [vmem:[%s1775 + $0x58] sm:$0xf]
        %v1799 = vld [vmem:[%s1775 + $0x5c] sm:$0xf]
        %v1800 = vld [vmem:[%s1775 + $0x60] sm:$0xf]
        %v1801 = vld [vmem:[%s1775 + $0x64] sm:$0xf]
        %v1802 = vld [vmem:[%s1775 + $0x68] sm:$0xf]
        %v1803 = vld [vmem:[%s1775 + $0x6c] sm:$0xf]
        %v1804 = vld [vmem:[%s1775 + $0x70] sm:$0xf]
        %v1805 = vld [vmem:[%s1775 + $0x74] sm:$0xf]
        %v1836 = vunpack.c.l.b16 %v1776
        %v1837 = vunpack.c.l.b16 %v1777
        %v1838 = vunpack.c.l.b16 %v1778
        %v1839 = vunpack.c.l.b16 %v1779
        %v1840 = vunpack.c.l.b16 %v1780
        %v1841 = vunpack.c.l.b16 %v1781
        %v1842 = vunpack.c.l.b16 %v1782
        %v1843 = vunpack.c.l.b16 %v1783
        %v1844 = vunpack.c.l.b16 %v1784
        %v1845 = vunpack.c.l.b16 %v1785
        %v1846 = vunpack.c.l.b16 %v1786
        %v1847 = vunpack.c.l.b16 %v1787
        %v1848 = vunpack.c.l.b16 %v1788
        %v1849 = vunpack.c.l.b16 %v1789
        %v1850 = vunpack.c.l.b16 %v1790
        %v1851 = vunpack.c.l.b16 %v1791
        %v1852 = vunpack.c.l.b16 %v1792
        %v1853 = vunpack.c.l.b16 %v1793
        %v1854 = vunpack.c.l.b16 %v1794
        %v1855 = vunpack.c.l.b16 %v1795
        %v1856 = vunpack.c.l.b16 %v1796
        %v1857 = vunpack.c.l.b16 %v1797
        %v1858 = vunpack.c.l.b16 %v1798
        %v1859 = vunpack.c.l.b16 %v1799
        %v1860 = vunpack.c.l.b16 %v1800
        %v1861 = vunpack.c.l.b16 %v1801
        %v1862 = vunpack.c.l.b16 %v1802
        %v1863 = vunpack.c.l.b16 %v1803
        %v1864 = vunpack.c.l.b16 %v1804
        %v1865 = vunpack.c.l.b16 %v1805
        %v1866 = vpack.c.b16 %v1837, %v1836
        %v1867 = vpack.c.b16 %v1839, %v1838
        %v1868 = vpack.c.b16 %v1841, %v1840
        %v1869 = vpack.c.b16 %v1843, %v1842
        %v1870 = vpack.c.b16 %v1845, %v1844
        %v1871 = vpack.c.b16 %v1847, %v1846
        %v1872 = vpack.c.b16 %v1849, %v1848
        %v1873 = vpack.c.b16 %v1851, %v1850
        %v1874 = vpack.c.b16 %v1853, %v1852
        %v1875 = vpack.c.b16 %v1855, %v1854
        %v1876 = vpack.c.b16 %v1857, %v1856
        %v1877 = vpack.c.b16 %v1859, %v1858
        %v1878 = vpack.c.b16 %v1861, %v1860
        %v1879 = vpack.c.b16 %v1863, %v1862
        %v1880 = vpack.c.b16 %v1865, %v1864
        %vm1896 = vcmask 916480
        %v1898 = vsel %vm1896, %v1742, 0
        %1900 = vmatpush.bf16.msra.mxu0 %v1873
        %1901 = vmatpush.bf16.msra.mxu0 %v1872
        %1902 = vmatpush.bf16.msra.mxu0 %v1871
        %1903 = vmatpush.bf16.msra.mxu0 %v1870
        %1904 = vmatpush.bf16.msra.mxu0 %v1869
        %1905 = vmatpush.bf16.msra.mxu0 %v1868
        %1906 = vmatpush.bf16.msra.mxu0 %v1867
        %1907 = vmatpush.bf16.msra.mxu0 %v1866
        %1908 = vmatmul.bf16.gmra.mxu0 %v1741
        %v1909 = vpop.f32.mrf.mxu0
        %v1910 = vadd.f32 0.0, %v1909
        %v1911 = vpop.f32.mrf.mxu0
        %1912 = vdwg.mxu0
        %1913 = vmatpush.bf16.msra.mxu0 0
        %1914 = vmatpush.bf16.msra.mxu0 %v1880
        %1915 = vmatpush.bf16.msra.mxu0 %v1879
        %1916 = vmatpush.bf16.msra.mxu0 %v1878
        %1917 = vmatpush.bf16.msra.mxu0 %v1877
        %1918 = vmatpush.bf16.msra.mxu0 %v1876
        %1919 = vmatpush.bf16.msra.mxu0 %v1875
        %1920 = vmatpush.bf16.msra.mxu0 %v1874
        %1921 = vmatmul.bf16.gmra.mxu0 %v1898
        %v1922 = vpop.f32.mrf.mxu0
        %v1923 = vadd.f32 %v1910, %v1922
        %v1924 = vpop.f32.mrf.mxu0
        %1925 = vdwg.mxu0
        %v1956 = vunpack.c.l.b16 %v1745
        %v1957 = vunpack.c.l.b16 %v1746
        %v1958 = vunpack.c.l.b16 %v1747
        %v1959 = vunpack.c.l.b16 %v1748
        %v1960 = vunpack.c.l.b16 %v1749
        %v1961 = vunpack.c.l.b16 %v1750
        %v1962 = vunpack.c.l.b16 %v1751
        %v1963 = vunpack.c.l.b16 %v1752
        %v1964 = vunpack.c.l.b16 %v1753
        %v1965 = vunpack.c.l.b16 %v1754
        %v1966 = vunpack.c.l.b16 %v1755
        %v1967 = vunpack.c.l.b16 %v1756
        %v1968 = vunpack.c.l.b16 %v1757
        %v1969 = vunpack.c.l.b16 %v1758
        %v1970 = vunpack.c.l.b16 %v1759
        %v1971 = vunpack.c.l.b16 %v1760
        %v1972 = vunpack.c.l.b16 %v1761
        %v1973 = vunpack.c.l.b16 %v1762
        %v1974 = vunpack.c.l.b16 %v1763
        %v1975 = vunpack.c.l.b16 %v1764
        %v1976 = vunpack.c.l.b16 %v1765
        %v1977 = vunpack.c.l.b16 %v1766
        %v1978 = vunpack.c.l.b16 %v1767
        %v1979 = vunpack.c.l.b16 %v1768
        %v1980 = vunpack.c.l.b16 %v1769
        %v1981 = vunpack.c.l.b16 %v1770
        %v1982 = vunpack.c.l.b16 %v1771
        %v1983 = vunpack.c.l.b16 %v1772
        %v1984 = vunpack.c.l.b16 %v1773
        %v1985 = vunpack.c.l.b16 %v1774
        %v1986 = vpack.c.b16 %v1957, %v1956
        %v1987 = vpack.c.b16 %v1959, %v1958
        %v1988 = vpack.c.b16 %v1961, %v1960
        %v1989 = vpack.c.b16 %v1963, %v1962
        %v1990 = vpack.c.b16 %v1965, %v1964
        %v1991 = vpack.c.b16 %v1967, %v1966
        %v1992 = vpack.c.b16 %v1969, %v1968
        %v1993 = vpack.c.b16 %v1971, %v1970
        %v1994 = vpack.c.b16 %v1973, %v1972
        %v1995 = vpack.c.b16 %v1975, %v1974
        %v1996 = vpack.c.b16 %v1977, %v1976
        %v1997 = vpack.c.b16 %v1979, %v1978
        %v1998 = vpack.c.b16 %v1981, %v1980
        %v1999 = vpack.c.b16 %v1983, %v1982
        %v2000 = vpack.c.b16 %v1985, %v1984
        %v2017 = vsel %vm1896, %v1740, 0
        %2019 = vmatpush.bf16.msra.mxu0 %v1993
        %2020 = vmatpush.bf16.msra.mxu0 %v1992
        %2021 = vmatpush.bf16.msra.mxu0 %v1991
        %2022 = vmatpush.bf16.msra.mxu0 %v1990
        %2023 = vmatpush.bf16.msra.mxu0 %v1989
        %2024 = vmatpush.bf16.msra.mxu0 %v1988
        %2025 = vmatpush.bf16.msra.mxu0 %v1987
        %2026 = vmatpush.bf16.msra.mxu0 %v1986
        %2027 = vmatmul.bf16.gmra.mxu0 %v1739
        %v2028 = vpop.f32.mrf.mxu0
        %v2029 = vadd.f32 %v1923, %v2028
        %v2030 = vpop.f32.mrf.mxu0
        %2031 = vdwg.mxu0
        %2032 = vmatpush.bf16.msra.mxu0 0
        %2033 = vmatpush.bf16.msra.mxu0 %v2000
        %2034 = vmatpush.bf16.msra.mxu0 %v1999
        %2035 = vmatpush.bf16.msra.mxu0 %v1998
        %2036 = vmatpush.bf16.msra.mxu0 %v1997
        %2037 = vmatpush.bf16.msra.mxu0 %v1996
        %2038 = vmatpush.bf16.msra.mxu0 %v1995
        %2039 = vmatpush.bf16.msra.mxu0 %v1994
        %2040 = vmatmul.bf16.gmra.mxu0 %v2017
        %v2041 = vpop.f32.mrf.mxu0
        %v2042 = vadd.f32 %v2029, %v2041
        %v2043 = vpop.f32.mrf.mxu0
        %2044 = vdwg.mxu0
        %s2045 = scalar_lea.vmem [#allocation12], 240
        %v2046 = vld [vmem:[%s2045] sm:$0xf]
        %v2047 = vld [vmem:[%s2045 + $0x4] sm:$0xf]
        %v2048 = vld [vmem:[%s2045 + $0x8] sm:$0xf]
        %v2049 = vld [vmem:[%s2045 + $0xc] sm:$0xf]
        %v2050 = vld [vmem:[%s2045 + $0x10] sm:$0xf]
        %v2051 = vld [vmem:[%s2045 + $0x14] sm:$0xf]
        %v2052 = vld [vmem:[%s2045 + $0x18] sm:$0xf]
        %v2053 = vld [vmem:[%s2045 + $0x1c] sm:$0xf]
        %v2054 = vld [vmem:[%s2045 + $0x20] sm:$0xf]
        %v2055 = vld [vmem:[%s2045 + $0x24] sm:$0xf]
        %v2056 = vld [vmem:[%s2045 + $0x28] sm:$0xf]
        %v2057 = vld [vmem:[%s2045 + $0x2c] sm:$0xf]
        %v2058 = vld [vmem:[%s2045 + $0x30] sm:$0xf]
        %v2059 = vld [vmem:[%s2045 + $0x34] sm:$0xf]
        %v2060 = vld [vmem:[%s2045 + $0x38] sm:$0xf]
        %v2061 = vld [vmem:[%s2045 + $0x3c] sm:$0xf]
        %v2062 = vld [vmem:[%s2045 + $0x40] sm:$0xf]
        %v2063 = vld [vmem:[%s2045 + $0x44] sm:$0xf]
        %v2064 = vld [vmem:[%s2045 + $0x48] sm:$0xf]
        %v2065 = vld [vmem:[%s2045 + $0x4c] sm:$0xf]
        %v2066 = vld [vmem:[%s2045 + $0x50] sm:$0xf]
        %v2067 = vld [vmem:[%s2045 + $0x54] sm:$0xf]
        %v2068 = vld [vmem:[%s2045 + $0x58] sm:$0xf]
        %v2069 = vld [vmem:[%s2045 + $0x5c] sm:$0xf]
        %v2070 = vld [vmem:[%s2045 + $0x60] sm:$0xf]
        %v2071 = vld [vmem:[%s2045 + $0x64] sm:$0xf]
        %v2072 = vld [vmem:[%s2045 + $0x68] sm:$0xf]
        %v2073 = vld [vmem:[%s2045 + $0x6c] sm:$0xf]
        %v2074 = vld [vmem:[%s2045 + $0x70] sm:$0xf]
        %v2075 = vld [vmem:[%s2045 + $0x74] sm:$0xf]
        %v2106 = vunpack.c.l.b16 %v2046
        %v2107 = vunpack.c.l.b16 %v2047
        %v2108 = vunpack.c.l.b16 %v2048
        %v2109 = vunpack.c.l.b16 %v2049
        %v2110 = vunpack.c.l.b16 %v2050
        %v2111 = vunpack.c.l.b16 %v2051
        %v2112 = vunpack.c.l.b16 %v2052
        %v2113 = vunpack.c.l.b16 %v2053
        %v2114 = vunpack.c.l.b16 %v2054
        %v2115 = vunpack.c.l.b16 %v2055
        %v2116 = vunpack.c.l.b16 %v2056
        %v2117 = vunpack.c.l.b16 %v2057
        %v2118 = vunpack.c.l.b16 %v2058
        %v2119 = vunpack.c.l.b16 %v2059
        %v2120 = vunpack.c.l.b16 %v2060
        %v2121 = vunpack.c.l.b16 %v2061
        %v2122 = vunpack.c.l.b16 %v2062
        %v2123 = vunpack.c.l.b16 %v2063
        %v2124 = vunpack.c.l.b16 %v2064
        %v2125 = vunpack.c.l.b16 %v2065
        %v2126 = vunpack.c.l.b16 %v2066
        %v2127 = vunpack.c.l.b16 %v2067
        %v2128 = vunpack.c.l.b16 %v2068
        %v2129 = vunpack.c.l.b16 %v2069
        %v2130 = vunpack.c.l.b16 %v2070
        %v2131 = vunpack.c.l.b16 %v2071
        %v2132 = vunpack.c.l.b16 %v2072
        %v2133 = vunpack.c.l.b16 %v2073
        %v2134 = vunpack.c.l.b16 %v2074
        %v2135 = vunpack.c.l.b16 %v2075
        %v2136 = vpack.c.b16 %v2107, %v2106
        %v2137 = vpack.c.b16 %v2109, %v2108
        %v2138 = vpack.c.b16 %v2111, %v2110
        %v2139 = vpack.c.b16 %v2113, %v2112
        %v2140 = vpack.c.b16 %v2115, %v2114
        %v2141 = vpack.c.b16 %v2117, %v2116
        %v2142 = vpack.c.b16 %v2119, %v2118
        %v2143 = vpack.c.b16 %v2121, %v2120
        %v2144 = vpack.c.b16 %v2123, %v2122
        %v2145 = vpack.c.b16 %v2125, %v2124
        %v2146 = vpack.c.b16 %v2127, %v2126
        %v2147 = vpack.c.b16 %v2129, %v2128
        %v2148 = vpack.c.b16 %v2131, %v2130
        %v2149 = vpack.c.b16 %v2133, %v2132
        %v2150 = vpack.c.b16 %v2135, %v2134
        %v2167 = vsel %vm1896, %v1744, 0
        %2169 = vmatpush.bf16.msra.mxu0 %v2143
        %2170 = vmatpush.bf16.msra.mxu0 %v2142
        %2171 = vmatpush.bf16.msra.mxu0 %v2141
        %2172 = vmatpush.bf16.msra.mxu0 %v2140
        %2173 = vmatpush.bf16.msra.mxu0 %v2139
        %2174 = vmatpush.bf16.msra.mxu0 %v2138
        %2175 = vmatpush.bf16.msra.mxu0 %v2137
        %2176 = vmatpush.bf16.msra.mxu0 %v2136
        %2177 = vmatmul.bf16.gmra.mxu0 %v1743
        %v2178 = vpop.f32.mrf.mxu0
        %v2179 = vadd.f32 0.0, %v2178
        %v2180 = vpop.f32.mrf.mxu0
        %2181 = vdwg.mxu0
        %2182 = vmatpush.bf16.msra.mxu0 0
        %2183 = vmatpush.bf16.msra.mxu0 %v2150
        %2184 = vmatpush.bf16.msra.mxu0 %v2149
        %2185 = vmatpush.bf16.msra.mxu0 %v2148
        %2186 = vmatpush.bf16.msra.mxu0 %v2147
        %2187 = vmatpush.bf16.msra.mxu0 %v2146
        %2188 = vmatpush.bf16.msra.mxu0 %v2145
        %2189 = vmatpush.bf16.msra.mxu0 %v2144
        %2190 = vmatmul.bf16.gmra.mxu0 %v2167
        %v2191 = vpop.f32.mrf.mxu0
        %v2192 = vadd.f32 %v2179, %v2191
        %v2193 = vpop.f32.mrf.mxu0
        %2194 = vdwg.mxu0
        %v2195 = vadd.f32 %v2042, %v2192
        %v2196 = vld [vmem:[#allocation13] sm:$0x1]
        %v2198 = vperm.slane %v2196, 0
        %v2200 = vadd.f32 %v2195, %v2198
        %s2201 = scalar_lea.vmem [#allocation12], 360
        %v2202 = vld [vmem:[%s2201] sm:$0xf]
        %v2203 = vld [vmem:[%s2201 + $0x4] sm:$0xf]
        %v2204 = vld [vmem:[%s2201 + $0x8] sm:$0xf]
        %v2205 = vld [vmem:[%s2201 + $0xc] sm:$0xf]
        %v2206 = vld [vmem:[%s2201 + $0x10] sm:$0xf]
        %v2207 = vld [vmem:[%s2201 + $0x14] sm:$0xf]
        %v2208 = vld [vmem:[%s2201 + $0x18] sm:$0xf]
        %v2209 = vld [vmem:[%s2201 + $0x1c] sm:$0xf]
        %v2210 = vld [vmem:[%s2201 + $0x20] sm:$0xf]
        %v2211 = vld [vmem:[%s2201 + $0x24] sm:$0xf]
        %v2212 = vld [vmem:[%s2201 + $0x28] sm:$0xf]
        %v2213 = vld [vmem:[%s2201 + $0x2c] sm:$0xf]
        %v2214 = vld [vmem:[%s2201 + $0x30] sm:$0xf]
        %v2215 = vld [vmem:[%s2201 + $0x34] sm:$0xf]
        %v2216 = vld [vmem:[%s2201 + $0x38] sm:$0xf]
        %v2217 = vld [vmem:[%s2201 + $0x3c] sm:$0xf]
        %v2218 = vld [vmem:[%s2201 + $0x40] sm:$0xf]
        %v2219 = vld [vmem:[%s2201 + $0x44] sm:$0xf]
        %v2220 = vld [vmem:[%s2201 + $0x48] sm:$0xf]
        %v2221 = vld [vmem:[%s2201 + $0x4c] sm:$0xf]
        %v2222 = vld [vmem:[%s2201 + $0x50] sm:$0xf]
        %v2223 = vld [vmem:[%s2201 + $0x54] sm:$0xf]
        %v2224 = vld [vmem:[%s2201 + $0x58] sm:$0xf]
        %v2225 = vld [vmem:[%s2201 + $0x5c] sm:$0xf]
        %v2226 = vld [vmem:[%s2201 + $0x60] sm:$0xf]
        %v2227 = vld [vmem:[%s2201 + $0x64] sm:$0xf]
        %v2228 = vld [vmem:[%s2201 + $0x68] sm:$0xf]
        %v2229 = vld [vmem:[%s2201 + $0x6c] sm:$0xf]
        %v2230 = vld [vmem:[%s2201 + $0x70] sm:$0xf]
        %v2231 = vld [vmem:[%s2201 + $0x74] sm:$0xf]
        %s2232 = scalar_lea.vmem [#allocation12], 480
        %v2233 = vld [vmem:[%s2232] sm:$0xf]
        %v2234 = vld [vmem:[%s2232 + $0x4] sm:$0xf]
        %v2235 = vld [vmem:[%s2232 + $0x8] sm:$0xf]
        %v2236 = vld [vmem:[%s2232 + $0xc] sm:$0xf]
        %v2237 = vld [vmem:[%s2232 + $0x10] sm:$0xf]
        %v2238 = vld [vmem:[%s2232 + $0x14] sm:$0xf]
        %v2239 = vld [vmem:[%s2232 + $0x18] sm:$0xf]
        %v2240 = vld [vmem:[%s2232 + $0x1c] sm:$0xf]
        %v2241 = vld [vmem:[%s2232 + $0x20] sm:$0xf]
        %v2242 = vld [vmem:[%s2232 + $0x24] sm:$0xf]
        %v2243 = vld [vmem:[%s2232 + $0x28] sm:$0xf]
        %v2244 = vld [vmem:[%s2232 + $0x2c] sm:$0xf]
        %v2245 = vld [vmem:[%s2232 + $0x30] sm:$0xf]
        %v2246 = vld [vmem:[%s2232 + $0x34] sm:$0xf]
        %v2247 = vld [vmem:[%s2232 + $0x38] sm:$0xf]
        %v2248 = vld [vmem:[%s2232 + $0x3c] sm:$0xf]
        %v2249 = vld [vmem:[%s2232 + $0x40] sm:$0xf]
        %v2250 = vld [vmem:[%s2232 + $0x44] sm:$0xf]
        %v2251 = vld [vmem:[%s2232 + $0x48] sm:$0xf]
        %v2252 = vld [vmem:[%s2232 + $0x4c] sm:$0xf]
        %v2253 = vld [vmem:[%s2232 + $0x50] sm:$0xf]
        %v2254 = vld [vmem:[%s2232 + $0x54] sm:$0xf]
        %v2255 = vld [vmem:[%s2232 + $0x58] sm:$0xf]
        %v2256 = vld [vmem:[%s2232 + $0x5c] sm:$0xf]
        %v2257 = vld [vmem:[%s2232 + $0x60] sm:$0xf]
        %v2258 = vld [vmem:[%s2232 + $0x64] sm:$0xf]
        %v2259 = vld [vmem:[%s2232 + $0x68] sm:$0xf]
        %v2260 = vld [vmem:[%s2232 + $0x6c] sm:$0xf]
        %v2261 = vld [vmem:[%s2232 + $0x70] sm:$0xf]
        %v2262 = vld [vmem:[%s2232 + $0x74] sm:$0xf]
        %v2293 = vunpack.c.l.b16 %v2233
        %v2294 = vunpack.c.l.b16 %v2234
        %v2295 = vunpack.c.l.b16 %v2235
        %v2296 = vunpack.c.l.b16 %v2236
        %v2297 = vunpack.c.l.b16 %v2237
        %v2298 = vunpack.c.l.b16 %v2238
        %v2299 = vunpack.c.l.b16 %v2239
        %v2300 = vunpack.c.l.b16 %v2240
        %v2301 = vunpack.c.l.b16 %v2241
        %v2302 = vunpack.c.l.b16 %v2242
        %v2303 = vunpack.c.l.b16 %v2243
        %v2304 = vunpack.c.l.b16 %v2244
        %v2305 = vunpack.c.l.b16 %v2245
        %v2306 = vunpack.c.l.b16 %v2246
        %v2307 = vunpack.c.l.b16 %v2247
        %v2308 = vunpack.c.l.b16 %v2248
        %v2309 = vunpack.c.l.b16 %v2249
        %v2310 = vunpack.c.l.b16 %v2250
        %v2311 = vunpack.c.l.b16 %v2251
        %v2312 = vunpack.c.l.b16 %v2252
        %v2313 = vunpack.c.l.b16 %v2253
        %v2314 = vunpack.c.l.b16 %v2254
        %v2315 = vunpack.c.l.b16 %v2255
        %v2316 = vunpack.c.l.b16 %v2256
        %v2317 = vunpack.c.l.b16 %v2257
        %v2318 = vunpack.c.l.b16 %v2258
        %v2319 = vunpack.c.l.b16 %v2259
        %v2320 = vunpack.c.l.b16 %v2260
        %v2321 = vunpack.c.l.b16 %v2261
        %v2322 = vunpack.c.l.b16 %v2262
        %v2323 = vpack.c.b16 %v2294, %v2293
        %v2324 = vpack.c.b16 %v2296, %v2295
        %v2325 = vpack.c.b16 %v2298, %v2297
        %v2326 = vpack.c.b16 %v2300, %v2299
        %v2327 = vpack.c.b16 %v2302, %v2301
        %v2328 = vpack.c.b16 %v2304, %v2303
        %v2329 = vpack.c.b16 %v2306, %v2305
        %v2330 = vpack.c.b16 %v2308, %v2307
        %v2331 = vpack.c.b16 %v2310, %v2309
        %v2332 = vpack.c.b16 %v2312, %v2311
        %v2333 = vpack.c.b16 %v2314, %v2313
        %v2334 = vpack.c.b16 %v2316, %v2315
        %v2335 = vpack.c.b16 %v2318, %v2317
        %v2336 = vpack.c.b16 %v2320, %v2319
        %v2337 = vpack.c.b16 %v2322, %v2321
        %2353 = vmatpush.bf16.msra.mxu0 %v2330
        %2354 = vmatpush.bf16.msra.mxu0 %v2329
        %2355 = vmatpush.bf16.msra.mxu0 %v2328
        %2356 = vmatpush.bf16.msra.mxu0 %v2327
        %2357 = vmatpush.bf16.msra.mxu0 %v2326
        %2358 = vmatpush.bf16.msra.mxu0 %v2325
        %2359 = vmatpush.bf16.msra.mxu0 %v2324
        %2360 = vmatpush.bf16.msra.mxu0 %v2323
        %2361 = vmatmul.bf16.gmra.mxu0 %v1741
        %v2362 = vpop.f32.mrf.mxu0
        %v2363 = vadd.f32 0.0, %v2362
        %v2364 = vpop.f32.mrf.mxu0
        %2365 = vdwg.mxu0
        %2366 = vmatpush.bf16.msra.mxu0 0
        %2367 = vmatpush.bf16.msra.mxu0 %v2337
        %2368 = vmatpush.bf16.msra.mxu0 %v2336
        %2369 = vmatpush.bf16.msra.mxu0 %v2335
        %2370 = vmatpush.bf16.msra.mxu0 %v2334
        %2371 = vmatpush.bf16.msra.mxu0 %v2333
        %2372 = vmatpush.bf16.msra.mxu0 %v2332
        %2373 = vmatpush.bf16.msra.mxu0 %v2331
        %2374 = vmatmul.bf16.gmra.mxu0 %v1898
        %v2375 = vpop.f32.mrf.mxu0
        %v2376 = vadd.f32 %v2363, %v2375
        %v2377 = vpop.f32.mrf.mxu0
        %2378 = vdwg.mxu0
        %v2409 = vunpack.c.l.b16 %v2202
        %v2410 = vunpack.c.l.b16 %v2203
        %v2411 = vunpack.c.l.b16 %v2204
        %v2412 = vunpack.c.l.b16 %v2205
        %v2413 = vunpack.c.l.b16 %v2206
        %v2414 = vunpack.c.l.b16 %v2207
        %v2415 = vunpack.c.l.b16 %v2208
        %v2416 = vunpack.c.l.b16 %v2209
        %v2417 = vunpack.c.l.b16 %v2210
        %v2418 = vunpack.c.l.b16 %v2211
        %v2419 = vunpack.c.l.b16 %v2212
        %v2420 = vunpack.c.l.b16 %v2213
        %v2421 = vunpack.c.l.b16 %v2214
        %v2422 = vunpack.c.l.b16 %v2215
        %v2423 = vunpack.c.l.b16 %v2216
        %v2424 = vunpack.c.l.b16 %v2217
        %v2425 = vunpack.c.l.b16 %v2218
        %v2426 = vunpack.c.l.b16 %v2219
        %v2427 = vunpack.c.l.b16 %v2220
        %v2428 = vunpack.c.l.b16 %v2221
        %v2429 = vunpack.c.l.b16 %v2222
        %v2430 = vunpack.c.l.b16 %v2223
        %v2431 = vunpack.c.l.b16 %v2224
        %v2432 = vunpack.c.l.b16 %v2225
        %v2433 = vunpack.c.l.b16 %v2226
        %v2434 = vunpack.c.l.b16 %v2227
        %v2435 = vunpack.c.l.b16 %v2228
        %v2436 = vunpack.c.l.b16 %v2229
        %v2437 = vunpack.c.l.b16 %v2230
        %v2438 = vunpack.c.l.b16 %v2231
        %v2439 = vpack.c.b16 %v2410, %v2409
        %v2440 = vpack.c.b16 %v2412, %v2411
        %v2441 = vpack.c.b16 %v2414, %v2413
        %v2442 = vpack.c.b16 %v2416, %v2415
        %v2443 = vpack.c.b16 %v2418, %v2417
        %v2444 = vpack.c.b16 %v2420, %v2419
        %v2445 = vpack.c.b16 %v2422, %v2421
        %v2446 = vpack.c.b16 %v2424, %v2423
        %v2447 = vpack.c.b16 %v2426, %v2425
        %v2448 = vpack.c.b16 %v2428, %v2427
        %v2449 = vpack.c.b16 %v2430, %v2429
        %v2450 = vpack.c.b16 %v2432, %v2431
        %v2451 = vpack.c.b16 %v2434, %v2433
        %v2452 = vpack.c.b16 %v2436, %v2435
        %v2453 = vpack.c.b16 %v2438, %v2437
        %2469 = vmatpush.bf16.msra.mxu0 %v2446
        %2470 = vmatpush.bf16.msra.mxu0 %v2445
        %2471 = vmatpush.bf16.msra.mxu0 %v2444
        %2472 = vmatpush.bf16.msra.mxu0 %v2443
        %2473 = vmatpush.bf16.msra.mxu0 %v2442
        %2474 = vmatpush.bf16.msra.mxu0 %v2441
        %2475 = vmatpush.bf16.msra.mxu0 %v2440
        %2476 = vmatpush.bf16.msra.mxu0 %v2439
        %2477 = vmatmul.bf16.gmra.mxu0 %v1739
        %v2478 = vpop.f32.mrf.mxu0
        %v2479 = vadd.f32 %v2376, %v2478
        %v2480 = vpop.f32.mrf.mxu0
        %2481 = vdwg.mxu0
        %2482 = vmatpush.bf16.msra.mxu0 0
        %2483 = vmatpush.bf16.msra.mxu0 %v2453
        %2484 = vmatpush.bf16.msra.mxu0 %v2452
        %2485 = vmatpush.bf16.msra.mxu0 %v2451
        %2486 = vmatpush.bf16.msra.mxu0 %v2450
        %2487 = vmatpush.bf16.msra.mxu0 %v2449
        %2488 = vmatpush.bf16.msra.mxu0 %v2448
        %2489 = vmatpush.bf16.msra.mxu0 %v2447
        %2490 = vmatmul.bf16.gmra.mxu0 %v2017
        %v2491 = vpop.f32.mrf.mxu0
        %v2492 = vadd.f32 %v2479, %v2491
        %v2493 = vpop.f32.mrf.mxu0
        %2494 = vdwg.mxu0
        %s2495 = scalar_lea.vmem [#allocation12], 600
        %v2496 = vld [vmem:[%s2495] sm:$0xf]
        %v2497 = vld [vmem:[%s2495 + $0x4] sm:$0xf]
        %v2498 = vld [vmem:[%s2495 + $0x8] sm:$0xf]
        %v2499 = vld [vmem:[%s2495 + $0xc] sm:$0xf]
        %v2500 = vld [vmem:[%s2495 + $0x10] sm:$0xf]
        %v2501 = vld [vmem:[%s2495 + $0x14] sm:$0xf]
        %v2502 = vld [vmem:[%s2495 + $0x18] sm:$0xf]
        %v2503 = vld [vmem:[%s2495 + $0x1c] sm:$0xf]
        %v2504 = vld [vmem:[%s2495 + $0x20] sm:$0xf]
        %v2505 = vld [vmem:[%s2495 + $0x24] sm:$0xf]
        %v2506 = vld [vmem:[%s2495 + $0x28] sm:$0xf]
        %v2507 = vld [vmem:[%s2495 + $0x2c] sm:$0xf]
        %v2508 = vld [vmem:[%s2495 + $0x30] sm:$0xf]
        %v2509 = vld [vmem:[%s2495 + $0x34] sm:$0xf]
        %v2510 = vld [vmem:[%s2495 + $0x38] sm:$0xf]
        %v2511 = vld [vmem:[%s2495 + $0x3c] sm:$0xf]
        %v2512 = vld [vmem:[%s2495 + $0x40] sm:$0xf]
        %v2513 = vld [vmem:[%s2495 + $0x44] sm:$0xf]
        %v2514 = vld [vmem:[%s2495 + $0x48] sm:$0xf]
        %v2515 = vld [vmem:[%s2495 + $0x4c] sm:$0xf]
        %v2516 = vld [vmem:[%s2495 + $0x50] sm:$0xf]
        %v2517 = vld [vmem:[%s2495 + $0x54] sm:$0xf]
        %v2518 = vld [vmem:[%s2495 + $0x58] sm:$0xf]
        %v2519 = vld [vmem:[%s2495 + $0x5c] sm:$0xf]
        %v2520 = vld [vmem:[%s2495 + $0x60] sm:$0xf]
        %v2521 = vld [vmem:[%s2495 + $0x64] sm:$0xf]
        %v2522 = vld [vmem:[%s2495 + $0x68] sm:$0xf]
        %v2523 = vld [vmem:[%s2495 + $0x6c] sm:$0xf]
        %v2524 = vld [vmem:[%s2495 + $0x70] sm:$0xf]
        %v2525 = vld [vmem:[%s2495 + $0x74] sm:$0xf]
        %v2556 = vunpack.c.l.b16 %v2496
        %v2557 = vunpack.c.l.b16 %v2497
        %v2558 = vunpack.c.l.b16 %v2498
        %v2559 = vunpack.c.l.b16 %v2499
        %v2560 = vunpack.c.l.b16 %v2500
        %v2561 = vunpack.c.l.b16 %v2501
        %v2562 = vunpack.c.l.b16 %v2502
        %v2563 = vunpack.c.l.b16 %v2503
        %v2564 = vunpack.c.l.b16 %v2504
        %v2565 = vunpack.c.l.b16 %v2505
        %v2566 = vunpack.c.l.b16 %v2506
        %v2567 = vunpack.c.l.b16 %v2507
        %v2568 = vunpack.c.l.b16 %v2508
        %v2569 = vunpack.c.l.b16 %v2509
        %v2570 = vunpack.c.l.b16 %v2510
        %v2571 = vunpack.c.l.b16 %v2511
        %v2572 = vunpack.c.l.b16 %v2512
        %v2573 = vunpack.c.l.b16 %v2513
        %v2574 = vunpack.c.l.b16 %v2514
        %v2575 = vunpack.c.l.b16 %v2515
        %v2576 = vunpack.c.l.b16 %v2516
        %v2577 = vunpack.c.l.b16 %v2517
        %v2578 = vunpack.c.l.b16 %v2518
        %v2579 = vunpack.c.l.b16 %v2519
        %v2580 = vunpack.c.l.b16 %v2520
        %v2581 = vunpack.c.l.b16 %v2521
        %v2582 = vunpack.c.l.b16 %v2522
        %v2583 = vunpack.c.l.b16 %v2523
        %v2584 = vunpack.c.l.b16 %v2524
        %v2585 = vunpack.c.l.b16 %v2525
        %v2586 = vpack.c.b16 %v2557, %v2556
        %v2587 = vpack.c.b16 %v2559, %v2558
        %v2588 = vpack.c.b16 %v2561, %v2560
        %v2589 = vpack.c.b16 %v2563, %v2562
        %v2590 = vpack.c.b16 %v2565, %v2564
        %v2591 = vpack.c.b16 %v2567, %v2566
        %v2592 = vpack.c.b16 %v2569, %v2568
        %v2593 = vpack.c.b16 %v2571, %v2570
        %v2594 = vpack.c.b16 %v2573, %v2572
        %v2595 = vpack.c.b16 %v2575, %v2574
        %v2596 = vpack.c.b16 %v2577, %v2576
        %v2597 = vpack.c.b16 %v2579, %v2578
        %v2598 = vpack.c.b16 %v2581, %v2580
        %v2599 = vpack.c.b16 %v2583, %v2582
        %v2600 = vpack.c.b16 %v2585, %v2584
        %2616 = vmatpush.bf16.msra.mxu0 %v2593
        %2617 = vmatpush.bf16.msra.mxu0 %v2592
        %2618 = vmatpush.bf16.msra.mxu0 %v2591
        %2619 = vmatpush.bf16.msra.mxu0 %v2590
        %2620 = vmatpush.bf16.msra.mxu0 %v2589
        %2621 = vmatpush.bf16.msra.mxu0 %v2588
        %2622 = vmatpush.bf16.msra.mxu0 %v2587
        %2623 = vmatpush.bf16.msra.mxu0 %v2586
        %2624 = vmatmul.bf16.gmra.mxu0 %v1743
        %v2625 = vpop.f32.mrf.mxu0
        %v2626 = vadd.f32 0.0, %v2625
        %v2627 = vpop.f32.mrf.mxu0
        %2628 = vdwg.mxu0
        %2629 = vmatpush.bf16.msra.mxu0 0
        %2630 = vmatpush.bf16.msra.mxu0 %v2600
        %2631 = vmatpush.bf16.msra.mxu0 %v2599
        %2632 = vmatpush.bf16.msra.mxu0 %v2598
        %2633 = vmatpush.bf16.msra.mxu0 %v2597
        %2634 = vmatpush.bf16.msra.mxu0 %v2596
        %2635 = vmatpush.bf16.msra.mxu0 %v2595
        %2636 = vmatpush.bf16.msra.mxu0 %v2594
        %2637 = vmatmul.bf16.gmra.mxu0 %v2167
        %v2638 = vpop.f32.mrf.mxu0
        %v2639 = vadd.f32 %v2626, %v2638
        %v2640 = vpop.f32.mrf.mxu0
        %2641 = vdwg.mxu0
        %v2642 = vadd.f32 %v2492, %v2639
        %v2643 = vadd.f32 %v2642, %v2198
        %v2644 = vmax.f32 %v2200, %v2643
        %v2645 = vld [vmem:[%s8] sm:$0xf]
        %vm2646 = vcmask 64512
        %v2648 = vsel %vm2646, %v2645, 0
        %2650 = vmatpush.msra.mxu0 0.0
        %2651 = vmatpush.msra.mxu0 0.0
        %2652 = vmatpush.msra.mxu0 0.0
        %2653 = vmatpush.msra.mxu0 0.0
        %2654 = vmatpush.msra.mxu0 0.0
        %2655 = vmatpush.msra.mxu0 0.0
        %2656 = vmatpush.msra.mxu0 0.0
        %2657 = vmatpush.msra.mxu0 0.0
        %2658 = vmatpush.msra.mxu0 0.0
        %2659 = vmatpush.msra.mxu0 0.0
        %2660 = vmatpush.msra.mxu0 0.0
        %2661 = vmatpush.msra.mxu0 0.0
        %2662 = vmatpush.msra.mxu0 0.0
        %2663 = vmatpush.msra.mxu0 0.0
        %2664 = vmatpush.msra.mxu0 0.0
        %2665 = vmatpush.msra.mxu0 %v2644
        %2666 = vmatmul.f32.gmra.mxu0 %v2648
        %v2667 = vpop.f32.mrf.mxu0
        %v2668 = vadd.f32 0.0, %v2667
        %2669 = vdwg.mxu0
        %s2670 = scalar_lea.vmem %s8, 4
        %v2671 = vld [vmem:[%s2670] sm:$0xf]
        %v2673 = vsel %vm2646, %v2671, 0
        %2675 = vmatpush.msra.mxu0 0.0
        %2676 = vmatpush.msra.mxu0 0.0
        %2677 = vmatpush.msra.mxu0 0.0
        %2678 = vmatpush.msra.mxu0 0.0
        %2679 = vmatpush.msra.mxu0 0.0
        %2680 = vmatpush.msra.mxu0 0.0
        %2681 = vmatpush.msra.mxu0 0.0
        %2682 = vmatpush.msra.mxu0 0.0
        %2683 = vmatpush.msra.mxu0 0.0
        %2684 = vmatpush.msra.mxu0 0.0
        %2685 = vmatpush.msra.mxu0 0.0
        %2686 = vmatpush.msra.mxu0 0.0
        %2687 = vmatpush.msra.mxu0 0.0
        %2688 = vmatpush.msra.mxu0 0.0
        %2689 = vmatpush.msra.mxu0 0.0
        %2690 = vmatpush.msra.mxu0 %v2644
        %2691 = vmatmul.f32.gmra.mxu0 %v2673
        %v2692 = vpop.f32.mrf.mxu0
        %v2693 = vadd.f32 0.0, %v2692
        %2694 = vdwg.mxu0
        %v2695 = vmax.f32 %v2668, %v2693
        %v2696 = vld [vmem:[#allocation15] sm:$0x3]
        %vm2697 = vcmask 31744
        %v2699 = vsel %vm2697, %v2696, 0
        %vm2701 = vcmask 1043456
        %v2703 = vsel %vm2701, %v2695, 0
        %2705 = vmatpush.msra.mxu0 0.0
        %2706 = vmatpush.msra.mxu0 0.0
        %2707 = vmatpush.msra.mxu0 0.0
        %2708 = vmatpush.msra.mxu0 0.0
        %2709 = vmatpush.msra.mxu0 0.0
        %2710 = vmatpush.msra.mxu0 0.0
        %2711 = vmatpush.msra.mxu0 0.0
        %2712 = vmatpush.msra.mxu0 0.0
        %2713 = vmatpush.msra.mxu0 0.0
        %2714 = vmatpush.msra.mxu0 0.0
        %2715 = vmatpush.msra.mxu0 0.0
        %2716 = vmatpush.msra.mxu0 0.0
        %2717 = vmatpush.msra.mxu0 0.0
        %2718 = vmatpush.msra.mxu0 0.0
        %2719 = vmatpush.msra.mxu0 0.0
        %2720 = vmatpush.msra.mxu0 %v2703
        %2721 = vmatmul.f32.gmra.mxu0 %v2699
        %v2722 = vpop.f32.mrf.mxu0
        %v2723 = vadd.f32 0.0, %v2722
        %2724 = vdwg.mxu0
        %s2725 = scalar_lea.vmem [#allocation15], 2
        %v2726 = vld [vmem:[%s2725] sm:$0x3]
        %v2728 = vsel %vm2697, %v2726, 0
        %2730 = vmatpush.msra.mxu0 0.0
        %2731 = vmatpush.msra.mxu0 0.0
        %2732 = vmatpush.msra.mxu0 0.0
        %2733 = vmatpush.msra.mxu0 0.0
        %2734 = vmatpush.msra.mxu0 0.0
        %2735 = vmatpush.msra.mxu0 0.0
        %2736 = vmatpush.msra.mxu0 0.0
        %2737 = vmatpush.msra.mxu0 0.0
        %2738 = vmatpush.msra.mxu0 0.0
        %2739 = vmatpush.msra.mxu0 0.0
        %2740 = vmatpush.msra.mxu0 0.0
        %2741 = vmatpush.msra.mxu0 0.0
        %2742 = vmatpush.msra.mxu0 0.0
        %2743 = vmatpush.msra.mxu0 0.0
        %2744 = vmatpush.msra.mxu0 0.0
        %2745 = vmatpush.msra.mxu0 %v2703
        %2746 = vmatmul.f32.gmra.mxu0 %v2728
        %v2747 = vpop.f32.mrf.mxu0
        %v2748 = vadd.f32 0.0, %v2747
        %2749 = vdwg.mxu0
        %s2750 = scalar_lea.vmem [#allocation15], 4
        %v2751 = vld [vmem:[%s2750] sm:$0x3]
        %v2753 = vsel %vm2697, %v2751, 0
        %2755 = vmatpush.msra.mxu0 0.0
        %2756 = vmatpush.msra.mxu0 0.0
        %2757 = vmatpush.msra.mxu0 0.0
        %2758 = vmatpush.msra.mxu0 0.0
        %2759 = vmatpush.msra.mxu0 0.0
        %2760 = vmatpush.msra.mxu0 0.0
        %2761 = vmatpush.msra.mxu0 0.0
        %2762 = vmatpush.msra.mxu0 0.0
        %2763 = vmatpush.msra.mxu0 0.0
        %2764 = vmatpush.msra.mxu0 0.0
        %2765 = vmatpush.msra.mxu0 0.0
        %2766 = vmatpush.msra.mxu0 0.0
        %2767 = vmatpush.msra.mxu0 0.0
        %2768 = vmatpush.msra.mxu0 0.0
        %2769 = vmatpush.msra.mxu0 0.0
        %2770 = vmatpush.msra.mxu0 %v2703
        %2771 = vmatmul.f32.gmra.mxu0 %v2753
        %v2772 = vpop.f32.mrf.mxu0
        %v2773 = vadd.f32 0.0, %v2772
        %2774 = vdwg.mxu0
        %v2775 = vpack.c.bf16 %v2723, %v2723
        %v2776 = vpack.c.bf16 %v2748, %v2748
        %v2777 = vpack.c.bf16 %v2773, %v2773
        %v2778 = vld [vmem:[#allocation16] sm:$0xf]
        %v2779 = vld [vmem:[#allocation16 + $0x4] sm:$0xf]
        %v2780 = vld [vmem:[#allocation16 + $0x8] sm:$0xf]
        %v2781 = vld [vmem:[#allocation16 + $0xc] sm:$0xf]
        %v2782 = vld [vmem:[#allocation16 + $0x10] sm:$0xf]
        %v2783 = vld [vmem:[#allocation16 + $0x14] sm:$0xf]
        %v2784 = vld [vmem:[#allocation16 + $0x18] sm:$0xf]
        %v2785 = vld [vmem:[#allocation16 + $0x1c] sm:$0xf]
        %v2786 = vld [vmem:[#allocation16 + $0x20] sm:$0xf]
        %v2787 = vld [vmem:[#allocation16 + $0x24] sm:$0xf]
        %v2788 = vld [vmem:[#allocation16 + $0x28] sm:$0xf]
        %v2789 = vld [vmem:[#allocation16 + $0x2c] sm:$0xf]
        %v2790 = vld [vmem:[#allocation16 + $0x30] sm:$0xf]
        %v2791 = vld [vmem:[#allocation16 + $0x34] sm:$0xf]
        %v2792 = vld [vmem:[#allocation16 + $0x38] sm:$0xf]
        %v2793 = vld [vmem:[#allocation16 + $0x3c] sm:$0xf]
        %s2794 = scalar_lea.vmem [#allocation16], 64
        %v2795 = vld [vmem:[%s2794] sm:$0xf]
        %v2796 = vld [vmem:[%s2794 + $0x4] sm:$0xf]
        %v2797 = vld [vmem:[%s2794 + $0x8] sm:$0xf]
        %v2798 = vld [vmem:[%s2794 + $0xc] sm:$0xf]
        %v2799 = vld [vmem:[%s2794 + $0x10] sm:$0xf]
        %v2800 = vld [vmem:[%s2794 + $0x14] sm:$0xf]
        %v2801 = vld [vmem:[%s2794 + $0x18] sm:$0xf]
        %v2802 = vld [vmem:[%s2794 + $0x1c] sm:$0xf]
        %v2803 = vld [vmem:[%s2794 + $0x20] sm:$0xf]
        %v2804 = vld [vmem:[%s2794 + $0x24] sm:$0xf]
        %v2805 = vld [vmem:[%s2794 + $0x28] sm:$0xf]
        %v2806 = vld [vmem:[%s2794 + $0x2c] sm:$0xf]
        %v2807 = vld [vmem:[%s2794 + $0x30] sm:$0xf]
        %v2808 = vld [vmem:[%s2794 + $0x34] sm:$0xf]
        %v2809 = vld [vmem:[%s2794 + $0x38] sm:$0xf]
        %v2810 = vld [vmem:[%s2794 + $0x3c] sm:$0xf]
        %v2827 = vunpack.c.l.b16 %v2795
        %v2828 = vunpack.c.l.b16 %v2796
        %v2829 = vunpack.c.l.b16 %v2797
        %v2830 = vunpack.c.l.b16 %v2798
        %v2831 = vunpack.c.l.b16 %v2799
        %v2832 = vunpack.c.l.b16 %v2800
        %v2833 = vunpack.c.l.b16 %v2801
        %v2834 = vunpack.c.l.b16 %v2802
        %v2835 = vunpack.c.l.b16 %v2803
        %v2836 = vunpack.c.l.b16 %v2804
        %v2837 = vunpack.c.l.b16 %v2805
        %v2838 = vunpack.c.l.b16 %v2806
        %v2839 = vunpack.c.l.b16 %v2807
        %v2840 = vunpack.c.l.b16 %v2808
        %v2841 = vunpack.c.l.b16 %v2809
        %v2842 = vunpack.c.l.b16 %v2810
        %v2843 = vpack.c.b16 %v2828, %v2827
        %v2844 = vpack.c.b16 %v2830, %v2829
        %v2845 = vpack.c.b16 %v2832, %v2831
        %v2846 = vpack.c.b16 %v2834, %v2833
        %v2847 = vpack.c.b16 %v2836, %v2835
        %v2848 = vpack.c.b16 %v2838, %v2837
        %v2849 = vpack.c.b16 %v2840, %v2839
        %v2850 = vpack.c.b16 %v2842, %v2841
        %2859 = vmatpush.bf16.msra.mxu0 %v2850
        %2860 = vmatpush.bf16.msra.mxu0 %v2849
        %2861 = vmatpush.bf16.msra.mxu0 %v2848
        %2862 = vmatpush.bf16.msra.mxu0 %v2847
        %2863 = vmatpush.bf16.msra.mxu0 %v2846
        %2864 = vmatpush.bf16.msra.mxu0 %v2845
        %2865 = vmatpush.bf16.msra.mxu0 %v2844
        %2866 = vmatpush.bf16.msra.mxu0 %v2843
        %2867 = vmatmul.bf16.gmra.mxu0 %v2776
        %v2868 = vpop.f32.mrf.mxu0
        %v2869 = vadd.f32 0.0, %v2868
        %v2870 = vpop.f32.mrf.mxu0
        %2871 = vdwg.mxu0
        %v2888 = vunpack.c.l.b16 %v2778
        %v2889 = vunpack.c.l.b16 %v2779
        %v2890 = vunpack.c.l.b16 %v2780
        %v2891 = vunpack.c.l.b16 %v2781
        %v2892 = vunpack.c.l.b16 %v2782
        %v2893 = vunpack.c.l.b16 %v2783
        %v2894 = vunpack.c.l.b16 %v2784
        %v2895 = vunpack.c.l.b16 %v2785
        %v2896 = vunpack.c.l.b16 %v2786
        %v2897 = vunpack.c.l.b16 %v2787
        %v2898 = vunpack.c.l.b16 %v2788
        %v2899 = vunpack.c.l.b16 %v2789
        %v2900 = vunpack.c.l.b16 %v2790
        %v2901 = vunpack.c.l.b16 %v2791
        %v2902 = vunpack.c.l.b16 %v2792
        %v2903 = vunpack.c.l.b16 %v2793
        %v2904 = vpack.c.b16 %v2889, %v2888
        %v2905 = vpack.c.b16 %v2891, %v2890
        %v2906 = vpack.c.b16 %v2893, %v2892
        %v2907 = vpack.c.b16 %v2895, %v2894
        %v2908 = vpack.c.b16 %v2897, %v2896
        %v2909 = vpack.c.b16 %v2899, %v2898
        %v2910 = vpack.c.b16 %v2901, %v2900
        %v2911 = vpack.c.b16 %v2903, %v2902
        %2920 = vmatpush.bf16.msra.mxu0 %v2911
        %2921 = vmatpush.bf16.msra.mxu0 %v2910
        %2922 = vmatpush.bf16.msra.mxu0 %v2909
        %2923 = vmatpush.bf16.msra.mxu0 %v2908
        %2924 = vmatpush.bf16.msra.mxu0 %v2907
        %2925 = vmatpush.bf16.msra.mxu0 %v2906
        %2926 = vmatpush.bf16.msra.mxu0 %v2905
        %2927 = vmatpush.bf16.msra.mxu0 %v2904
        %2928 = vmatmul.bf16.gmra.mxu0 %v2775
        %v2929 = vpop.f32.mrf.mxu0
        %v2930 = vadd.f32 %v2869, %v2929
        %v2931 = vpop.f32.mrf.mxu0
        %2932 = vdwg.mxu0
        %s2933 = scalar_lea.vmem [#allocation16], 128
        %v2934 = vld [vmem:[%s2933] sm:$0xf]
        %v2935 = vld [vmem:[%s2933 + $0x4] sm:$0xf]
        %v2936 = vld [vmem:[%s2933 + $0x8] sm:$0xf]
        %v2937 = vld [vmem:[%s2933 + $0xc] sm:$0xf]
        %v2938 = vld [vmem:[%s2933 + $0x10] sm:$0xf]
        %v2939 = vld [vmem:[%s2933 + $0x14] sm:$0xf]
        %v2940 = vld [vmem:[%s2933 + $0x18] sm:$0xf]
        %v2941 = vld [vmem:[%s2933 + $0x1c] sm:$0xf]
        %v2942 = vld [vmem:[%s2933 + $0x20] sm:$0xf]
        %v2943 = vld [vmem:[%s2933 + $0x24] sm:$0xf]
        %v2944 = vld [vmem:[%s2933 + $0x28] sm:$0xf]
        %v2945 = vld [vmem:[%s2933 + $0x2c] sm:$0xf]
        %v2946 = vld [vmem:[%s2933 + $0x30] sm:$0xf]
        %v2947 = vld [vmem:[%s2933 + $0x34] sm:$0xf]
        %v2948 = vld [vmem:[%s2933 + $0x38] sm:$0xf]
        %v2949 = vld [vmem:[%s2933 + $0x3c] sm:$0xf]
        %v2966 = vunpack.c.l.b16 %v2934
        %v2967 = vunpack.c.l.b16 %v2935
        %v2968 = vunpack.c.l.b16 %v2936
        %v2969 = vunpack.c.l.b16 %v2937
        %v2970 = vunpack.c.l.b16 %v2938
        %v2971 = vunpack.c.l.b16 %v2939
        %v2972 = vunpack.c.l.b16 %v2940
        %v2973 = vunpack.c.l.b16 %v2941
        %v2974 = vunpack.c.l.b16 %v2942
        %v2975 = vunpack.c.l.b16 %v2943
        %v2976 = vunpack.c.l.b16 %v2944
        %v2977 = vunpack.c.l.b16 %v2945
        %v2978 = vunpack.c.l.b16 %v2946
        %v2979 = vunpack.c.l.b16 %v2947
        %v2980 = vunpack.c.l.b16 %v2948
        %v2981 = vunpack.c.l.b16 %v2949
        %v2982 = vpack.c.b16 %v2967, %v2966
        %v2983 = vpack.c.b16 %v2969, %v2968
        %v2984 = vpack.c.b16 %v2971, %v2970
        %v2985 = vpack.c.b16 %v2973, %v2972
        %v2986 = vpack.c.b16 %v2975, %v2974
        %v2987 = vpack.c.b16 %v2977, %v2976
        %v2988 = vpack.c.b16 %v2979, %v2978
        %v2989 = vpack.c.b16 %v2981, %v2980
        %2998 = vmatpush.bf16.msra.mxu0 %v2989
        %2999 = vmatpush.bf16.msra.mxu0 %v2988
        %3000 = vmatpush.bf16.msra.mxu0 %v2987
        %3001 = vmatpush.bf16.msra.mxu0 %v2986
        %3002 = vmatpush.bf16.msra.mxu0 %v2985
        %3003 = vmatpush.bf16.msra.mxu0 %v2984
        %3004 = vmatpush.bf16.msra.mxu0 %v2983
        %3005 = vmatpush.bf16.msra.mxu0 %v2982
        %3006 = vmatmul.bf16.gmra.mxu0 %v2777
        %v3007 = vpop.f32.mrf.mxu0
        %v3008 = vadd.f32 0.0, %v3007
        %v3009 = vpop.f32.mrf.mxu0
        %3010 = vdwg.mxu0
        %v3011 = vadd.f32 %v2930, %v3008
        %v3012 = vld [vmem:[%s11] sm:$0x1]
        %v3014 = vperm.slane %v3012, 0
        %v3016 = vadd.f32 %v3011, %v3014
        %v3017 = vld [vmem:[#allocation18] sm:$0xff]
        %v3018 = vld [vmem:[#allocation18 + $0x8] sm:$0xff]
        %v3019 = vld [vmem:[#allocation18 + $0x10] sm:$0xff]
        %v3020 = vld [vmem:[#allocation18 + $0x18] sm:$0xff]
        %v3021 = vld [vmem:[#allocation18 + $0x20] sm:$0xff]
        %v3022 = vld [vmem:[#allocation18 + $0x28] sm:$0xff]
        %v3023 = vld [vmem:[#allocation18 + $0x30] sm:$0xff]
        %v3024 = vld [vmem:[#allocation18 + $0x38] sm:$0xff]
        %v3025 = vld [vmem:[#allocation18 + $0x40] sm:$0xff]
        %v3026 = vld [vmem:[#allocation18 + $0x48] sm:$0xff]
        %v3027 = vld [vmem:[#allocation18 + $0x50] sm:$0xff]
        %v3028 = vld [vmem:[#allocation18 + $0x58] sm:$0xff]
        %v3029 = vld [vmem:[#allocation18 + $0x60] sm:$0xff]
        %v3030 = vld [vmem:[#allocation18 + $0x68] sm:$0xff]
        %v3031 = vld [vmem:[#allocation18 + $0x70] sm:$0xff]
        %v3032 = vld [vmem:[#allocation18 + $0x78] sm:$0xff]
        %3033 = vmatpush.msra.mxu0 %v3032
        %3034 = vmatpush.msra.mxu0 %v3031
        %3035 = vmatpush.msra.mxu0 %v3030
        %3036 = vmatpush.msra.mxu0 %v3029
        %3037 = vmatpush.msra.mxu0 %v3028
        %3038 = vmatpush.msra.mxu0 %v3027
        %3039 = vmatpush.msra.mxu0 %v3026
        %3040 = vmatpush.msra.mxu0 %v3025
        %3041 = vmatpush.msra.mxu0 %v3024
        %3042 = vmatpush.msra.mxu0 %v3023
        %3043 = vmatpush.msra.mxu0 %v3022
        %3044 = vmatpush.msra.mxu0 %v3021
        %3045 = vmatpush.msra.mxu0 %v3020
        %3046 = vmatpush.msra.mxu0 %v3019
        %3047 = vmatpush.msra.mxu0 %v3018
        %3048 = vmatpush.msra.mxu0 %v3017
        %3049 = vmatmul.f32.gmra.mxu0 %v3016
        %v3050 = vpop.f32.mrf.mxu0
        %v3051 = vadd.f32 0.0, %v3050
        %3052 = vdwg.mxu0
        %vm3053 = vcmask 9216
        %3054 = vst.msk [vmem:[%s621] sm:$0x3] %vm3053, %v3051
        %p3055 = scmp.lt.s32.totalorder %s32, 1
        %s3056 = scalar_select %p3055, %s32, 1
        %s3057 = smul.addr %s3056, 2
        %s3058 = scalar_lea.vmem %s13, %s3057
        // Predicated region
        $region117: #{encoder_forward.1} parent=71 // pred_check
          %p3059 = pneg %p328
        $region118: #{encoder_forward.1} parent=71 // pred_check_branch
          %3061 = sbr.rel (%p3059) target = $region120
        $region119: #{encoder_forward.1} parent=71 // pred_region
          _
        $region120: #{encoder_forward.1} parent=71 // pred_fallthru
          _
      $region72: #{encoder_forward.1} parent=5 // pred_fallthru
        _
      %p3062 = scmp.le.s32.totalorder 2, %s27
      // Predicated region
      $region121: #{encoder_forward.1} parent=5 // pred_check
        %p3063 = pneg %p3062
      $region122: #{encoder_forward.1} parent=5 // pred_check_branch
        %3065 = sbr.rel (%p3063) target = $region124
      $region123: #{encoder_forward.1} parent=5 // pred_region
        %s3066 = ssub.s32 %s27, 2
        // Predicated region
        $region125: #{encoder_forward.1} parent=123 // pred_check
          %p3067 = pneg %p334
        $region126: #{encoder_forward.1} parent=123 // pred_check_branch
          %3069 = sbr.rel (%p3067) target = $region128
        $region127: #{encoder_forward.1} parent=123 // pred_region
          %p3070 = scmp.lt.s32.totalorder %s33, 1
          %s3071 = scalar_select %p3070, %s33, 1
          %s3072 = smul.addr %s3071, 2
          %s3073 = scalar_lea.vmem %s13, %s3072
        $region128: #{encoder_forward.1} parent=123 // pred_fallthru
          _
      $region124: #{encoder_forward.1} parent=5 // pred_fallthru
        _
    $region6: #{encoder_forward.1} parent=1 // loop_footer
      %s31 = sadd.s32 1, %s27
    $region7: #{encoder_forward.1} parent=1 // loop_footer_branch
      %26 = sbr.rel target = $region3
    $region8: #{encoder_forward.1} parent=1 // loop_exit
      _
    %3074 = vsyncpa [#allocation3], 1
    %s3075 = scalar_lea.sflag [#allocation3], 1
    %3076 = vsyncpa %s3075, 1
    %3077 = vsyncpa [#allocation5], 1
    %3078 = vsyncpa [#allocation8], 1
    %3079 = vsyncpa [#allocation11], 1
    %3080 = vsyncpa [#allocation14], 1
    %3081 = vsyncpa [#allocation17], 1

</llo_original>
